<compile_context>
chip_gen: v5e
topology: v5e:2x2
jax: 0.10.0
libtpu: 0.0.40
codegen_flags: <defaults>
</compile_context>

<pallas_src>
import functools
import numpy as np
import jax
import jax.numpy as jnp
from jax.experimental import pallas as pl
from jax.experimental.pallas import tpu as pltpu

F32 = jnp.float32
VMEM_SPEC = pl.BlockSpec(memory_space=pltpu.MemorySpace.VMEM)


def _sigmoid(z):
    # explicit form (exp on EUP + exact reciprocal) to keep lowering simple/robust
    return 1.0 / (1.0 + jnp.exp(-z))


# ----------------------------------------------------------------------------
# Fused CLSTM block kernel:
#   conv (all kernel sizes, one matmul) + bias + ReLU
#   -> biLSTM (PyTorch gate order i,f,g,o; time axis length T, batch N = G*P)
#   -> tanh -> max-pool over the P positions of each of the G groups
#   [-> linear -> (+ extra logits) -> log_softmax]
# ----------------------------------------------------------------------------
def _make_clstm_kernel(T, N, G, P, H, with_linear, n_extra, with_logsoftmax):
    def kernel(*refs):
        (xcol_ref, cw_ref, cb_ref, wih_ref,
         whhf_ref, bf_ref, whhb_ref, bb_ref) = refs[:8]
        pos = 8
        if with_linear:
            fcw_ref, fcb_ref = refs[pos], refs[pos + 1]
            pos += 2
        extra_refs = refs[pos:pos + n_extra]
        o_ref = refs[pos + n_extra]

        # ---- conv: all kernel sizes fused into a single im2col matmul ----
        cnn = jnp.maximum(
            jnp.dot(xcol_ref[...], cw_ref[...], preferred_element_type=F32)
            + cb_ref[...], 0.0)                                   # (T*N, C)

        # ---- hoisted LSTM input projection (fwd & bwd gates concatenated) ----
        xproj = jnp.dot(cnn, wih_ref[...], preferred_element_type=F32)   # (T*N, 8H)

        def lstm_step(xg, h, c, whh, b):
            g = xg + jnp.dot(h, whh, preferred_element_type=F32) + b
            i_g = _sigmoid(g[:, 0 * H:1 * H])
            f_g = _sigmoid(g[:, 1 * H:2 * H])
            g_g = jnp.tanh(g[:, 2 * H:3 * H])
            o_g = _sigmoid(g[:, 3 * H:4 * H])
            c = f_g * c + i_g * g_g
            h = o_g * jnp.tanh(c)
            return h, c

        def pool(h):  # (N, H) -> (G, H): max over the P positions of each group
            parts = [jnp.max(h[g * P:(g + 1) * P, :], axis=0, keepdims=True)
                     for g in range(G)]
            return parts[0] if G == 1 else jnp.concatenate(parts, axis=0)

        # backward direction first so its per-time pooled output is ready when the
        # forward pass emits time t (T is tiny & static -> unrolled Python loops)
        h = jnp.zeros((N, H), F32)
        c = jnp.zeros((N, H), F32)
        pooled_b = [None] * T
        for t in range(T - 1, -1, -1):
            h, c = lstm_step(xproj[t * N:(t + 1) * N, 4 * H:8 * H], h, c,
                             whhb_ref[...], bb_ref[...])
            pooled_b[t] = pool(h)

        h = jnp.zeros((N, H), F32)
        c = jnp.zeros((N, H), F32)
        outs = [None] * T
        for t in range(T):
            h, c = lstm_step(xproj[t * N:(t + 1) * N, 0:4 * H], h, c,
                             whhf_ref[...], bf_ref[...])
            # tanh(max(x)) == max(tanh(x)) (tanh is monotonic) -> pool first, cheaper.
            outs[t] = jnp.tanh(jnp.concatenate([pool(h), pooled_b[t]], axis=-1))

        stacked = outs[0] if T == 1 else jnp.concatenate(outs, axis=0)   # (T*G, 2H)

        if with_linear:                                           # G == 1 here
            logits = jnp.dot(stacked, fcw_ref[...],
                             preferred_element_type=F32) + fcb_ref[...]
            for er in extra_refs:
                logits = logits + er[...]
            if with_logsoftmax:
                z = logits - jnp.max(logits, axis=1, keepdims=True)
                logits = z - jnp.log(jnp.sum(jnp.exp(z), axis=1, keepdims=True))
            o_ref[...] = logits
        else:
            o_ref[...] = stacked
    return kernel


def clstm_fused(x_feat, p, *, with_linear, extra_logits=(), log_softmax_out=False):
    """One fused CLSTM block.

    x_feat: (T, G, P, E) float32.
      T = LSTM time axis (the module's batch dim B, per the batch_first=False quirk),
      G = independent pooling groups (S for the batched word block, 1 otherwise),
      P = conv / pooling axis length (W, S or L), E = input feature width.
    Returns (T, G, 2H) if not with_linear, else (T, num_class).
    """
    if not with_linear:
        assert not extra_logits and not log_softmax_out
    T, G, P, E = map(int, x_feat.shape)
    kmax = int(p["kmax"])
    pmax = kmax // 2
    H = int(p["whh_f"].shape[0])
    N = G * P

    # im2col along the conv axis ('same' padding shared by all kernel sizes); this is
    # cheap XLA layout prep fused with the embedding gather, everything after it runs
    # inside a single Pallas kernel.  Padding is per (T, G) slice, so conv windows
    # never cross group boundaries (matches the per-sample conv of the module).
    xp = jnp.pad(x_feat, ((0, 0), (0, 0), (pmax, pmax), (0, 0)))
    xcol = jnp.concatenate([xp[:, :, d:d + P, :] for d in range(kmax)], axis=-1)
    xcol = xcol.reshape(T * N, kmax * E)

    inputs = [xcol, p["conv_w"], p["conv_b"], p["wih"],
              p["whh_f"], p["b_f"], p["whh_b"], p["b_b"]]
    if with_linear:
        inputs += [p["fc_w"], p["fc_b"]]
        num_class = int(p["fc_w"].shape[1])
        out_shape = jax.ShapeDtypeStruct((T, num_class), F32)
    else:
        out_shape = jax.ShapeDtypeStruct((T * G, 2 * H), F32)
    inputs += list(extra_logits)

    out = pl.pallas_call(
        _make_clstm_kernel(T, N, G, P, H, with_linear, len(extra_logits),
                           log_softmax_out),
        out_shape=out_shape,
        in_specs=[VMEM_SPEC] * len(inputs),
        out_specs=VMEM_SPEC,
    )(*inputs)
    if not with_linear:
        out = out.reshape(T, G, 2 * H)
    return out


# ----------------------------------------------------------------------------
# Parameter setup (PyTorch-equivalent layouts, pre-packed for the fused kernel)
# ----------------------------------------------------------------------------
def _uniform(key, shape, scale):
    return jax.random.uniform(key, shape, F32, -scale, scale)


def init_clstm_params(key, embed_dim, kernels, n_filter, hidden, num_class,
                      vocab=None):
    keys = jax.random.split(key, 16)
    p = {}
    if vocab is not None:
        p["embed"] = jax.random.normal(keys[0], (vocab, embed_dim), F32) * 0.1

    # per-kernel-size conv weights (module forces odd kernel sizes)
    convs = []
    for j, K in enumerate(kernels):
        k = K + 1 if K % 2 == 0 else K
        sc = 1.0 / np.sqrt(k * embed_dim)
        kk = jax.random.split(keys[1 + j], 2)
        convs.append((k, _uniform(kk[0], (k, embed_dim, n_filter), sc),
                      _uniform(kk[1], (n_filter,), sc)))

    # pack all kernel sizes into one (kmax*E, nK*F) im2col weight + (1, nK*F) bias
    kmax = max(k for (k, _, _) in convs)
    pmax = kmax // 2
    C = n_filter * len(kernels)
    w_packed = jnp.zeros((kmax, embed_dim, C), F32)
    b_packed = jnp.zeros((C,), F32)
    col = 0
    for (k, w, b) in convs:
        pk = k // 2
        w_packed = w_packed.at[pmax - pk:pmax - pk + k, :, col:col + n_filter].set(w)
        b_packed = b_packed.at[col:col + n_filter].set(b)
        col += n_filter
    p["kmax"] = int(kmax)
    p["conv_w"] = w_packed.reshape(kmax * embed_dim, C)
    p["conv_b"] = b_packed.reshape(1, C)

    # biLSTM: W_ih^T fwd|bwd concatenated -> (C, 8H); W_hh^T:(H,4H); b = b_ih + b_hh
    # TODO(synk): num_layers > 1 (args.*_lstm_layer) not implemented; single layer only.
    sc = 1.0 / np.sqrt(hidden)
    lk = jax.random.split(keys[8], 8)
    wih_f = _uniform(lk[0], (C, 4 * hidden), sc)
    wih_b = _uniform(lk[4], (C, 4 * hidden), sc)
    p["wih"] = jnp.concatenate([wih_f, wih_b], axis=1)
    p["whh_f"] = _uniform(lk[1], (hidden, 4 * hidden), sc)
    p["b_f"] = _uniform(lk[2], (1, 4 * hidden), sc) + _uniform(lk[3], (1, 4 * hidden), sc)
    p["whh_b"] = _uniform(lk[5], (hidden, 4 * hidden), sc)
    p["b_b"] = _uniform(lk[6], (1, 4 * hidden), sc) + _uniform(lk[7], (1, 4 * hidden), sc)

    sc = 1.0 / np.sqrt(2 * hidden)
    p["fc_w"] = _uniform(keys[9], (2 * hidden, num_class), sc)
    p["fc_b"] = _uniform(keys[10], (1, num_class), sc)
    return p


# ----------------------------------------------------------------------------
# Full model forward
# ----------------------------------------------------------------------------
def hcl_forward(text, text1, params, mode="HCL"):
    B, S, W = text.shape

    # --- wordCLSTM over all S sentences in ONE batched fused kernel ---
    x_word = params["word"]["embed"][text]                             # (B, S, W, Ew)
    word_out = clstm_fused(x_word, params["word"], with_linear=False)  # (B, S, 2*Hw)

    # --- sentCLSTM (LSTM time axis = B, pool axis = S) ---
    x_sent = word_out[:, None, :, :]                                   # (B, 1, S, 2*Hw)
    if mode == "HCL":
        return clstm_fused(x_sent, params["sent"], with_linear=True,
                           log_softmax_out=True)
    sent_logits = clstm_fused(x_sent, params["sent"], with_linear=True)

    x1 = params["clstm1"]["embed"][text1][:, None, :, :]               # (B, 1, L, E1)
    if mode == "HCL_CLSTM":
        return clstm_fused(x1, params["clstm1"], with_linear=True,
                           extra_logits=(sent_logits,), log_softmax_out=True)

    # mode == "HCL_2CLSTM"
    # TODO(synk): original module prints '222222222' here; omitted to keep stdout clean.
    c1_logits = clstm_fused(x1, params["clstm1"], with_linear=True)
    x2 = params["clstm2"]["embed"][text1][:, None, :, :]               # (B, 1, L, E2)
    return clstm_fused(x2, params["clstm2"], with_linear=True,
                       extra_logits=(sent_logits, c1_logits), log_softmax_out=True)


# ----------------------------------------------------------------------------
if __name__ == "__main__":
    # small "args" consistent with the module's implicit shape constraints:
    #   sentCLSTM_embed == 2 * wordCLSTM_filter, sentCLSTM_dim == sentCLSTM_filter,
    #   CLSTM2_dim == CLSTM2_filter; lstm_layer = 1; dropout inactive at inference.
    vocab, num_class = 50, 5
    B, S, W, L = 2, 3, 10, 12
    word_embed, word_kernels, word_filter = 16, (3, 5), 8
    sent_embed, sent_kernels, sent_filter = 2 * word_filter, (3,), 12
    c1_embed, c1_kernels, c1_filter = 16, (3,), 8
    c2_embed, c2_kernels, c2_filter = 16, (3, 4), 8   # even kernel 4 -> forced to 5

    key = jax.random.PRNGKey(0)
    k_word, k_sent, k_c1, k_c2, k_text, k_text1 = jax.random.split(key, 6)
    params = {
        "word": init_clstm_params(k_word, word_embed, word_kernels, word_filter,
                                  hidden=word_filter, num_class=num_class, vocab=vocab),
        "sent": init_clstm_params(k_sent, sent_embed, sent_kernels, sent_filter,
                                  hidden=sent_filter * len(sent_kernels),
                                  num_class=num_class, vocab=None),
        "clstm1": init_clstm_params(k_c1, c1_embed, c1_kernels, c1_filter,
                                    hidden=c1_filter * len(c1_kernels),
                                    num_class=num_class, vocab=vocab),
        "clstm2": init_clstm_params(k_c2, c2_embed, c2_kernels, c2_filter,
                                    hidden=c2_filter * len(c2_kernels),
                                    num_class=num_class, vocab=vocab),
    }

    text = jax.random.randint(k_text, (B, S, W), 0, vocab, dtype=jnp.int32)
    text1 = jax.random.randint(k_text1, (B, L), 0, vocab, dtype=jnp.int32)

    fwd = jax.jit(functools.partial(hcl_forward, params=params, mode="HCL_2CLSTM"))
    out = jax.block_until_ready(fwd(text, text1))
    assert out.shape == (B, num_class), out.shape
    assert bool(jnp.all(jnp.isfinite(out)))
    print("KERNEL_OK")
</pallas_src>

<mosaic_0001>
module attributes {stable_mosaic.version = 11 : i64} {
  func.func @kernel(%arg0: memref<6x48xf32, #tpu.memory_space<vmem>>, %arg1: memref<48x12xf32, #tpu.memory_space<vmem>>, %arg2: memref<1x12xf32, #tpu.memory_space<vmem>>, %arg3: memref<12x96xf32, #tpu.memory_space<vmem>>, %arg4: memref<12x48xf32, #tpu.memory_space<vmem>>, %arg5: memref<1x48xf32, #tpu.memory_space<vmem>>, %arg6: memref<12x48xf32, #tpu.memory_space<vmem>>, %arg7: memref<1x48xf32, #tpu.memory_space<vmem>>, %arg8: memref<24x5xf32, #tpu.memory_space<vmem>>, %arg9: memref<1x5xf32, #tpu.memory_space<vmem>>, %arg10: memref<2x5xf32, #tpu.memory_space<vmem>>) attributes {dimension_semantics = [], scalar_prefetch = 0 : i64, scratch_operands = 0 : i64, tpu.core_type = #tpu.core_type<tc>} {
    %c0 = arith.constant 0 : index
    %c0_0 = arith.constant 0 : index
    %0 = vector.load %arg0[%c0, %c0_0] : memref<6x48xf32, #tpu.memory_space<vmem>>, vector<6x48xf32>
    %c0_1 = arith.constant 0 : index
    %c0_2 = arith.constant 0 : index
    %1 = vector.load %arg1[%c0_1, %c0_2] : memref<48x12xf32, #tpu.memory_space<vmem>>, vector<48x12xf32>
    %cst = arith.constant dense<0.000000e+00> : vector<6x12xf32>
    %2 = tpu.matmul %0, %1, %cst {dimension_numbers = #tpu.dot_dimension_numbers<[1], [0], [0], [1], [0, 0, 1, 1], [], []>} : vector<6x48xf32>, vector<48x12xf32>, vector<6x12xf32> -> vector<6x12xf32>
    %c0_3 = arith.constant 0 : index
    %c0_4 = arith.constant 0 : index
    %3 = vector.load %arg2[%c0_3, %c0_4] : memref<1x12xf32, #tpu.memory_space<vmem>>, vector<1x12xf32>
    %4 = vector.broadcast %3 : vector<1x12xf32> to vector<6x12xf32>
    %5 = arith.addf %2, %4 : vector<6x12xf32>
    %cst_5 = arith.constant 0.000000e+00 : f32
    %6 = vector.broadcast %cst_5 : f32 to vector<6x12xf32>
    %7 = arith.maximumf %5, %6 : vector<6x12xf32>
    %c0_6 = arith.constant 0 : index
    %c0_7 = arith.constant 0 : index
    %8 = vector.load %arg3[%c0_6, %c0_7] : memref<12x96xf32, #tpu.memory_space<vmem>>, vector<12x96xf32>
    %cst_8 = arith.constant dense<0.000000e+00> : vector<6x96xf32>
    %9 = tpu.matmul %7, %8, %cst_8 {dimension_numbers = #tpu.dot_dimension_numbers<[1], [0], [0], [1], [0, 0, 1, 1], [], []>} : vector<6x12xf32>, vector<12x96xf32>, vector<6x96xf32> -> vector<6x96xf32>
    %cst_9 = arith.constant 0.000000e+00 : f32
    %10 = vector.broadcast %cst_9 : f32 to vector<3x12xf32>
    %cst_10 = arith.constant 0.000000e+00 : f32
    %11 = vector.broadcast %cst_10 : f32 to vector<3x12xf32>
    %12 = vector.extract_strided_slice %9 {offsets = [3, 48], sizes = [3, 48], strides = [1, 1]} : vector<6x96xf32> to vector<3x48xf32>
    %c0_11 = arith.constant 0 : index
    %c0_12 = arith.constant 0 : index
    %13 = vector.load %arg6[%c0_11, %c0_12] : memref<12x48xf32, #tpu.memory_space<vmem>>, vector<12x48xf32>
    %c0_13 = arith.constant 0 : index
    %c0_14 = arith.constant 0 : index
    %14 = vector.load %arg7[%c0_13, %c0_14] : memref<1x48xf32, #tpu.memory_space<vmem>>, vector<1x48xf32>
    %cst_15 = arith.constant dense<0.000000e+00> : vector<3x48xf32>
    %15 = tpu.matmul %10, %13, %cst_15 {dimension_numbers = #tpu.dot_dimension_numbers<[1], [0], [0], [1], [0, 0, 1, 1], [], []>} : vector<3x12xf32>, vector<12x48xf32>, vector<3x48xf32> -> vector<3x48xf32>
    %16 = arith.addf %12, %15 : vector<3x48xf32>
    %17 = vector.broadcast %14 : vector<1x48xf32> to vector<3x48xf32>
    %18 = arith.addf %16, %17 : vector<3x48xf32>
    %19 = vector.extract_strided_slice %18 {offsets = [0, 0], sizes = [3, 12], strides = [1, 1]} : vector<3x48xf32> to vector<3x12xf32>
    %cst_16 = arith.constant 0.000000e+00 : f32
    %20 = vector.broadcast %cst_16 : f32 to vector<3x12xf32>
    %21 = arith.subf %20, %19 : vector<3x12xf32>
    %22 = math.exp %21 : vector<3x12xf32>
    %cst_17 = arith.constant 1.000000e+00 : f32
    %23 = vector.broadcast %cst_17 : f32 to vector<3x12xf32>
    %24 = arith.addf %23, %22 : vector<3x12xf32>
    %cst_18 = arith.constant 1.000000e+00 : f32
    %25 = vector.broadcast %cst_18 : f32 to vector<3x12xf32>
    %26 = arith.divf %25, %24 : vector<3x12xf32>
    %27 = vector.extract_strided_slice %18 {offsets = [0, 12], sizes = [3, 12], strides = [1, 1]} : vector<3x48xf32> to vector<3x12xf32>
    %cst_19 = arith.constant 0.000000e+00 : f32
    %28 = vector.broadcast %cst_19 : f32 to vector<3x12xf32>
    %29 = arith.subf %28, %27 : vector<3x12xf32>
    %30 = math.exp %29 : vector<3x12xf32>
    %cst_20 = arith.constant 1.000000e+00 : f32
    %31 = vector.broadcast %cst_20 : f32 to vector<3x12xf32>
    %32 = arith.addf %31, %30 : vector<3x12xf32>
    %cst_21 = arith.constant 1.000000e+00 : f32
    %33 = vector.broadcast %cst_21 : f32 to vector<3x12xf32>
    %34 = arith.divf %33, %32 : vector<3x12xf32>
    %35 = vector.extract_strided_slice %18 {offsets = [0, 24], sizes = [3, 12], strides = [1, 1]} : vector<3x48xf32> to vector<3x12xf32>
    %36 = math.tanh %35 : vector<3x12xf32>
    %37 = vector.extract_strided_slice %18 {offsets = [0, 36], sizes = [3, 12], strides = [1, 1]} : vector<3x48xf32> to vector<3x12xf32>
    %cst_22 = arith.constant 0.000000e+00 : f32
    %38 = vector.broadcast %cst_22 : f32 to vector<3x12xf32>
    %39 = arith.subf %38, %37 : vector<3x12xf32>
    %40 = math.exp %39 : vector<3x12xf32>
    %cst_23 = arith.constant 1.000000e+00 : f32
    %41 = vector.broadcast %cst_23 : f32 to vector<3x12xf32>
    %42 = arith.addf %41, %40 : vector<3x12xf32>
    %cst_24 = arith.constant 1.000000e+00 : f32
    %43 = vector.broadcast %cst_24 : f32 to vector<3x12xf32>
    %44 = arith.divf %43, %42 : vector<3x12xf32>
    %45 = arith.mulf %34, %11 : vector<3x12xf32>
    %46 = arith.mulf %26, %36 : vector<3x12xf32>
    %47 = arith.addf %45, %46 : vector<3x12xf32>
    %48 = math.tanh %47 : vector<3x12xf32>
    %49 = arith.mulf %44, %48 : vector<3x12xf32>
    %cst_25 = arith.constant dense<0xFF800000> : vector<12xf32>
    %50 = vector.multi_reduction <maximumf>, %49, %cst_25 [0] : vector<3x12xf32> to vector<12xf32>
    %51 = vector.shape_cast %50 : vector<12xf32> to vector<1x12xf32>
    %52 = vector.extract_strided_slice %9 {offsets = [0, 48], sizes = [3, 48], strides = [1, 1]} : vector<6x96xf32> to vector<3x48xf32>
    %c0_26 = arith.constant 0 : index
    %c0_27 = arith.constant 0 : index
    %53 = vector.load %arg6[%c0_26, %c0_27] : memref<12x48xf32, #tpu.memory_space<vmem>>, vector<12x48xf32>
    %c0_28 = arith.constant 0 : index
    %c0_29 = arith.constant 0 : index
    %54 = vector.load %arg7[%c0_28, %c0_29] : memref<1x48xf32, #tpu.memory_space<vmem>>, vector<1x48xf32>
    %cst_30 = arith.constant dense<0.000000e+00> : vector<3x48xf32>
    %55 = tpu.matmul %49, %53, %cst_30 {dimension_numbers = #tpu.dot_dimension_numbers<[1], [0], [0], [1], [0, 0, 1, 1], [], []>} : vector<3x12xf32>, vector<12x48xf32>, vector<3x48xf32> -> vector<3x48xf32>
    %56 = arith.addf %52, %55 : vector<3x48xf32>
    %57 = vector.broadcast %54 : vector<1x48xf32> to vector<3x48xf32>
    %58 = arith.addf %56, %57 : vector<3x48xf32>
    %59 = vector.extract_strided_slice %58 {offsets = [0, 0], sizes = [3, 12], strides = [1, 1]} : vector<3x48xf32> to vector<3x12xf32>
    %cst_31 = arith.constant 0.000000e+00 : f32
    %60 = vector.broadcast %cst_31 : f32 to vector<3x12xf32>
    %61 = arith.subf %60, %59 : vector<3x12xf32>
    %62 = math.exp %61 : vector<3x12xf32>
    %cst_32 = arith.constant 1.000000e+00 : f32
    %63 = vector.broadcast %cst_32 : f32 to vector<3x12xf32>
    %64 = arith.addf %63, %62 : vector<3x12xf32>
    %cst_33 = arith.constant 1.000000e+00 : f32
    %65 = vector.broadcast %cst_33 : f32 to vector<3x12xf32>
    %66 = arith.divf %65, %64 : vector<3x12xf32>
    %67 = vector.extract_strided_slice %58 {offsets = [0, 12], sizes = [3, 12], strides = [1, 1]} : vector<3x48xf32> to vector<3x12xf32>
    %cst_34 = arith.constant 0.000000e+00 : f32
    %68 = vector.broadcast %cst_34 : f32 to vector<3x12xf32>
    %69 = arith.subf %68, %67 : vector<3x12xf32>
    %70 = math.exp %69 : vector<3x12xf32>
    %cst_35 = arith.constant 1.000000e+00 : f32
    %71 = vector.broadcast %cst_35 : f32 to vector<3x12xf32>
    %72 = arith.addf %71, %70 : vector<3x12xf32>
    %cst_36 = arith.constant 1.000000e+00 : f32
    %73 = vector.broadcast %cst_36 : f32 to vector<3x12xf32>
    %74 = arith.divf %73, %72 : vector<3x12xf32>
    %75 = vector.extract_strided_slice %58 {offsets = [0, 24], sizes = [3, 12], strides = [1, 1]} : vector<3x48xf32> to vector<3x12xf32>
    %76 = math.tanh %75 : vector<3x12xf32>
    %77 = vector.extract_strided_slice %58 {offsets = [0, 36], sizes = [3, 12], strides = [1, 1]} : vector<3x48xf32> to vector<3x12xf32>
    %cst_37 = arith.constant 0.000000e+00 : f32
    %78 = vector.broadcast %cst_37 : f32 to vector<3x12xf32>
    %79 = arith.subf %78, %77 : vector<3x12xf32>
    %80 = math.exp %79 : vector<3x12xf32>
    %cst_38 = arith.constant 1.000000e+00 : f32
    %81 = vector.broadcast %cst_38 : f32 to vector<3x12xf32>
    %82 = arith.addf %81, %80 : vector<3x12xf32>
    %cst_39 = arith.constant 1.000000e+00 : f32
    %83 = vector.broadcast %cst_39 : f32 to vector<3x12xf32>
    %84 = arith.divf %83, %82 : vector<3x12xf32>
    %85 = arith.mulf %74, %47 : vector<3x12xf32>
    %86 = arith.mulf %66, %76 : vector<3x12xf32>
    %87 = arith.addf %85, %86 : vector<3x12xf32>
    %88 = math.tanh %87 : vector<3x12xf32>
    %89 = arith.mulf %84, %88 : vector<3x12xf32>
    %cst_40 = arith.constant dense<0xFF800000> : vector<12xf32>
    %90 = vector.multi_reduction <maximumf>, %89, %cst_40 [0] : vector<3x12xf32> to vector<12xf32>
    %91 = vector.shape_cast %90 : vector<12xf32> to vector<1x12xf32>
    %cst_41 = arith.constant 0.000000e+00 : f32
    %92 = vector.broadcast %cst_41 : f32 to vector<3x12xf32>
    %cst_42 = arith.constant 0.000000e+00 : f32
    %93 = vector.broadcast %cst_42 : f32 to vector<3x12xf32>
    %94 = vector.extract_strided_slice %9 {offsets = [0, 0], sizes = [3, 48], strides = [1, 1]} : vector<6x96xf32> to vector<3x48xf32>
    %c0_43 = arith.constant 0 : index
    %c0_44 = arith.constant 0 : index
    %95 = vector.load %arg4[%c0_43, %c0_44] : memref<12x48xf32, #tpu.memory_space<vmem>>, vector<12x48xf32>
    %c0_45 = arith.constant 0 : index
    %c0_46 = arith.constant 0 : index
    %96 = vector.load %arg5[%c0_45, %c0_46] : memref<1x48xf32, #tpu.memory_space<vmem>>, vector<1x48xf32>
    %cst_47 = arith.constant dense<0.000000e+00> : vector<3x48xf32>
    %97 = tpu.matmul %92, %95, %cst_47 {dimension_numbers = #tpu.dot_dimension_numbers<[1], [0], [0], [1], [0, 0, 1, 1], [], []>} : vector<3x12xf32>, vector<12x48xf32>, vector<3x48xf32> -> vector<3x48xf32>
    %98 = arith.addf %94, %97 : vector<3x48xf32>
    %99 = vector.broadcast %96 : vector<1x48xf32> to vector<3x48xf32>
    %100 = arith.addf %98, %99 : vector<3x48xf32>
    %101 = vector.extract_strided_slice %100 {offsets = [0, 0], sizes = [3, 12], strides = [1, 1]} : vector<3x48xf32> to vector<3x12xf32>
    %cst_48 = arith.constant 0.000000e+00 : f32
    %102 = vector.broadcast %cst_48 : f32 to vector<3x12xf32>
    %103 = arith.subf %102, %101 : vector<3x12xf32>
    %104 = math.exp %103 : vector<3x12xf32>
    %cst_49 = arith.constant 1.000000e+00 : f32
    %105 = vector.broadcast %cst_49 : f32 to vector<3x12xf32>
    %106 = arith.addf %105, %104 : vector<3x12xf32>
    %cst_50 = arith.constant 1.000000e+00 : f32
    %107 = vector.broadcast %cst_50 : f32 to vector<3x12xf32>
    %108 = arith.divf %107, %106 : vector<3x12xf32>
    %109 = vector.extract_strided_slice %100 {offsets = [0, 12], sizes = [3, 12], strides = [1, 1]} : vector<3x48xf32> to vector<3x12xf32>
    %cst_51 = arith.constant 0.000000e+00 : f32
    %110 = vector.broadcast %cst_51 : f32 to vector<3x12xf32>
    %111 = arith.subf %110, %109 : vector<3x12xf32>
    %112 = math.exp %111 : vector<3x12xf32>
    %cst_52 = arith.constant 1.000000e+00 : f32
    %113 = vector.broadcast %cst_52 : f32 to vector<3x12xf32>
    %114 = arith.addf %113, %112 : vector<3x12xf32>
    %cst_53 = arith.constant 1.000000e+00 : f32
    %115 = vector.broadcast %cst_53 : f32 to vector<3x12xf32>
    %116 = arith.divf %115, %114 : vector<3x12xf32>
    %117 = vector.extract_strided_slice %100 {offsets = [0, 24], sizes = [3, 12], strides = [1, 1]} : vector<3x48xf32> to vector<3x12xf32>
    %118 = math.tanh %117 : vector<3x12xf32>
    %119 = vector.extract_strided_slice %100 {offsets = [0, 36], sizes = [3, 12], strides = [1, 1]} : vector<3x48xf32> to vector<3x12xf32>
    %cst_54 = arith.constant 0.000000e+00 : f32
    %120 = vector.broadcast %cst_54 : f32 to vector<3x12xf32>
    %121 = arith.subf %120, %119 : vector<3x12xf32>
    %122 = math.exp %121 : vector<3x12xf32>
    %cst_55 = arith.constant 1.000000e+00 : f32
    %123 = vector.broadcast %cst_55 : f32 to vector<3x12xf32>
    %124 = arith.addf %123, %122 : vector<3x12xf32>
    %cst_56 = arith.constant 1.000000e+00 : f32
    %125 = vector.broadcast %cst_56 : f32 to vector<3x12xf32>
    %126 = arith.divf %125, %124 : vector<3x12xf32>
    %127 = arith.mulf %116, %93 : vector<3x12xf32>
    %128 = arith.mulf %108, %118 : vector<3x12xf32>
    %129 = arith.addf %127, %128 : vector<3x12xf32>
    %130 = math.tanh %129 : vector<3x12xf32>
    %131 = arith.mulf %126, %130 : vector<3x12xf32>
    %cst_57 = arith.constant dense<0xFF800000> : vector<12xf32>
    %132 = vector.multi_reduction <maximumf>, %131, %cst_57 [0] : vector<3x12xf32> to vector<12xf32>
    %133 = vector.shape_cast %132 : vector<12xf32> to vector<1x12xf32>
    %134 = tpu.concatenate %133, %91 in 1 : vector<1x12xf32>, vector<1x12xf32> -> vector<1x24xf32>
    %135 = math.tanh %134 : vector<1x24xf32>
    %136 = vector.extract_strided_slice %9 {offsets = [3, 0], sizes = [3, 48], strides = [1, 1]} : vector<6x96xf32> to vector<3x48xf32>
    %c0_58 = arith.constant 0 : index
    %c0_59 = arith.constant 0 : index
    %137 = vector.load %arg4[%c0_58, %c0_59] : memref<12x48xf32, #tpu.memory_space<vmem>>, vector<12x48xf32>
    %c0_60 = arith.constant 0 : index
    %c0_61 = arith.constant 0 : index
    %138 = vector.load %arg5[%c0_60, %c0_61] : memref<1x48xf32, #tpu.memory_space<vmem>>, vector<1x48xf32>
    %cst_62 = arith.constant dense<0.000000e+00> : vector<3x48xf32>
    %139 = tpu.matmul %131, %137, %cst_62 {dimension_numbers = #tpu.dot_dimension_numbers<[1], [0], [0], [1], [0, 0, 1, 1], [], []>} : vector<3x12xf32>, vector<12x48xf32>, vector<3x48xf32> -> vector<3x48xf32>
    %140 = arith.addf %136, %139 : vector<3x48xf32>
    %141 = vector.broadcast %138 : vector<1x48xf32> to vector<3x48xf32>
    %142 = arith.addf %140, %141 : vector<3x48xf32>
    %143 = vector.extract_strided_slice %142 {offsets = [0, 0], sizes = [3, 12], strides = [1, 1]} : vector<3x48xf32> to vector<3x12xf32>
    %cst_63 = arith.constant 0.000000e+00 : f32
    %144 = vector.broadcast %cst_63 : f32 to vector<3x12xf32>
    %145 = arith.subf %144, %143 : vector<3x12xf32>
    %146 = math.exp %145 : vector<3x12xf32>
    %cst_64 = arith.constant 1.000000e+00 : f32
    %147 = vector.broadcast %cst_64 : f32 to vector<3x12xf32>
    %148 = arith.addf %147, %146 : vector<3x12xf32>
    %cst_65 = arith.constant 1.000000e+00 : f32
    %149 = vector.broadcast %cst_65 : f32 to vector<3x12xf32>
    %150 = arith.divf %149, %148 : vector<3x12xf32>
    %151 = vector.extract_strided_slice %142 {offsets = [0, 12], sizes = [3, 12], strides = [1, 1]} : vector<3x48xf32> to vector<3x12xf32>
    %cst_66 = arith.constant 0.000000e+00 : f32
    %152 = vector.broadcast %cst_66 : f32 to vector<3x12xf32>
    %153 = arith.subf %152, %151 : vector<3x12xf32>
    %154 = math.exp %153 : vector<3x12xf32>
    %cst_67 = arith.constant 1.000000e+00 : f32
    %155 = vector.broadcast %cst_67 : f32 to vector<3x12xf32>
    %156 = arith.addf %155, %154 : vector<3x12xf32>
    %cst_68 = arith.constant 1.000000e+00 : f32
    %157 = vector.broadcast %cst_68 : f32 to vector<3x12xf32>
    %158 = arith.divf %157, %156 : vector<3x12xf32>
    %159 = vector.extract_strided_slice %142 {offsets = [0, 24], sizes = [3, 12], strides = [1, 1]} : vector<3x48xf32> to vector<3x12xf32>
    %160 = math.tanh %159 : vector<3x12xf32>
    %161 = vector.extract_strided_slice %142 {offsets = [0, 36], sizes = [3, 12], strides = [1, 1]} : vector<3x48xf32> to vector<3x12xf32>
    %cst_69 = arith.constant 0.000000e+00 : f32
    %162 = vector.broadcast %cst_69 : f32 to vector<3x12xf32>
    %163 = arith.subf %162, %161 : vector<3x12xf32>
    %164 = math.exp %163 : vector<3x12xf32>
    %cst_70 = arith.constant 1.000000e+00 : f32
    %165 = vector.broadcast %cst_70 : f32 to vector<3x12xf32>
    %166 = arith.addf %165, %164 : vector<3x12xf32>
    %cst_71 = arith.constant 1.000000e+00 : f32
    %167 = vector.broadcast %cst_71 : f32 to vector<3x12xf32>
    %168 = arith.divf %167, %166 : vector<3x12xf32>
    %169 = arith.mulf %158, %129 : vector<3x12xf32>
    %170 = arith.mulf %150, %160 : vector<3x12xf32>
    %171 = arith.addf %169, %170 : vector<3x12xf32>
    %172 = math.tanh %171 : vector<3x12xf32>
    %173 = arith.mulf %168, %172 : vector<3x12xf32>
    %cst_72 = arith.constant dense<0xFF800000> : vector<12xf32>
    %174 = vector.multi_reduction <maximumf>, %173, %cst_72 [0] : vector<3x12xf32> to vector<12xf32>
    %175 = vector.shape_cast %174 : vector<12xf32> to vector<1x12xf32>
    %176 = tpu.concatenate %175, %51 in 1 : vector<1x12xf32>, vector<1x12xf32> -> vector<1x24xf32>
    %177 = math.tanh %176 : vector<1x24xf32>
    %178 = tpu.concatenate %135, %177 in 0 : vector<1x24xf32>, vector<1x24xf32> -> vector<2x24xf32>
    %c0_73 = arith.constant 0 : index
    %c0_74 = arith.constant 0 : index
    %179 = vector.load %arg8[%c0_73, %c0_74] : memref<24x5xf32, #tpu.memory_space<vmem>>, vector<24x5xf32>
    %cst_75 = arith.constant dense<0.000000e+00> : vector<2x5xf32>
    %180 = tpu.matmul %178, %179, %cst_75 {dimension_numbers = #tpu.dot_dimension_numbers<[1], [0], [0], [1], [0, 0, 1, 1], [], []>} : vector<2x24xf32>, vector<24x5xf32>, vector<2x5xf32> -> vector<2x5xf32>
    %c0_76 = arith.constant 0 : index
    %c0_77 = arith.constant 0 : index
    %181 = vector.load %arg9[%c0_76, %c0_77] : memref<1x5xf32, #tpu.memory_space<vmem>>, vector<1x5xf32>
    %182 = vector.broadcast %181 : vector<1x5xf32> to vector<2x5xf32>
    %183 = arith.addf %180, %182 : vector<2x5xf32>
    %c0_78 = arith.constant 0 : index
    %c0_79 = arith.constant 0 : index
    %184 = vector.load %arg10[%c0_78, %c0_79] : memref<2x5xf32, #tpu.memory_space<vmem>>, vector<2x5xf32>
    tpu.vector_store %arg10[%c0_78, %c0_79], %183 {strides = array<i32>} : memref<2x5xf32, #tpu.memory_space<vmem>>, vector<2x5xf32>,
    return
  }
}

module attributes {stable_mosaic.version = 11 : i64} {
  func.func @kernel(%arg0: memref<60x80xf32, #tpu.memory_space<vmem>>, %arg1: memref<80x16xf32, #tpu.memory_space<vmem>>, %arg2: memref<1x16xf32, #tpu.memory_space<vmem>>, %arg3: memref<16x64xf32, #tpu.memory_space<vmem>>, %arg4: memref<8x32xf32, #tpu.memory_space<vmem>>, %arg5: memref<1x32xf32, #tpu.memory_space<vmem>>, %arg6: memref<8x32xf32, #tpu.memory_space<vmem>>, %arg7: memref<1x32xf32, #tpu.memory_space<vmem>>, %arg8: memref<6x16xf32, #tpu.memory_space<vmem>>) attributes {dimension_semantics = [], scalar_prefetch = 0 : i64, scratch_operands = 0 : i64, tpu.core_type = #tpu.core_type<tc>} {
    %c0 = arith.constant 0 : index
    %c0_0 = arith.constant 0 : index
    %0 = vector.load %arg0[%c0, %c0_0] : memref<60x80xf32, #tpu.memory_space<vmem>>, vector<60x80xf32>
    %c0_1 = arith.constant 0 : index
    %c0_2 = arith.constant 0 : index
    %1 = vector.load %arg1[%c0_1, %c0_2] : memref<80x16xf32, #tpu.memory_space<vmem>>, vector<80x16xf32>
    %cst = arith.constant dense<0.000000e+00> : vector<60x16xf32>
    %2 = tpu.matmul %0, %1, %cst {dimension_numbers = #tpu.dot_dimension_numbers<[1], [0], [0], [1], [0, 0, 1, 1], [], []>} : vector<60x80xf32>, vector<80x16xf32>, vector<60x16xf32> -> vector<60x16xf32>
    %c0_3 = arith.constant 0 : index
    %c0_4 = arith.constant 0 : index
    %3 = vector.load %arg2[%c0_3, %c0_4] : memref<1x16xf32, #tpu.memory_space<vmem>>, vector<1x16xf32>
    %4 = vector.broadcast %3 : vector<1x16xf32> to vector<60x16xf32>
    %5 = arith.addf %2, %4 : vector<60x16xf32>
    %cst_5 = arith.constant 0.000000e+00 : f32
    %6 = vector.broadcast %cst_5 : f32 to vector<60x16xf32>
    %7 = arith.maximumf %5, %6 : vector<60x16xf32>
    %c0_6 = arith.constant 0 : index
    %c0_7 = arith.constant 0 : index
    %8 = vector.load %arg3[%c0_6, %c0_7] : memref<16x64xf32, #tpu.memory_space<vmem>>, vector<16x64xf32>
    %cst_8 = arith.constant dense<0.000000e+00> : vector<60x64xf32>
    %9 = tpu.matmul %7, %8, %cst_8 {dimension_numbers = #tpu.dot_dimension_numbers<[1], [0], [0], [1], [0, 0, 1, 1], [], []>} : vector<60x16xf32>, vector<16x64xf32>, vector<60x64xf32> -> vector<60x64xf32>
    %cst_9 = arith.constant 0.000000e+00 : f32
    %10 = vector.broadcast %cst_9 : f32 to vector<30x8xf32>
    %cst_10 = arith.constant 0.000000e+00 : f32
    %11 = vector.broadcast %cst_10 : f32 to vector<30x8xf32>
    %12 = vector.extract_strided_slice %9 {offsets = [30, 32], sizes = [30, 32], strides = [1, 1]} : vector<60x64xf32> to vector<30x32xf32>
    %c0_11 = arith.constant 0 : index
    %c0_12 = arith.constant 0 : index
    %13 = vector.load %arg6[%c0_11, %c0_12] : memref<8x32xf32, #tpu.memory_space<vmem>>, vector<8x32xf32>
    %c0_13 = arith.constant 0 : index
    %c0_14 = arith.constant 0 : index
    %14 = vector.load %arg7[%c0_13, %c0_14] : memref<1x32xf32, #tpu.memory_space<vmem>>, vector<1x32xf32>
    %cst_15 = arith.constant dense<0.000000e+00> : vector<30x32xf32>
    %15 = tpu.matmul %10, %13, %cst_15 {dimension_numbers = #tpu.dot_dimension_numbers<[1], [0], [0], [1], [0, 0, 1, 1], [], []>} : vector<30x8xf32>, vector<8x32xf32>, vector<30x32xf32> -> vector<30x32xf32>
    %16 = arith.addf %12, %15 : vector<30x32xf32>
    %17 = vector.broadcast %14 : vector<1x32xf32> to vector<30x32xf32>
    %18 = arith.addf %16, %17 : vector<30x32xf32>
    %19 = vector.extract_strided_slice %18 {offsets = [0, 0], sizes = [30, 8], strides = [1, 1]} : vector<30x32xf32> to vector<30x8xf32>
    %cst_16 = arith.constant 0.000000e+00 : f32
    %20 = vector.broadcast %cst_16 : f32 to vector<30x8xf32>
    %21 = arith.subf %20, %19 : vector<30x8xf32>
    %22 = math.exp %21 : vector<30x8xf32>
    %cst_17 = arith.constant 1.000000e+00 : f32
    %23 = vector.broadcast %cst_17 : f32 to vector<30x8xf32>
    %24 = arith.addf %23, %22 : vector<30x8xf32>
    %cst_18 = arith.constant 1.000000e+00 : f32
    %25 = vector.broadcast %cst_18 : f32 to vector<30x8xf32>
    %26 = arith.divf %25, %24 : vector<30x8xf32>
    %27 = vector.extract_strided_slice %18 {offsets = [0, 8], sizes = [30, 8], strides = [1, 1]} : vector<30x32xf32> to vector<30x8xf32>
    %cst_19 = arith.constant 0.000000e+00 : f32
    %28 = vector.broadcast %cst_19 : f32 to vector<30x8xf32>
    %29 = arith.subf %28, %27 : vector<30x8xf32>
    %30 = math.exp %29 : vector<30x8xf32>
    %cst_20 = arith.constant 1.000000e+00 : f32
    %31 = vector.broadcast %cst_20 : f32 to vector<30x8xf32>
    %32 = arith.addf %31, %30 : vector<30x8xf32>
    %cst_21 = arith.constant 1.000000e+00 : f32
    %33 = vector.broadcast %cst_21 : f32 to vector<30x8xf32>
    %34 = arith.divf %33, %32 : vector<30x8xf32>
    %35 = vector.extract_strided_slice %18 {offsets = [0, 16], sizes = [30, 8], strides = [1, 1]} : vector<30x32xf32> to vector<30x8xf32>
    %36 = math.tanh %35 : vector<30x8xf32>
    %37 = vector.extract_strided_slice %18 {offsets = [0, 24], sizes = [30, 8], strides = [1, 1]} : vector<30x32xf32> to vector<30x8xf32>
    %cst_22 = arith.constant 0.000000e+00 : f32
    %38 = vector.broadcast %cst_22 : f32 to vector<30x8xf32>
    %39 = arith.subf %38, %37 : vector<30x8xf32>
    %40 = math.exp %39 : vector<30x8xf32>
    %cst_23 = arith.constant 1.000000e+00 : f32
    %41 = vector.broadcast %cst_23 : f32 to vector<30x8xf32>
    %42 = arith.addf %41, %40 : vector<30x8xf32>
    %cst_24 = arith.constant 1.000000e+00 : f32
    %43 = vector.broadcast %cst_24 : f32 to vector<30x8xf32>
    %44 = arith.divf %43, %42 : vector<30x8xf32>
    %45 = arith.mulf %34, %11 : vector<30x8xf32>
    %46 = arith.mulf %26, %36 : vector<30x8xf32>
    %47 = arith.addf %45, %46 : vector<30x8xf32>
    %48 = math.tanh %47 : vector<30x8xf32>
    %49 = arith.mulf %44, %48 : vector<30x8xf32>
    %50 = vector.extract_strided_slice %49 {offsets = [0, 0], sizes = [10, 8], strides = [1, 1]} : vector<30x8xf32> to vector<10x8xf32>
    %cst_25 = arith.constant dense<0xFF800000> : vector<8xf32>
    %51 = vector.multi_reduction <maximumf>, %50, %cst_25 [0] : vector<10x8xf32> to vector<8xf32>
    %52 = vector.shape_cast %51 : vector<8xf32> to vector<1x8xf32>
    %53 = vector.extract_strided_slice %49 {offsets = [10, 0], sizes = [10, 8], strides = [1, 1]} : vector<30x8xf32> to vector<10x8xf32>
    %cst_26 = arith.constant dense<0xFF800000> : vector<8xf32>
    %54 = vector.multi_reduction <maximumf>, %53, %cst_26 [0] : vector<10x8xf32> to vector<8xf32>
    %55 = vector.shape_cast %54 : vector<8xf32> to vector<1x8xf32>
    %56 = vector.extract_strided_slice %49 {offsets = [20, 0], sizes = [10, 8], strides = [1, 1]} : vector<30x8xf32> to vector<10x8xf32>
    %cst_27 = arith.constant dense<0xFF800000> : vector<8xf32>
    %57 = vector.multi_reduction <maximumf>, %56, %cst_27 [0] : vector<10x8xf32> to vector<8xf32>
    %58 = vector.shape_cast %57 : vector<8xf32> to vector<1x8xf32>
    %59 = tpu.concatenate %52, %55, %58 in 0 : vector<1x8xf32>, vector<1x8xf32>, vector<1x8xf32> -> vector<3x8xf32>
    %60 = vector.extract_strided_slice %9 {offsets = [0, 32], sizes = [30, 32], strides = [1, 1]} : vector<60x64xf32> to vector<30x32xf32>
    %c0_28 = arith.constant 0 : index
    %c0_29 = arith.constant 0 : index
    %61 = vector.load %arg6[%c0_28, %c0_29] : memref<8x32xf32, #tpu.memory_space<vmem>>, vector<8x32xf32>
    %c0_30 = arith.constant 0 : index
    %c0_31 = arith.constant 0 : index
    %62 = vector.load %arg7[%c0_30, %c0_31] : memref<1x32xf32, #tpu.memory_space<vmem>>, vector<1x32xf32>
    %cst_32 = arith.constant dense<0.000000e+00> : vector<30x32xf32>
    %63 = tpu.matmul %49, %61, %cst_32 {dimension_numbers = #tpu.dot_dimension_numbers<[1], [0], [0], [1], [0, 0, 1, 1], [], []>} : vector<30x8xf32>, vector<8x32xf32>, vector<30x32xf32> -> vector<30x32xf32>
    %64 = arith.addf %60, %63 : vector<30x32xf32>
    %65 = vector.broadcast %62 : vector<1x32xf32> to vector<30x32xf32>
    %66 = arith.addf %64, %65 : vector<30x32xf32>
    %67 = vector.extract_strided_slice %66 {offsets = [0, 0], sizes = [30, 8], strides = [1, 1]} : vector<30x32xf32> to vector<30x8xf32>
    %cst_33 = arith.constant 0.000000e+00 : f32
    %68 = vector.broadcast %cst_33 : f32 to vector<30x8xf32>
    %69 = arith.subf %68, %67 : vector<30x8xf32>
    %70 = math.exp %69 : vector<30x8xf32>
    %cst_34 = arith.constant 1.000000e+00 : f32
    %71 = vector.broadcast %cst_34 : f32 to vector<30x8xf32>
    %72 = arith.addf %71, %70 : vector<30x8xf32>
    %cst_35 = arith.constant 1.000000e+00 : f32
    %73 = vector.broadcast %cst_35 : f32 to vector<30x8xf32>
    %74 = arith.divf %73, %72 : vector<30x8xf32>
    %75 = vector.extract_strided_slice %66 {offsets = [0, 8], sizes = [30, 8], strides = [1, 1]} : vector<30x32xf32> to vector<30x8xf32>
    %cst_36 = arith.constant 0.000000e+00 : f32
    %76 = vector.broadcast %cst_36 : f32 to vector<30x8xf32>
    %77 = arith.subf %76, %75 : vector<30x8xf32>
    %78 = math.exp %77 : vector<30x8xf32>
    %cst_37 = arith.constant 1.000000e+00 : f32
    %79 = vector.broadcast %cst_37 : f32 to vector<30x8xf32>
    %80 = arith.addf %79, %78 : vector<30x8xf32>
    %cst_38 = arith.constant 1.000000e+00 : f32
    %81 = vector.broadcast %cst_38 : f32 to vector<30x8xf32>
    %82 = arith.divf %81, %80 : vector<30x8xf32>
    %83 = vector.extract_strided_slice %66 {offsets = [0, 16], sizes = [30, 8], strides = [1, 1]} : vector<30x32xf32> to vector<30x8xf32>
    %84 = math.tanh %83 : vector<30x8xf32>
    %85 = vector.extract_strided_slice %66 {offsets = [0, 24], sizes = [30, 8], strides = [1, 1]} : vector<30x32xf32> to vector<30x8xf32>
    %cst_39 = arith.constant 0.000000e+00 : f32
    %86 = vector.broadcast %cst_39 : f32 to vector<30x8xf32>
    %87 = arith.subf %86, %85 : vector<30x8xf32>
    %88 = math.exp %87 : vector<30x8xf32>
    %cst_40 = arith.constant 1.000000e+00 : f32
    %89 = vector.broadcast %cst_40 : f32 to vector<30x8xf32>
    %90 = arith.addf %89, %88 : vector<30x8xf32>
    %cst_41 = arith.constant 1.000000e+00 : f32
    %91 = vector.broadcast %cst_41 : f32 to vector<30x8xf32>
    %92 = arith.divf %91, %90 : vector<30x8xf32>
    %93 = arith.mulf %82, %47 : vector<30x8xf32>
    %94 = arith.mulf %74, %84 : vector<30x8xf32>
    %95 = arith.addf %93, %94 : vector<30x8xf32>
    %96 = math.tanh %95 : vector<30x8xf32>
    %97 = arith.mulf %92, %96 : vector<30x8xf32>
    %98 = vector.extract_strided_slice %97 {offsets = [0, 0], sizes = [10, 8], strides = [1, 1]} : vector<30x8xf32> to vector<10x8xf32>
    %cst_42 = arith.constant dense<0xFF800000> : vector<8xf32>
    %99 = vector.multi_reduction <maximumf>, %98, %cst_42 [0] : vector<10x8xf32> to vector<8xf32>
    %100 = vector.shape_cast %99 : vector<8xf32> to vector<1x8xf32>
    %101 = vector.extract_strided_slice %97 {offsets = [10, 0], sizes = [10, 8], strides = [1, 1]} : vector<30x8xf32> to vector<10x8xf32>
    %cst_43 = arith.constant dense<0xFF800000> : vector<8xf32>
    %102 = vector.multi_reduction <maximumf>, %101, %cst_43 [0] : vector<10x8xf32> to vector<8xf32>
    %103 = vector.shape_cast %102 : vector<8xf32> to vector<1x8xf32>
    %104 = vector.extract_strided_slice %97 {offsets = [20, 0], sizes = [10, 8], strides = [1, 1]} : vector<30x8xf32> to vector<10x8xf32>
    %cst_44 = arith.constant dense<0xFF800000> : vector<8xf32>
    %105 = vector.multi_reduction <maximumf>, %104, %cst_44 [0] : vector<10x8xf32> to vector<8xf32>
    %106 = vector.shape_cast %105 : vector<8xf32> to vector<1x8xf32>
    %107 = tpu.concatenate %100, %103, %106 in 0 : vector<1x8xf32>, vector<1x8xf32>, vector<1x8xf32> -> vector<3x8xf32>
    %cst_45 = arith.constant 0.000000e+00 : f32
    %108 = vector.broadcast %cst_45 : f32 to vector<30x8xf32>
    %cst_46 = arith.constant 0.000000e+00 : f32
    %109 = vector.broadcast %cst_46 : f32 to vector<30x8xf32>
    %110 = vector.extract_strided_slice %9 {offsets = [0, 0], sizes = [30, 32], strides = [1, 1]} : vector<60x64xf32> to vector<30x32xf32>
    %c0_47 = arith.constant 0 : index
    %c0_48 = arith.constant 0 : index
    %111 = vector.load %arg4[%c0_47, %c0_48] : memref<8x32xf32, #tpu.memory_space<vmem>>, vector<8x32xf32>
    %c0_49 = arith.constant 0 : index
    %c0_50 = arith.constant 0 : index
    %112 = vector.load %arg5[%c0_49, %c0_50] : memref<1x32xf32, #tpu.memory_space<vmem>>, vector<1x32xf32>
    %cst_51 = arith.constant dense<0.000000e+00> : vector<30x32xf32>
    %113 = tpu.matmul %108, %111, %cst_51 {dimension_numbers = #tpu.dot_dimension_numbers<[1], [0], [0], [1], [0, 0, 1, 1], [], []>} : vector<30x8xf32>, vector<8x32xf32>, vector<30x32xf32> -> vector<30x32xf32>
    %114 = arith.addf %110, %113 : vector<30x32xf32>
    %115 = vector.broadcast %112 : vector<1x32xf32> to vector<30x32xf32>
    %116 = arith.addf %114, %115 : vector<30x32xf32>
    %117 = vector.extract_strided_slice %116 {offsets = [0, 0], sizes = [30, 8], strides = [1, 1]} : vector<30x32xf32> to vector<30x8xf32>
    %cst_52 = arith.constant 0.000000e+00 : f32
    %118 = vector.broadcast %cst_52 : f32 to vector<30x8xf32>
    %119 = arith.subf %118, %117 : vector<30x8xf32>
    %120 = math.exp %119 : vector<30x8xf32>
    %cst_53 = arith.constant 1.000000e+00 : f32
    %121 = vector.broadcast %cst_53 : f32 to vector<30x8xf32>
    %122 = arith.addf %121, %120 : vector<30x8xf32>
    %cst_54 = arith.constant 1.000000e+00 : f32
    %123 = vector.broadcast %cst_54 : f32 to vector<30x8xf32>
    %124 = arith.divf %123, %122 : vector<30x8xf32>
    %125 = vector.extract_strided_slice %116 {offsets = [0, 8], sizes = [30, 8], strides = [1, 1]} : vector<30x32xf32> to vector<30x8xf32>
    %cst_55 = arith.constant 0.000000e+00 : f32
    %126 = vector.broadcast %cst_55 : f32 to vector<30x8xf32>
    %127 = arith.subf %126, %125 : vector<30x8xf32>
    %128 = math.exp %127 : vector<30x8xf32>
    %cst_56 = arith.constant 1.000000e+00 : f32
    %129 = vector.broadcast %cst_56 : f32 to vector<30x8xf32>
    %130 = arith.addf %129, %128 : vector<30x8xf32>
    %cst_57 = arith.constant 1.000000e+00 : f32
    %131 = vector.broadcast %cst_57 : f32 to vector<30x8xf32>
    %132 = arith.divf %131, %130 : vector<30x8xf32>
    %133 = vector.extract_strided_slice %116 {offsets = [0, 16], sizes = [30, 8], strides = [1, 1]} : vector<30x32xf32> to vector<30x8xf32>
    %134 = math.tanh %133 : vector<30x8xf32>
    %135 = vector.extract_strided_slice %116 {offsets = [0, 24], sizes = [30, 8], strides = [1, 1]} : vector<30x32xf32> to vector<30x8xf32>
    %cst_58 = arith.constant 0.000000e+00 : f32
    %136 = vector.broadcast %cst_58 : f32 to vector<30x8xf32>
    %137 = arith.subf %136, %135 : vector<30x8xf32>
    %138 = math.exp %137 : vector<30x8xf32>
    %cst_59 = arith.constant 1.000000e+00 : f32
    %139 = vector.broadcast %cst_59 : f32 to vector<30x8xf32>
    %140 = arith.addf %139, %138 : vector<30x8xf32>
    %cst_60 = arith.constant 1.000000e+00 : f32
    %141 = vector.broadcast %cst_60 : f32 to vector<30x8xf32>
    %142 = arith.divf %141, %140 : vector<30x8xf32>
    %143 = arith.mulf %132, %109 : vector<30x8xf32>
    %144 = arith.mulf %124, %134 : vector<30x8xf32>
    %145 = arith.addf %143, %144 : vector<30x8xf32>
    %146 = math.tanh %145 : vector<30x8xf32>
    %147 = arith.mulf %142, %146 : vector<30x8xf32>
    %148 = vector.extract_strided_slice %147 {offsets = [0, 0], sizes = [10, 8], strides = [1, 1]} : vector<30x8xf32> to vector<10x8xf32>
    %cst_61 = arith.constant dense<0xFF800000> : vector<8xf32>
    %149 = vector.multi_reduction <maximumf>, %148, %cst_61 [0] : vector<10x8xf32> to vector<8xf32>
    %150 = vector.shape_cast %149 : vector<8xf32> to vector<1x8xf32>
    %151 = vector.extract_strided_slice %147 {offsets = [10, 0], sizes = [10, 8], strides = [1, 1]} : vector<30x8xf32> to vector<10x8xf32>
    %cst_62 = arith.constant dense<0xFF800000> : vector<8xf32>
    %152 = vector.multi_reduction <maximumf>, %151, %cst_62 [0] : vector<10x8xf32> to vector<8xf32>
    %153 = vector.shape_cast %152 : vector<8xf32> to vector<1x8xf32>
    %154 = vector.extract_strided_slice %147 {offsets = [20, 0], sizes = [10, 8], strides = [1, 1]} : vector<30x8xf32> to vector<10x8xf32>
    %cst_63 = arith.constant dense<0xFF800000> : vector<8xf32>
    %155 = vector.multi_reduction <maximumf>, %154, %cst_63 [0] : vector<10x8xf32> to vector<8xf32>
    %156 = vector.shape_cast %155 : vector<8xf32> to vector<1x8xf32>
    %157 = tpu.concatenate %150, %153, %156 in 0 : vector<1x8xf32>, vector<1x8xf32>, vector<1x8xf32> -> vector<3x8xf32>
    %158 = tpu.concatenate %157, %107 in 1 : vector<3x8xf32>, vector<3x8xf32> -> vector<3x16xf32>
    %159 = math.tanh %158 : vector<3x16xf32>
    %160 = vector.extract_strided_slice %9 {offsets = [30, 0], sizes = [30, 32], strides = [1, 1]} : vector<60x64xf32> to vector<30x32xf32>
    %c0_64 = arith.constant 0 : index
    %c0_65 = arith.constant 0 : index
    %161 = vector.load %arg4[%c0_64, %c0_65] : memref<8x32xf32, #tpu.memory_space<vmem>>, vector<8x32xf32>
    %c0_66 = arith.constant 0 : index
    %c0_67 = arith.constant 0 : index
    %162 = vector.load %arg5[%c0_66, %c0_67] : memref<1x32xf32, #tpu.memory_space<vmem>>, vector<1x32xf32>
    %cst_68 = arith.constant dense<0.000000e+00> : vector<30x32xf32>
    %163 = tpu.matmul %147, %161, %cst_68 {dimension_numbers = #tpu.dot_dimension_numbers<[1], [0], [0], [1], [0, 0, 1, 1], [], []>} : vector<30x8xf32>, vector<8x32xf32>, vector<30x32xf32> -> vector<30x32xf32>
    %164 = arith.addf %160, %163 : vector<30x32xf32>
    %165 = vector.broadcast %162 : vector<1x32xf32> to vector<30x32xf32>
    %166 = arith.addf %164, %165 : vector<30x32xf32>
    %167 = vector.extract_strided_slice %166 {offsets = [0, 0], sizes = [30, 8], strides = [1, 1]} : vector<30x32xf32> to vector<30x8xf32>
    %cst_69 = arith.constant 0.000000e+00 : f32
    %168 = vector.broadcast %cst_69 : f32 to vector<30x8xf32>
    %169 = arith.subf %168, %167 : vector<30x8xf32>
    %170 = math.exp %169 : vector<30x8xf32>
    %cst_70 = arith.constant 1.000000e+00 : f32
    %171 = vector.broadcast %cst_70 : f32 to vector<30x8xf32>
    %172 = arith.addf %171, %170 : vector<30x8xf32>
    %cst_71 = arith.constant 1.000000e+00 : f32
    %173 = vector.broadcast %cst_71 : f32 to vector<30x8xf32>
    %174 = arith.divf %173, %172 : vector<30x8xf32>
    %175 = vector.extract_strided_slice %166 {offsets = [0, 8], sizes = [30, 8], strides = [1, 1]} : vector<30x32xf32> to vector<30x8xf32>
    %cst_72 = arith.constant 0.000000e+00 : f32
    %176 = vector.broadcast %cst_72 : f32 to vector<30x8xf32>
    %177 = arith.subf %176, %175 : vector<30x8xf32>
    %178 = math.exp %177 : vector<30x8xf32>
    %cst_73 = arith.constant 1.000000e+00 : f32
    %179 = vector.broadcast %cst_73 : f32 to vector<30x8xf32>
    %180 = arith.addf %179, %178 : vector<30x8xf32>
    %cst_74 = arith.constant 1.000000e+00 : f32
    %181 = vector.broadcast %cst_74 : f32 to vector<30x8xf32>
    %182 = arith.divf %181, %180 : vector<30x8xf32>
    %183 = vector.extract_strided_slice %166 {offsets = [0, 16], sizes = [30, 8], strides = [1, 1]} : vector<30x32xf32> to vector<30x8xf32>
    %184 = math.tanh %183 : vector<30x8xf32>
    %185 = vector.extract_strided_slice %166 {offsets = [0, 24], sizes = [30, 8], strides = [1, 1]} : vector<30x32xf32> to vector<30x8xf32>
    %cst_75 = arith.constant 0.000000e+00 : f32
    %186 = vector.broadcast %cst_75 : f32 to vector<30x8xf32>
    %187 = arith.subf %186, %185 : vector<30x8xf32>
    %188 = math.exp %187 : vector<30x8xf32>
    %cst_76 = arith.constant 1.000000e+00 : f32
    %189 = vector.broadcast %cst_76 : f32 to vector<30x8xf32>
    %190 = arith.addf %189, %188 : vector<30x8xf32>
    %cst_77 = arith.constant 1.000000e+00 : f32
    %191 = vector.broadcast %cst_77 : f32 to vector<30x8xf32>
    %192 = arith.divf %191, %190 : vector<30x8xf32>
    %193 = arith.mulf %182, %145 : vector<30x8xf32>
    %194 = arith.mulf %174, %184 : vector<30x8xf32>
    %195 = arith.addf %193, %194 : vector<30x8xf32>
    %196 = math.tanh %195 : vector<30x8xf32>
    %197 = arith.mulf %192, %196 : vector<30x8xf32>
    %198 = vector.extract_strided_slice %197 {offsets = [0, 0], sizes = [10, 8], strides = [1, 1]} : vector<30x8xf32> to vector<10x8xf32>
    %cst_78 = arith.constant dense<0xFF800000> : vector<8xf32>
    %199 = vector.multi_reduction <maximumf>, %198, %cst_78 [0] : vector<10x8xf32> to vector<8xf32>
    %200 = vector.shape_cast %199 : vector<8xf32> to vector<1x8xf32>
    %201 = vector.extract_strided_slice %197 {offsets = [10, 0], sizes = [10, 8], strides = [1, 1]} : vector<30x8xf32> to vector<10x8xf32>
    %cst_79 = arith.constant dense<0xFF800000> : vector<8xf32>
    %202 = vector.multi_reduction <maximumf>, %201, %cst_79 [0] : vector<10x8xf32> to vector<8xf32>
    %203 = vector.shape_cast %202 : vector<8xf32> to vector<1x8xf32>
    %204 = vector.extract_strided_slice %197 {offsets = [20, 0], sizes = [10, 8], strides = [1, 1]} : vector<30x8xf32> to vector<10x8xf32>
    %cst_80 = arith.constant dense<0xFF800000> : vector<8xf32>
    %205 = vector.multi_reduction <maximumf>, %204, %cst_80 [0] : vector<10x8xf32> to vector<8xf32>
    %206 = vector.shape_cast %205 : vector<8xf32> to vector<1x8xf32>
    %207 = tpu.concatenate %200, %203, %206 in 0 : vector<1x8xf32>, vector<1x8xf32>, vector<1x8xf32> -> vector<3x8xf32>
    %208 = tpu.concatenate %207, %59 in 1 : vector<3x8xf32>, vector<3x8xf32> -> vector<3x16xf32>
    %209 = math.tanh %208 : vector<3x16xf32>
    %210 = tpu.concatenate %159, %209 in 0 : vector<3x16xf32>, vector<3x16xf32> -> vector<6x16xf32>
    %c0_81 = arith.constant 0 : index
    %c0_82 = arith.constant 0 : index
    %211 = vector.load %arg8[%c0_81, %c0_82] : memref<6x16xf32, #tpu.memory_space<vmem>>, vector<6x16xf32>
    tpu.vector_store %arg8[%c0_81, %c0_82], %210 {strides = array<i32>} : memref<6x16xf32, #tpu.memory_space<vmem>>, vector<6x16xf32>,
    return
  }
}

module attributes {stable_mosaic.version = 11 : i64} {
  func.func @kernel(%arg0: memref<24x48xf32, #tpu.memory_space<vmem>>, %arg1: memref<48x8xf32, #tpu.memory_space<vmem>>, %arg2: memref<1x8xf32, #tpu.memory_space<vmem>>, %arg3: memref<8x64xf32, #tpu.memory_space<vmem>>, %arg4: memref<8x32xf32, #tpu.memory_space<vmem>>, %arg5: memref<1x32xf32, #tpu.memory_space<vmem>>, %arg6: memref<8x32xf32, #tpu.memory_space<vmem>>, %arg7: memref<1x32xf32, #tpu.memory_space<vmem>>, %arg8: memref<16x5xf32, #tpu.memory_space<vmem>>, %arg9: memref<1x5xf32, #tpu.memory_space<vmem>>, %arg10: memref<2x5xf32, #tpu.memory_space<vmem>>) attributes {dimension_semantics = [], scalar_prefetch = 0 : i64, scratch_operands = 0 : i64, tpu.core_type = #tpu.core_type<tc>} {
    %c0 = arith.constant 0 : index
    %c0_0 = arith.constant 0 : index
    %0 = vector.load %arg0[%c0, %c0_0] : memref<24x48xf32, #tpu.memory_space<vmem>>, vector<24x48xf32>
    %c0_1 = arith.constant 0 : index
    %c0_2 = arith.constant 0 : index
    %1 = vector.load %arg1[%c0_1, %c0_2] : memref<48x8xf32, #tpu.memory_space<vmem>>, vector<48x8xf32>
    %cst = arith.constant dense<0.000000e+00> : vector<24x8xf32>
    %2 = tpu.matmul %0, %1, %cst {dimension_numbers = #tpu.dot_dimension_numbers<[1], [0], [0], [1], [0, 0, 1, 1], [], []>} : vector<24x48xf32>, vector<48x8xf32>, vector<24x8xf32> -> vector<24x8xf32>
    %c0_3 = arith.constant 0 : index
    %c0_4 = arith.constant 0 : index
    %3 = vector.load %arg2[%c0_3, %c0_4] : memref<1x8xf32, #tpu.memory_space<vmem>>, vector<1x8xf32>
    %4 = vector.broadcast %3 : vector<1x8xf32> to vector<24x8xf32>
    %5 = arith.addf %2, %4 : vector<24x8xf32>
    %cst_5 = arith.constant 0.000000e+00 : f32
    %6 = vector.broadcast %cst_5 : f32 to vector<24x8xf32>
    %7 = arith.maximumf %5, %6 : vector<24x8xf32>
    %c0_6 = arith.constant 0 : index
    %c0_7 = arith.constant 0 : index
    %8 = vector.load %arg3[%c0_6, %c0_7] : memref<8x64xf32, #tpu.memory_space<vmem>>, vector<8x64xf32>
    %cst_8 = arith.constant dense<0.000000e+00> : vector<24x64xf32>
    %9 = tpu.matmul %7, %8, %cst_8 {dimension_numbers = #tpu.dot_dimension_numbers<[1], [0], [0], [1], [0, 0, 1, 1], [], []>} : vector<24x8xf32>, vector<8x64xf32>, vector<24x64xf32> -> vector<24x64xf32>
    %cst_9 = arith.constant 0.000000e+00 : f32
    %10 = vector.broadcast %cst_9 : f32 to vector<12x8xf32>
    %cst_10 = arith.constant 0.000000e+00 : f32
    %11 = vector.broadcast %cst_10 : f32 to vector<12x8xf32>
    %12 = vector.extract_strided_slice %9 {offsets = [12, 32], sizes = [12, 32], strides = [1, 1]} : vector<24x64xf32> to vector<12x32xf32>
    %c0_11 = arith.constant 0 : index
    %c0_12 = arith.constant 0 : index
    %13 = vector.load %arg6[%c0_11, %c0_12] : memref<8x32xf32, #tpu.memory_space<vmem>>, vector<8x32xf32>
    %c0_13 = arith.constant 0 : index
    %c0_14 = arith.constant 0 : index
    %14 = vector.load %arg7[%c0_13, %c0_14] : memref<1x32xf32, #tpu.memory_space<vmem>>, vector<1x32xf32>
    %cst_15 = arith.constant dense<0.000000e+00> : vector<12x32xf32>
    %15 = tpu.matmul %10, %13, %cst_15 {dimension_numbers = #tpu.dot_dimension_numbers<[1], [0], [0], [1], [0, 0, 1, 1], [], []>} : vector<12x8xf32>, vector<8x32xf32>, vector<12x32xf32> -> vector<12x32xf32>
    %16 = arith.addf %12, %15 : vector<12x32xf32>
    %17 = vector.broadcast %14 : vector<1x32xf32> to vector<12x32xf32>
    %18 = arith.addf %16, %17 : vector<12x32xf32>
    %19 = vector.extract_strided_slice %18 {offsets = [0, 0], sizes = [12, 8], strides = [1, 1]} : vector<12x32xf32> to vector<12x8xf32>
    %cst_16 = arith.constant 0.000000e+00 : f32
    %20 = vector.broadcast %cst_16 : f32 to vector<12x8xf32>
    %21 = arith.subf %20, %19 : vector<12x8xf32>
    %22 = math.exp %21 : vector<12x8xf32>
    %cst_17 = arith.constant 1.000000e+00 : f32
    %23 = vector.broadcast %cst_17 : f32 to vector<12x8xf32>
    %24 = arith.addf %23, %22 : vector<12x8xf32>
    %cst_18 = arith.constant 1.000000e+00 : f32
    %25 = vector.broadcast %cst_18 : f32 to vector<12x8xf32>
    %26 = arith.divf %25, %24 : vector<12x8xf32>
    %27 = vector.extract_strided_slice %18 {offsets = [0, 8], sizes = [12, 8], strides = [1, 1]} : vector<12x32xf32> to vector<12x8xf32>
    %cst_19 = arith.constant 0.000000e+00 : f32
    %28 = vector.broadcast %cst_19 : f32 to vector<12x8xf32>
    %29 = arith.subf %28, %27 : vector<12x8xf32>
    %30 = math.exp %29 : vector<12x8xf32>
    %cst_20 = arith.constant 1.000000e+00 : f32
    %31 = vector.broadcast %cst_20 : f32 to vector<12x8xf32>
    %32 = arith.addf %31, %30 : vector<12x8xf32>
    %cst_21 = arith.constant 1.000000e+00 : f32
    %33 = vector.broadcast %cst_21 : f32 to vector<12x8xf32>
    %34 = arith.divf %33, %32 : vector<12x8xf32>
    %35 = vector.extract_strided_slice %18 {offsets = [0, 16], sizes = [12, 8], strides = [1, 1]} : vector<12x32xf32> to vector<12x8xf32>
    %36 = math.tanh %35 : vector<12x8xf32>
    %37 = vector.extract_strided_slice %18 {offsets = [0, 24], sizes = [12, 8], strides = [1, 1]} : vector<12x32xf32> to vector<12x8xf32>
    %cst_22 = arith.constant 0.000000e+00 : f32
    %38 = vector.broadcast %cst_22 : f32 to vector<12x8xf32>
    %39 = arith.subf %38, %37 : vector<12x8xf32>
    %40 = math.exp %39 : vector<12x8xf32>
    %cst_23 = arith.constant 1.000000e+00 : f32
    %41 = vector.broadcast %cst_23 : f32 to vector<12x8xf32>
    %42 = arith.addf %41, %40 : vector<12x8xf32>
    %cst_24 = arith.constant 1.000000e+00 : f32
    %43 = vector.broadcast %cst_24 : f32 to vector<12x8xf32>
    %44 = arith.divf %43, %42 : vector<12x8xf32>
    %45 = arith.mulf %34, %11 : vector<12x8xf32>
    %46 = arith.mulf %26, %36 : vector<12x8xf32>
    %47 = arith.addf %45, %46 : vector<12x8xf32>
    %48 = math.tanh %47 : vector<12x8xf32>
    %49 = arith.mulf %44, %48 : vector<12x8xf32>
    %cst_25 = arith.constant dense<0xFF800000> : vector<8xf32>
    %50 = vector.multi_reduction <maximumf>, %49, %cst_25 [0] : vector<12x8xf32> to vector<8xf32>
    %51 = vector.shape_cast %50 : vector<8xf32> to vector<1x8xf32>
    %52 = vector.extract_strided_slice %9 {offsets = [0, 32], sizes = [12, 32], strides = [1, 1]} : vector<24x64xf32> to vector<12x32xf32>
    %c0_26 = arith.constant 0 : index
    %c0_27 = arith.constant 0 : index
    %53 = vector.load %arg6[%c0_26, %c0_27] : memref<8x32xf32, #tpu.memory_space<vmem>>, vector<8x32xf32>
    %c0_28 = arith.constant 0 : index
    %c0_29 = arith.constant 0 : index
    %54 = vector.load %arg7[%c0_28, %c0_29] : memref<1x32xf32, #tpu.memory_space<vmem>>, vector<1x32xf32>
    %cst_30 = arith.constant dense<0.000000e+00> : vector<12x32xf32>
    %55 = tpu.matmul %49, %53, %cst_30 {dimension_numbers = #tpu.dot_dimension_numbers<[1], [0], [0], [1], [0, 0, 1, 1], [], []>} : vector<12x8xf32>, vector<8x32xf32>, vector<12x32xf32> -> vector<12x32xf32>
    %56 = arith.addf %52, %55 : vector<12x32xf32>
    %57 = vector.broadcast %54 : vector<1x32xf32> to vector<12x32xf32>
    %58 = arith.addf %56, %57 : vector<12x32xf32>
    %59 = vector.extract_strided_slice %58 {offsets = [0, 0], sizes = [12, 8], strides = [1, 1]} : vector<12x32xf32> to vector<12x8xf32>
    %cst_31 = arith.constant 0.000000e+00 : f32
    %60 = vector.broadcast %cst_31 : f32 to vector<12x8xf32>
    %61 = arith.subf %60, %59 : vector<12x8xf32>
    %62 = math.exp %61 : vector<12x8xf32>
    %cst_32 = arith.constant 1.000000e+00 : f32
    %63 = vector.broadcast %cst_32 : f32 to vector<12x8xf32>
    %64 = arith.addf %63, %62 : vector<12x8xf32>
    %cst_33 = arith.constant 1.000000e+00 : f32
    %65 = vector.broadcast %cst_33 : f32 to vector<12x8xf32>
    %66 = arith.divf %65, %64 : vector<12x8xf32>
    %67 = vector.extract_strided_slice %58 {offsets = [0, 8], sizes = [12, 8], strides = [1, 1]} : vector<12x32xf32> to vector<12x8xf32>
    %cst_34 = arith.constant 0.000000e+00 : f32
    %68 = vector.broadcast %cst_34 : f32 to vector<12x8xf32>
    %69 = arith.subf %68, %67 : vector<12x8xf32>
    %70 = math.exp %69 : vector<12x8xf32>
    %cst_35 = arith.constant 1.000000e+00 : f32
    %71 = vector.broadcast %cst_35 : f32 to vector<12x8xf32>
    %72 = arith.addf %71, %70 : vector<12x8xf32>
    %cst_36 = arith.constant 1.000000e+00 : f32
    %73 = vector.broadcast %cst_36 : f32 to vector<12x8xf32>
    %74 = arith.divf %73, %72 : vector<12x8xf32>
    %75 = vector.extract_strided_slice %58 {offsets = [0, 16], sizes = [12, 8], strides = [1, 1]} : vector<12x32xf32> to vector<12x8xf32>
    %76 = math.tanh %75 : vector<12x8xf32>
    %77 = vector.extract_strided_slice %58 {offsets = [0, 24], sizes = [12, 8], strides = [1, 1]} : vector<12x32xf32> to vector<12x8xf32>
    %cst_37 = arith.constant 0.000000e+00 : f32
    %78 = vector.broadcast %cst_37 : f32 to vector<12x8xf32>
    %79 = arith.subf %78, %77 : vector<12x8xf32>
    %80 = math.exp %79 : vector<12x8xf32>
    %cst_38 = arith.constant 1.000000e+00 : f32
    %81 = vector.broadcast %cst_38 : f32 to vector<12x8xf32>
    %82 = arith.addf %81, %80 : vector<12x8xf32>
    %cst_39 = arith.constant 1.000000e+00 : f32
    %83 = vector.broadcast %cst_39 : f32 to vector<12x8xf32>
    %84 = arith.divf %83, %82 : vector<12x8xf32>
    %85 = arith.mulf %74, %47 : vector<12x8xf32>
    %86 = arith.mulf %66, %76 : vector<12x8xf32>
    %87 = arith.addf %85, %86 : vector<12x8xf32>
    %88 = math.tanh %87 : vector<12x8xf32>
    %89 = arith.mulf %84, %88 : vector<12x8xf32>
    %cst_40 = arith.constant dense<0xFF800000> : vector<8xf32>
    %90 = vector.multi_reduction <maximumf>, %89, %cst_40 [0] : vector<12x8xf32> to vector<8xf32>
    %91 = vector.shape_cast %90 : vector<8xf32> to vector<1x8xf32>
    %cst_41 = arith.constant 0.000000e+00 : f32
    %92 = vector.broadcast %cst_41 : f32 to vector<12x8xf32>
    %cst_42 = arith.constant 0.000000e+00 : f32
    %93 = vector.broadcast %cst_42 : f32 to vector<12x8xf32>
    %94 = vector.extract_strided_slice %9 {offsets = [0, 0], sizes = [12, 32], strides = [1, 1]} : vector<24x64xf32> to vector<12x32xf32>
    %c0_43 = arith.constant 0 : index
    %c0_44 = arith.constant 0 : index
    %95 = vector.load %arg4[%c0_43, %c0_44] : memref<8x32xf32, #tpu.memory_space<vmem>>, vector<8x32xf32>
    %c0_45 = arith.constant 0 : index
    %c0_46 = arith.constant 0 : index
    %96 = vector.load %arg5[%c0_45, %c0_46] : memref<1x32xf32, #tpu.memory_space<vmem>>, vector<1x32xf32>
    %cst_47 = arith.constant dense<0.000000e+00> : vector<12x32xf32>
    %97 = tpu.matmul %92, %95, %cst_47 {dimension_numbers = #tpu.dot_dimension_numbers<[1], [0], [0], [1], [0, 0, 1, 1], [], []>} : vector<12x8xf32>, vector<8x32xf32>, vector<12x32xf32> -> vector<12x32xf32>
    %98 = arith.addf %94, %97 : vector<12x32xf32>
    %99 = vector.broadcast %96 : vector<1x32xf32> to vector<12x32xf32>
    %100 = arith.addf %98, %99 : vector<12x32xf32>
    %101 = vector.extract_strided_slice %100 {offsets = [0, 0], sizes = [12, 8], strides = [1, 1]} : vector<12x32xf32> to vector<12x8xf32>
    %cst_48 = arith.constant 0.000000e+00 : f32
    %102 = vector.broadcast %cst_48 : f32 to vector<12x8xf32>
    %103 = arith.subf %102, %101 : vector<12x8xf32>
    %104 = math.exp %103 : vector<12x8xf32>
    %cst_49 = arith.constant 1.000000e+00 : f32
    %105 = vector.broadcast %cst_49 : f32 to vector<12x8xf32>
    %106 = arith.addf %105, %104 : vector<12x8xf32>
    %cst_50 = arith.constant 1.000000e+00 : f32
    %107 = vector.broadcast %cst_50 : f32 to vector<12x8xf32>
    %108 = arith.divf %107, %106 : vector<12x8xf32>
    %109 = vector.extract_strided_slice %100 {offsets = [0, 8], sizes = [12, 8], strides = [1, 1]} : vector<12x32xf32> to vector<12x8xf32>
    %cst_51 = arith.constant 0.000000e+00 : f32
    %110 = vector.broadcast %cst_51 : f32 to vector<12x8xf32>
    %111 = arith.subf %110, %109 : vector<12x8xf32>
    %112 = math.exp %111 : vector<12x8xf32>
    %cst_52 = arith.constant 1.000000e+00 : f32
    %113 = vector.broadcast %cst_52 : f32 to vector<12x8xf32>
    %114 = arith.addf %113, %112 : vector<12x8xf32>
    %cst_53 = arith.constant 1.000000e+00 : f32
    %115 = vector.broadcast %cst_53 : f32 to vector<12x8xf32>
    %116 = arith.divf %115, %114 : vector<12x8xf32>
    %117 = vector.extract_strided_slice %100 {offsets = [0, 16], sizes = [12, 8], strides = [1, 1]} : vector<12x32xf32> to vector<12x8xf32>
    %118 = math.tanh %117 : vector<12x8xf32>
    %119 = vector.extract_strided_slice %100 {offsets = [0, 24], sizes = [12, 8], strides = [1, 1]} : vector<12x32xf32> to vector<12x8xf32>
    %cst_54 = arith.constant 0.000000e+00 : f32
    %120 = vector.broadcast %cst_54 : f32 to vector<12x8xf32>
    %121 = arith.subf %120, %119 : vector<12x8xf32>
    %122 = math.exp %121 : vector<12x8xf32>
    %cst_55 = arith.constant 1.000000e+00 : f32
    %123 = vector.broadcast %cst_55 : f32 to vector<12x8xf32>
    %124 = arith.addf %123, %122 : vector<12x8xf32>
    %cst_56 = arith.constant 1.000000e+00 : f32
    %125 = vector.broadcast %cst_56 : f32 to vector<12x8xf32>
    %126 = arith.divf %125, %124 : vector<12x8xf32>
    %127 = arith.mulf %116, %93 : vector<12x8xf32>
    %128 = arith.mulf %108, %118 : vector<12x8xf32>
    %129 = arith.addf %127, %128 : vector<12x8xf32>
    %130 = math.tanh %129 : vector<12x8xf32>
    %131 = arith.mulf %126, %130 : vector<12x8xf32>
    %cst_57 = arith.constant dense<0xFF800000> : vector<8xf32>
    %132 = vector.multi_reduction <maximumf>, %131, %cst_57 [0] : vector<12x8xf32> to vector<8xf32>
    %133 = vector.shape_cast %132 : vector<8xf32> to vector<1x8xf32>
    %134 = tpu.concatenate %133, %91 in 1 : vector<1x8xf32>, vector<1x8xf32> -> vector<1x16xf32>
    %135 = math.tanh %134 : vector<1x16xf32>
    %136 = vector.extract_strided_slice %9 {offsets = [12, 0], sizes = [12, 32], strides = [1, 1]} : vector<24x64xf32> to vector<12x32xf32>
    %c0_58 = arith.constant 0 : index
    %c0_59 = arith.constant 0 : index
    %137 = vector.load %arg4[%c0_58, %c0_59] : memref<8x32xf32, #tpu.memory_space<vmem>>, vector<8x32xf32>
    %c0_60 = arith.constant 0 : index
    %c0_61 = arith.constant 0 : index
    %138 = vector.load %arg5[%c0_60, %c0_61] : memref<1x32xf32, #tpu.memory_space<vmem>>, vector<1x32xf32>
    %cst_62 = arith.constant dense<0.000000e+00> : vector<12x32xf32>
    %139 = tpu.matmul %131, %137, %cst_62 {dimension_numbers = #tpu.dot_dimension_numbers<[1], [0], [0], [1], [0, 0, 1, 1], [], []>} : vector<12x8xf32>, vector<8x32xf32>, vector<12x32xf32> -> vector<12x32xf32>
    %140 = arith.addf %136, %139 : vector<12x32xf32>
    %141 = vector.broadcast %138 : vector<1x32xf32> to vector<12x32xf32>
    %142 = arith.addf %140, %141 : vector<12x32xf32>
    %143 = vector.extract_strided_slice %142 {offsets = [0, 0], sizes = [12, 8], strides = [1, 1]} : vector<12x32xf32> to vector<12x8xf32>
    %cst_63 = arith.constant 0.000000e+00 : f32
    %144 = vector.broadcast %cst_63 : f32 to vector<12x8xf32>
    %145 = arith.subf %144, %143 : vector<12x8xf32>
    %146 = math.exp %145 : vector<12x8xf32>
    %cst_64 = arith.constant 1.000000e+00 : f32
    %147 = vector.broadcast %cst_64 : f32 to vector<12x8xf32>
    %148 = arith.addf %147, %146 : vector<12x8xf32>
    %cst_65 = arith.constant 1.000000e+00 : f32
    %149 = vector.broadcast %cst_65 : f32 to vector<12x8xf32>
    %150 = arith.divf %149, %148 : vector<12x8xf32>
    %151 = vector.extract_strided_slice %142 {offsets = [0, 8], sizes = [12, 8], strides = [1, 1]} : vector<12x32xf32> to vector<12x8xf32>
    %cst_66 = arith.constant 0.000000e+00 : f32
    %152 = vector.broadcast %cst_66 : f32 to vector<12x8xf32>
    %153 = arith.subf %152, %151 : vector<12x8xf32>
    %154 = math.exp %153 : vector<12x8xf32>
    %cst_67 = arith.constant 1.000000e+00 : f32
    %155 = vector.broadcast %cst_67 : f32 to vector<12x8xf32>
    %156 = arith.addf %155, %154 : vector<12x8xf32>
    %cst_68 = arith.constant 1.000000e+00 : f32
    %157 = vector.broadcast %cst_68 : f32 to vector<12x8xf32>
    %158 = arith.divf %157, %156 : vector<12x8xf32>
    %159 = vector.extract_strided_slice %142 {offsets = [0, 16], sizes = [12, 8], strides = [1, 1]} : vector<12x32xf32> to vector<12x8xf32>
    %160 = math.tanh %159 : vector<12x8xf32>
    %161 = vector.extract_strided_slice %142 {offsets = [0, 24], sizes = [12, 8], strides = [1, 1]} : vector<12x32xf32> to vector<12x8xf32>
    %cst_69 = arith.constant 0.000000e+00 : f32
    %162 = vector.broadcast %cst_69 : f32 to vector<12x8xf32>
    %163 = arith.subf %162, %161 : vector<12x8xf32>
    %164 = math.exp %163 : vector<12x8xf32>
    %cst_70 = arith.constant 1.000000e+00 : f32
    %165 = vector.broadcast %cst_70 : f32 to vector<12x8xf32>
    %166 = arith.addf %165, %164 : vector<12x8xf32>
    %cst_71 = arith.constant 1.000000e+00 : f32
    %167 = vector.broadcast %cst_71 : f32 to vector<12x8xf32>
    %168 = arith.divf %167, %166 : vector<12x8xf32>
    %169 = arith.mulf %158, %129 : vector<12x8xf32>
    %170 = arith.mulf %150, %160 : vector<12x8xf32>
    %171 = arith.addf %169, %170 : vector<12x8xf32>
    %172 = math.tanh %171 : vector<12x8xf32>
    %173 = arith.mulf %168, %172 : vector<12x8xf32>
    %cst_72 = arith.constant dense<0xFF800000> : vector<8xf32>
    %174 = vector.multi_reduction <maximumf>, %173, %cst_72 [0] : vector<12x8xf32> to vector<8xf32>
    %175 = vector.shape_cast %174 : vector<8xf32> to vector<1x8xf32>
    %176 = tpu.concatenate %175, %51 in 1 : vector<1x8xf32>, vector<1x8xf32> -> vector<1x16xf32>
    %177 = math.tanh %176 : vector<1x16xf32>
    %178 = tpu.concatenate %135, %177 in 0 : vector<1x16xf32>, vector<1x16xf32> -> vector<2x16xf32>
    %c0_73 = arith.constant 0 : index
    %c0_74 = arith.constant 0 : index
    %179 = vector.load %arg8[%c0_73, %c0_74] : memref<16x5xf32, #tpu.memory_space<vmem>>, vector<16x5xf32>
    %cst_75 = arith.constant dense<0.000000e+00> : vector<2x5xf32>
    %180 = tpu.matmul %178, %179, %cst_75 {dimension_numbers = #tpu.dot_dimension_numbers<[1], [0], [0], [1], [0, 0, 1, 1], [], []>} : vector<2x16xf32>, vector<16x5xf32>, vector<2x5xf32> -> vector<2x5xf32>
    %c0_76 = arith.constant 0 : index
    %c0_77 = arith.constant 0 : index
    %181 = vector.load %arg9[%c0_76, %c0_77] : memref<1x5xf32, #tpu.memory_space<vmem>>, vector<1x5xf32>
    %182 = vector.broadcast %181 : vector<1x5xf32> to vector<2x5xf32>
    %183 = arith.addf %180, %182 : vector<2x5xf32>
    %c0_78 = arith.constant 0 : index
    %c0_79 = arith.constant 0 : index
    %184 = vector.load %arg10[%c0_78, %c0_79] : memref<2x5xf32, #tpu.memory_space<vmem>>, vector<2x5xf32>
    tpu.vector_store %arg10[%c0_78, %c0_79], %183 {strides = array<i32>} : memref<2x5xf32, #tpu.memory_space<vmem>>, vector<2x5xf32>,
    return
  }
}

module attributes {stable_mosaic.version = 11 : i64} {
  func.func @kernel(%arg0: memref<24x80xf32, #tpu.memory_space<vmem>>, %arg1: memref<80x16xf32, #tpu.memory_space<vmem>>, %arg2: memref<1x16xf32, #tpu.memory_space<vmem>>, %arg3: memref<16x128xf32, #tpu.memory_space<vmem>>, %arg4: memref<16x64xf32, #tpu.memory_space<vmem>>, %arg5: memref<1x64xf32, #tpu.memory_space<vmem>>, %arg6: memref<16x64xf32, #tpu.memory_space<vmem>>, %arg7: memref<1x64xf32, #tpu.memory_space<vmem>>, %arg8: memref<32x5xf32, #tpu.memory_space<vmem>>, %arg9: memref<1x5xf32, #tpu.memory_space<vmem>>, %arg10: memref<2x5xf32, #tpu.memory_space<vmem>>, %arg11: memref<2x5xf32, #tpu.memory_space<vmem>>, %arg12: memref<2x5xf32, #tpu.memory_space<vmem>>) attributes {dimension_semantics = [], scalar_prefetch = 0 : i64, scratch_operands = 0 : i64, tpu.core_type = #tpu.core_type<tc>} {
    %c0 = arith.constant 0 : index
    %c0_0 = arith.constant 0 : index
    %0 = vector.load %arg0[%c0, %c0_0] : memref<24x80xf32, #tpu.memory_space<vmem>>, vector<24x80xf32>
    %c0_1 = arith.constant 0 : index
    %c0_2 = arith.constant 0 : index
    %1 = vector.load %arg1[%c0_1, %c0_2] : memref<80x16xf32, #tpu.memory_space<vmem>>, vector<80x16xf32>
    %cst = arith.constant dense<0.000000e+00> : vector<24x16xf32>
    %2 = tpu.matmul %0, %1, %cst {dimension_numbers = #tpu.dot_dimension_numbers<[1], [0], [0], [1], [0, 0, 1, 1], [], []>} : vector<24x80xf32>, vector<80x16xf32>, vector<24x16xf32> -> vector<24x16xf32>
    %c0_3 = arith.constant 0 : index
    %c0_4 = arith.constant 0 : index
    %3 = vector.load %arg2[%c0_3, %c0_4] : memref<1x16xf32, #tpu.memory_space<vmem>>, vector<1x16xf32>
    %4 = vector.broadcast %3 : vector<1x16xf32> to vector<24x16xf32>
    %5 = arith.addf %2, %4 : vector<24x16xf32>
    %cst_5 = arith.constant 0.000000e+00 : f32
    %6 = vector.broadcast %cst_5 : f32 to vector<24x16xf32>
    %7 = arith.maximumf %5, %6 : vector<24x16xf32>
    %c0_6 = arith.constant 0 : index
    %c0_7 = arith.constant 0 : index
    %8 = vector.load %arg3[%c0_6, %c0_7] : memref<16x128xf32, #tpu.memory_space<vmem>>, vector<16x128xf32>
    %cst_8 = arith.constant dense<0.000000e+00> : vector<24x128xf32>
    %9 = tpu.matmul %7, %8, %cst_8 {dimension_numbers = #tpu.dot_dimension_numbers<[1], [0], [0], [1], [0, 0, 1, 1], [], []>} : vector<24x16xf32>, vector<16x128xf32>, vector<24x128xf32> -> vector<24x128xf32>
    %cst_9 = arith.constant 0.000000e+00 : f32
    %10 = vector.broadcast %cst_9 : f32 to vector<12x16xf32>
    %cst_10 = arith.constant 0.000000e+00 : f32
    %11 = vector.broadcast %cst_10 : f32 to vector<12x16xf32>
    %12 = vector.extract_strided_slice %9 {offsets = [12, 64], sizes = [12, 64], strides = [1, 1]} : vector<24x128xf32> to vector<12x64xf32>
    %c0_11 = arith.constant 0 : index
    %c0_12 = arith.constant 0 : index
    %13 = vector.load %arg6[%c0_11, %c0_12] : memref<16x64xf32, #tpu.memory_space<vmem>>, vector<16x64xf32>
    %c0_13 = arith.constant 0 : index
    %c0_14 = arith.constant 0 : index
    %14 = vector.load %arg7[%c0_13, %c0_14] : memref<1x64xf32, #tpu.memory_space<vmem>>, vector<1x64xf32>
    %cst_15 = arith.constant dense<0.000000e+00> : vector<12x64xf32>
    %15 = tpu.matmul %10, %13, %cst_15 {dimension_numbers = #tpu.dot_dimension_numbers<[1], [0], [0], [1], [0, 0, 1, 1], [], []>} : vector<12x16xf32>, vector<16x64xf32>, vector<12x64xf32> -> vector<12x64xf32>
    %16 = arith.addf %12, %15 : vector<12x64xf32>
    %17 = vector.broadcast %14 : vector<1x64xf32> to vector<12x64xf32>
    %18 = arith.addf %16, %17 : vector<12x64xf32>
    %19 = vector.extract_strided_slice %18 {offsets = [0, 0], sizes = [12, 16], strides = [1, 1]} : vector<12x64xf32> to vector<12x16xf32>
    %cst_16 = arith.constant 0.000000e+00 : f32
    %20 = vector.broadcast %cst_16 : f32 to vector<12x16xf32>
    %21 = arith.subf %20, %19 : vector<12x16xf32>
    %22 = math.exp %21 : vector<12x16xf32>
    %cst_17 = arith.constant 1.000000e+00 : f32
    %23 = vector.broadcast %cst_17 : f32 to vector<12x16xf32>
    %24 = arith.addf %23, %22 : vector<12x16xf32>
    %cst_18 = arith.constant 1.000000e+00 : f32
    %25 = vector.broadcast %cst_18 : f32 to vector<12x16xf32>
    %26 = arith.divf %25, %24 : vector<12x16xf32>
    %27 = vector.extract_strided_slice %18 {offsets = [0, 16], sizes = [12, 16], strides = [1, 1]} : vector<12x64xf32> to vector<12x16xf32>
    %cst_19 = arith.constant 0.000000e+00 : f32
    %28 = vector.broadcast %cst_19 : f32 to vector<12x16xf32>
    %29 = arith.subf %28, %27 : vector<12x16xf32>
    %30 = math.exp %29 : vector<12x16xf32>
    %cst_20 = arith.constant 1.000000e+00 : f32
    %31 = vector.broadcast %cst_20 : f32 to vector<12x16xf32>
    %32 = arith.addf %31, %30 : vector<12x16xf32>
    %cst_21 = arith.constant 1.000000e+00 : f32
    %33 = vector.broadcast %cst_21 : f32 to vector<12x16xf32>
    %34 = arith.divf %33, %32 : vector<12x16xf32>
    %35 = vector.extract_strided_slice %18 {offsets = [0, 32], sizes = [12, 16], strides = [1, 1]} : vector<12x64xf32> to vector<12x16xf32>
    %36 = math.tanh %35 : vector<12x16xf32>
    %37 = vector.extract_strided_slice %18 {offsets = [0, 48], sizes = [12, 16], strides = [1, 1]} : vector<12x64xf32> to vector<12x16xf32>
    %cst_22 = arith.constant 0.000000e+00 : f32
    %38 = vector.broadcast %cst_22 : f32 to vector<12x16xf32>
    %39 = arith.subf %38, %37 : vector<12x16xf32>
    %40 = math.exp %39 : vector<12x16xf32>
    %cst_23 = arith.constant 1.000000e+00 : f32
    %41 = vector.broadcast %cst_23 : f32 to vector<12x16xf32>
    %42 = arith.addf %41, %40 : vector<12x16xf32>
    %cst_24 = arith.constant 1.000000e+00 : f32
    %43 = vector.broadcast %cst_24 : f32 to vector<12x16xf32>
    %44 = arith.divf %43, %42 : vector<12x16xf32>
    %45 = arith.mulf %34, %11 : vector<12x16xf32>
    %46 = arith.mulf %26, %36 : vector<12x16xf32>
    %47 = arith.addf %45, %46 : vector<12x16xf32>
    %48 = math.tanh %47 : vector<12x16xf32>
    %49 = arith.mulf %44, %48 : vector<12x16xf32>
    %cst_25 = arith.constant dense<0xFF800000> : vector<16xf32>
    %50 = vector.multi_reduction <maximumf>, %49, %cst_25 [0] : vector<12x16xf32> to vector<16xf32>
    %51 = vector.shape_cast %50 : vector<16xf32> to vector<1x16xf32>
    %52 = vector.extract_strided_slice %9 {offsets = [0, 64], sizes = [12, 64], strides = [1, 1]} : vector<24x128xf32> to vector<12x64xf32>
    %c0_26 = arith.constant 0 : index
    %c0_27 = arith.constant 0 : index
    %53 = vector.load %arg6[%c0_26, %c0_27] : memref<16x64xf32, #tpu.memory_space<vmem>>, vector<16x64xf32>
    %c0_28 = arith.constant 0 : index
    %c0_29 = arith.constant 0 : index
    %54 = vector.load %arg7[%c0_28, %c0_29] : memref<1x64xf32, #tpu.memory_space<vmem>>, vector<1x64xf32>
    %cst_30 = arith.constant dense<0.000000e+00> : vector<12x64xf32>
    %55 = tpu.matmul %49, %53, %cst_30 {dimension_numbers = #tpu.dot_dimension_numbers<[1], [0], [0], [1], [0, 0, 1, 1], [], []>} : vector<12x16xf32>, vector<16x64xf32>, vector<12x64xf32> -> vector<12x64xf32>
    %56 = arith.addf %52, %55 : vector<12x64xf32>
    %57 = vector.broadcast %54 : vector<1x64xf32> to vector<12x64xf32>
    %58 = arith.addf %56, %57 : vector<12x64xf32>
    %59 = vector.extract_strided_slice %58 {offsets = [0, 0], sizes = [12, 16], strides = [1, 1]} : vector<12x64xf32> to vector<12x16xf32>
    %cst_31 = arith.constant 0.000000e+00 : f32
    %60 = vector.broadcast %cst_31 : f32 to vector<12x16xf32>
    %61 = arith.subf %60, %59 : vector<12x16xf32>
    %62 = math.exp %61 : vector<12x16xf32>
    %cst_32 = arith.constant 1.000000e+00 : f32
    %63 = vector.broadcast %cst_32 : f32 to vector<12x16xf32>
    %64 = arith.addf %63, %62 : vector<12x16xf32>
    %cst_33 = arith.constant 1.000000e+00 : f32
    %65 = vector.broadcast %cst_33 : f32 to vector<12x16xf32>
    %66 = arith.divf %65, %64 : vector<12x16xf32>
    %67 = vector.extract_strided_slice %58 {offsets = [0, 16], sizes = [12, 16], strides = [1, 1]} : vector<12x64xf32> to vector<12x16xf32>
    %cst_34 = arith.constant 0.000000e+00 : f32
    %68 = vector.broadcast %cst_34 : f32 to vector<12x16xf32>
    %69 = arith.subf %68, %67 : vector<12x16xf32>
    %70 = math.exp %69 : vector<12x16xf32>
    %cst_35 = arith.constant 1.000000e+00 : f32
    %71 = vector.broadcast %cst_35 : f32 to vector<12x16xf32>
    %72 = arith.addf %71, %70 : vector<12x16xf32>
    %cst_36 = arith.constant 1.000000e+00 : f32
    %73 = vector.broadcast %cst_36 : f32 to vector<12x16xf32>
    %74 = arith.divf %73, %72 : vector<12x16xf32>
    %75 = vector.extract_strided_slice %58 {offsets = [0, 32], sizes = [12, 16], strides = [1, 1]} : vector<12x64xf32> to vector<12x16xf32>
    %76 = math.tanh %75 : vector<12x16xf32>
    %77 = vector.extract_strided_slice %58 {offsets = [0, 48], sizes = [12, 16], strides = [1, 1]} : vector<12x64xf32> to vector<12x16xf32>
    %cst_37 = arith.constant 0.000000e+00 : f32
    %78 = vector.broadcast %cst_37 : f32 to vector<12x16xf32>
    %79 = arith.subf %78, %77 : vector<12x16xf32>
    %80 = math.exp %79 : vector<12x16xf32>
    %cst_38 = arith.constant 1.000000e+00 : f32
    %81 = vector.broadcast %cst_38 : f32 to vector<12x16xf32>
    %82 = arith.addf %81, %80 : vector<12x16xf32>
    %cst_39 = arith.constant 1.000000e+00 : f32
    %83 = vector.broadcast %cst_39 : f32 to vector<12x16xf32>
    %84 = arith.divf %83, %82 : vector<12x16xf32>
    %85 = arith.mulf %74, %47 : vector<12x16xf32>
    %86 = arith.mulf %66, %76 : vector<12x16xf32>
    %87 = arith.addf %85, %86 : vector<12x16xf32>
    %88 = math.tanh %87 : vector<12x16xf32>
    %89 = arith.mulf %84, %88 : vector<12x16xf32>
    %cst_40 = arith.constant dense<0xFF800000> : vector<16xf32>
    %90 = vector.multi_reduction <maximumf>, %89, %cst_40 [0] : vector<12x16xf32> to vector<16xf32>
    %91 = vector.shape_cast %90 : vector<16xf32> to vector<1x16xf32>
    %cst_41 = arith.constant 0.000000e+00 : f32
    %92 = vector.broadcast %cst_41 : f32 to vector<12x16xf32>
    %cst_42 = arith.constant 0.000000e+00 : f32
    %93 = vector.broadcast %cst_42 : f32 to vector<12x16xf32>
    %94 = vector.extract_strided_slice %9 {offsets = [0, 0], sizes = [12, 64], strides = [1, 1]} : vector<24x128xf32> to vector<12x64xf32>
    %c0_43 = arith.constant 0 : index
    %c0_44 = arith.constant 0 : index
    %95 = vector.load %arg4[%c0_43, %c0_44] : memref<16x64xf32, #tpu.memory_space<vmem>>, vector<16x64xf32>
    %c0_45 = arith.constant 0 : index
    %c0_46 = arith.constant 0 : index
    %96 = vector.load %arg5[%c0_45, %c0_46] : memref<1x64xf32, #tpu.memory_space<vmem>>, vector<1x64xf32>
    %cst_47 = arith.constant dense<0.000000e+00> : vector<12x64xf32>
    %97 = tpu.matmul %92, %95, %cst_47 {dimension_numbers = #tpu.dot_dimension_numbers<[1], [0], [0], [1], [0, 0, 1, 1], [], []>} : vector<12x16xf32>, vector<16x64xf32>, vector<12x64xf32> -> vector<12x64xf32>
    %98 = arith.addf %94, %97 : vector<12x64xf32>
    %99 = vector.broadcast %96 : vector<1x64xf32> to vector<12x64xf32>
    %100 = arith.addf %98, %99 : vector<12x64xf32>
    %101 = vector.extract_strided_slice %100 {offsets = [0, 0], sizes = [12, 16], strides = [1, 1]} : vector<12x64xf32> to vector<12x16xf32>
    %cst_48 = arith.constant 0.000000e+00 : f32
    %102 = vector.broadcast %cst_48 : f32 to vector<12x16xf32>
    %103 = arith.subf %102, %101 : vector<12x16xf32>
    %104 = math.exp %103 : vector<12x16xf32>
    %cst_49 = arith.constant 1.000000e+00 : f32
    %105 = vector.broadcast %cst_49 : f32 to vector<12x16xf32>
    %106 = arith.addf %105, %104 : vector<12x16xf32>
    %cst_50 = arith.constant 1.000000e+00 : f32
    %107 = vector.broadcast %cst_50 : f32 to vector<12x16xf32>
    %108 = arith.divf %107, %106 : vector<12x16xf32>
    %109 = vector.extract_strided_slice %100 {offsets = [0, 16], sizes = [12, 16], strides = [1, 1]} : vector<12x64xf32> to vector<12x16xf32>
    %cst_51 = arith.constant 0.000000e+00 : f32
    %110 = vector.broadcast %cst_51 : f32 to vector<12x16xf32>
    %111 = arith.subf %110, %109 : vector<12x16xf32>
    %112 = math.exp %111 : vector<12x16xf32>
    %cst_52 = arith.constant 1.000000e+00 : f32
    %113 = vector.broadcast %cst_52 : f32 to vector<12x16xf32>
    %114 = arith.addf %113, %112 : vector<12x16xf32>
    %cst_53 = arith.constant 1.000000e+00 : f32
    %115 = vector.broadcast %cst_53 : f32 to vector<12x16xf32>
    %116 = arith.divf %115, %114 : vector<12x16xf32>
    %117 = vector.extract_strided_slice %100 {offsets = [0, 32], sizes = [12, 16], strides = [1, 1]} : vector<12x64xf32> to vector<12x16xf32>
    %118 = math.tanh %117 : vector<12x16xf32>
    %119 = vector.extract_strided_slice %100 {offsets = [0, 48], sizes = [12, 16], strides = [1, 1]} : vector<12x64xf32> to vector<12x16xf32>
    %cst_54 = arith.constant 0.000000e+00 : f32
    %120 = vector.broadcast %cst_54 : f32 to vector<12x16xf32>
    %121 = arith.subf %120, %119 : vector<12x16xf32>
    %122 = math.exp %121 : vector<12x16xf32>
    %cst_55 = arith.constant 1.000000e+00 : f32
    %123 = vector.broadcast %cst_55 : f32 to vector<12x16xf32>
    %124 = arith.addf %123, %122 : vector<12x16xf32>
    %cst_56 = arith.constant 1.000000e+00 : f32
    %125 = vector.broadcast %cst_56 : f32 to vector<12x16xf32>
    %126 = arith.divf %125, %124 : vector<12x16xf32>
    %127 = arith.mulf %116, %93 : vector<12x16xf32>
    %128 = arith.mulf %108, %118 : vector<12x16xf32>
    %129 = arith.addf %127, %128 : vector<12x16xf32>
    %130 = math.tanh %129 : vector<12x16xf32>
    %131 = arith.mulf %126, %130 : vector<12x16xf32>
    %cst_57 = arith.constant dense<0xFF800000> : vector<16xf32>
    %132 = vector.multi_reduction <maximumf>, %131, %cst_57 [0] : vector<12x16xf32> to vector<16xf32>
    %133 = vector.shape_cast %132 : vector<16xf32> to vector<1x16xf32>
    %134 = tpu.concatenate %133, %91 in 1 : vector<1x16xf32>, vector<1x16xf32> -> vector<1x32xf32>
    %135 = math.tanh %134 : vector<1x32xf32>
    %136 = vector.extract_strided_slice %9 {offsets = [12, 0], sizes = [12, 64], strides = [1, 1]} : vector<24x128xf32> to vector<12x64xf32>
    %c0_58 = arith.constant 0 : index
    %c0_59 = arith.constant 0 : index
    %137 = vector.load %arg4[%c0_58, %c0_59] : memref<16x64xf32, #tpu.memory_space<vmem>>, vector<16x64xf32>
    %c0_60 = arith.constant 0 : index
    %c0_61 = arith.constant 0 : index
    %138 = vector.load %arg5[%c0_60, %c0_61] : memref<1x64xf32, #tpu.memory_space<vmem>>, vector<1x64xf32>
    %cst_62 = arith.constant dense<0.000000e+00> : vector<12x64xf32>
    %139 = tpu.matmul %131, %137, %cst_62 {dimension_numbers = #tpu.dot_dimension_numbers<[1], [0], [0], [1], [0, 0, 1, 1], [], []>} : vector<12x16xf32>, vector<16x64xf32>, vector<12x64xf32> -> vector<12x64xf32>
    %140 = arith.addf %136, %139 : vector<12x64xf32>
    %141 = vector.broadcast %138 : vector<1x64xf32> to vector<12x64xf32>
    %142 = arith.addf %140, %141 : vector<12x64xf32>
    %143 = vector.extract_strided_slice %142 {offsets = [0, 0], sizes = [12, 16], strides = [1, 1]} : vector<12x64xf32> to vector<12x16xf32>
    %cst_63 = arith.constant 0.000000e+00 : f32
    %144 = vector.broadcast %cst_63 : f32 to vector<12x16xf32>
    %145 = arith.subf %144, %143 : vector<12x16xf32>
    %146 = math.exp %145 : vector<12x16xf32>
    %cst_64 = arith.constant 1.000000e+00 : f32
    %147 = vector.broadcast %cst_64 : f32 to vector<12x16xf32>
    %148 = arith.addf %147, %146 : vector<12x16xf32>
    %cst_65 = arith.constant 1.000000e+00 : f32
    %149 = vector.broadcast %cst_65 : f32 to vector<12x16xf32>
    %150 = arith.divf %149, %148 : vector<12x16xf32>
    %151 = vector.extract_strided_slice %142 {offsets = [0, 16], sizes = [12, 16], strides = [1, 1]} : vector<12x64xf32> to vector<12x16xf32>
    %cst_66 = arith.constant 0.000000e+00 : f32
    %152 = vector.broadcast %cst_66 : f32 to vector<12x16xf32>
    %153 = arith.subf %152, %151 : vector<12x16xf32>
    %154 = math.exp %153 : vector<12x16xf32>
    %cst_67 = arith.constant 1.000000e+00 : f32
    %155 = vector.broadcast %cst_67 : f32 to vector<12x16xf32>
    %156 = arith.addf %155, %154 : vector<12x16xf32>
    %cst_68 = arith.constant 1.000000e+00 : f32
    %157 = vector.broadcast %cst_68 : f32 to vector<12x16xf32>
    %158 = arith.divf %157, %156 : vector<12x16xf32>
    %159 = vector.extract_strided_slice %142 {offsets = [0, 32], sizes = [12, 16], strides = [1, 1]} : vector<12x64xf32> to vector<12x16xf32>
    %160 = math.tanh %159 : vector<12x16xf32>
    %161 = vector.extract_strided_slice %142 {offsets = [0, 48], sizes = [12, 16], strides = [1, 1]} : vector<12x64xf32> to vector<12x16xf32>
    %cst_69 = arith.constant 0.000000e+00 : f32
    %162 = vector.broadcast %cst_69 : f32 to vector<12x16xf32>
    %163 = arith.subf %162, %161 : vector<12x16xf32>
    %164 = math.exp %163 : vector<12x16xf32>
    %cst_70 = arith.constant 1.000000e+00 : f32
    %165 = vector.broadcast %cst_70 : f32 to vector<12x16xf32>
    %166 = arith.addf %165, %164 : vector<12x16xf32>
    %cst_71 = arith.constant 1.000000e+00 : f32
    %167 = vector.broadcast %cst_71 : f32 to vector<12x16xf32>
    %168 = arith.divf %167, %166 : vector<12x16xf32>
    %169 = arith.mulf %158, %129 : vector<12x16xf32>
    %170 = arith.mulf %150, %160 : vector<12x16xf32>
    %171 = arith.addf %169, %170 : vector<12x16xf32>
    %172 = math.tanh %171 : vector<12x16xf32>
    %173 = arith.mulf %168, %172 : vector<12x16xf32>
    %cst_72 = arith.constant dense<0xFF800000> : vector<16xf32>
    %174 = vector.multi_reduction <maximumf>, %173, %cst_72 [0] : vector<12x16xf32> to vector<16xf32>
    %175 = vector.shape_cast %174 : vector<16xf32> to vector<1x16xf32>
    %176 = tpu.concatenate %175, %51 in 1 : vector<1x16xf32>, vector<1x16xf32> -> vector<1x32xf32>
    %177 = math.tanh %176 : vector<1x32xf32>
    %178 = tpu.concatenate %135, %177 in 0 : vector<1x32xf32>, vector<1x32xf32> -> vector<2x32xf32>
    %c0_73 = arith.constant 0 : index
    %c0_74 = arith.constant 0 : index
    %179 = vector.load %arg8[%c0_73, %c0_74] : memref<32x5xf32, #tpu.memory_space<vmem>>, vector<32x5xf32>
    %cst_75 = arith.constant dense<0.000000e+00> : vector<2x5xf32>
    %180 = tpu.matmul %178, %179, %cst_75 {dimension_numbers = #tpu.dot_dimension_numbers<[1], [0], [0], [1], [0, 0, 1, 1], [], []>} : vector<2x32xf32>, vector<32x5xf32>, vector<2x5xf32> -> vector<2x5xf32>
    %c0_76 = arith.constant 0 : index
    %c0_77 = arith.constant 0 : index
    %181 = vector.load %arg9[%c0_76, %c0_77] : memref<1x5xf32, #tpu.memory_space<vmem>>, vector<1x5xf32>
    %182 = vector.broadcast %181 : vector<1x5xf32> to vector<2x5xf32>
    %183 = arith.addf %180, %182 : vector<2x5xf32>
    %c0_78 = arith.constant 0 : index
    %c0_79 = arith.constant 0 : index
    %184 = vector.load %arg10[%c0_78, %c0_79] : memref<2x5xf32, #tpu.memory_space<vmem>>, vector<2x5xf32>
    %185 = arith.addf %183, %184 : vector<2x5xf32>
    %c0_80 = arith.constant 0 : index
    %c0_81 = arith.constant 0 : index
    %186 = vector.load %arg11[%c0_80, %c0_81] : memref<2x5xf32, #tpu.memory_space<vmem>>, vector<2x5xf32>
    %187 = arith.addf %185, %186 : vector<2x5xf32>
    %cst_82 = arith.constant dense<0xFF800000> : vector<2xf32>
    %188 = vector.multi_reduction <maximumf>, %187, %cst_82 [1] : vector<2x5xf32> to vector<2xf32>
    %189 = vector.shape_cast %188 : vector<2xf32> to vector<2x1xf32>
    %190 = vector.broadcast %189 : vector<2x1xf32> to vector<2x5xf32>
    %191 = arith.subf %187, %190 : vector<2x5xf32>
    %192 = math.exp %191 : vector<2x5xf32>
    %cst_83 = arith.constant dense<0.000000e+00> : vector<2xf32>
    %193 = vector.multi_reduction <add>, %192, %cst_83 [1] : vector<2x5xf32> to vector<2xf32>
    %194 = vector.shape_cast %193 : vector<2xf32> to vector<2x1xf32>
    %195 = math.log %194 : vector<2x1xf32>
    %196 = vector.broadcast %195 : vector<2x1xf32> to vector<2x5xf32>
    %197 = arith.subf %191, %196 : vector<2x5xf32>
    %c0_84 = arith.constant 0 : index
    %c0_85 = arith.constant 0 : index
    %198 = vector.load %arg12[%c0_84, %c0_85] : memref<2x5xf32, #tpu.memory_space<vmem>>, vector<2x5xf32>
    tpu.vector_store %arg12[%c0_84, %c0_85], %197 {strides = array<i32>} : memref<2x5xf32, #tpu.memory_space<vmem>>, vector<2x5xf32>,
    return
  }
}

</mosaic_0001>

<llo_original>
// kernel: hcl_forward.5
$region0: #{hcl_forward.5}
  #allocation0 [shape = 'u32[]', space=smem, size = 0x4, offset = 0x4, fixed_abs, tag = 'smem constant byte address 0x4 - core index']
  #allocation1 [shape = 'u32[72,128]{1,0:T(1,128)}', space=vmem, size = 0x9000, scoped, tag = 'internal scratch']
  %s0 = inlined_call_operand.vmem [shape: f32[6,48], index: 0, kind: input, shape index: {}]
  %s1 = inlined_call_operand.vmem [shape: f32[48,12], index: 1, kind: input, shape index: {}]
  %s2 = inlined_call_operand.vmem [shape: f32[1,12], index: 2, kind: input, shape index: {}]
  %s3 = inlined_call_operand.vmem [shape: f32[12,96], index: 3, kind: input, shape index: {}]
  %s4 = inlined_call_operand.vmem [shape: f32[12,48], index: 4, kind: input, shape index: {}]
  %s5 = inlined_call_operand.vmem [shape: f32[1,48], index: 5, kind: input, shape index: {}]
  %s6 = inlined_call_operand.vmem [shape: f32[12,48], index: 6, kind: input, shape index: {}]
  %s7 = inlined_call_operand.vmem [shape: f32[1,48], index: 7, kind: input, shape index: {}]
  %s8 = inlined_call_operand.vmem [shape: f32[24,5], index: 8, kind: input, shape index: {}]
  %s9 = inlined_call_operand.vmem [shape: f32[1,5], index: 9, kind: input, shape index: {}]
  %s10 = inlined_call_operand.vmem [shape: f32[2,5], index: 10, kind: output, shape index: {}]
  %s11 = sld [smem:[#allocation0]]
  $region50: #{hcl_forward.5} parent=0
    _
  %s13 = ssub.s32 1, %s11
  %s14 = scalar_select 0, %s13, %s11
  // Predicated region
  $region2: #{hcl_forward.5} parent=0 // pred_check
    _
  $region3: #{hcl_forward.5} parent=0 // pred_check_branch
    %16 = sbr.rel (0) target = $region5
  $region4: #{hcl_forward.5} parent=0 // pred_region
    _
  $region5: #{hcl_forward.5} parent=0 // pred_fallthru
    _
  // Predicated region
  $region6: #{hcl_forward.5} parent=0 // pred_check
    _
  $region7: #{hcl_forward.5} parent=0 // pred_check_branch
    %18 = sbr.rel (0) target = $region9
  $region8: #{hcl_forward.5} parent=0 // pred_region
    _
  $region9: #{hcl_forward.5} parent=0 // pred_fallthru
    _
  // Predicated region
  $region10: #{hcl_forward.5} parent=0 // pred_check
    _
  $region11: #{hcl_forward.5} parent=0 // pred_check_branch
    %20 = sbr.rel (0) target = $region13
  $region12: #{hcl_forward.5} parent=0 // pred_region
    _
  $region13: #{hcl_forward.5} parent=0 // pred_fallthru
    _
  // Predicated region
  $region14: #{hcl_forward.5} parent=0 // pred_check
    _
  $region15: #{hcl_forward.5} parent=0 // pred_check_branch
    %22 = sbr.rel (0) target = $region17
  $region16: #{hcl_forward.5} parent=0 // pred_region
    _
  $region17: #{hcl_forward.5} parent=0 // pred_fallthru
    _
  // Predicated region
  $region18: #{hcl_forward.5} parent=0 // pred_check
    _
  $region19: #{hcl_forward.5} parent=0 // pred_check_branch
    %24 = sbr.rel (0) target = $region21
  $region20: #{hcl_forward.5} parent=0 // pred_region
    _
  $region21: #{hcl_forward.5} parent=0 // pred_fallthru
    _
  // Predicated region
  $region22: #{hcl_forward.5} parent=0 // pred_check
    _
  $region23: #{hcl_forward.5} parent=0 // pred_check_branch
    %26 = sbr.rel (0) target = $region25
  $region24: #{hcl_forward.5} parent=0 // pred_region
    _
  $region25: #{hcl_forward.5} parent=0 // pred_fallthru
    _
  // Predicated region
  $region26: #{hcl_forward.5} parent=0 // pred_check
    _
  $region27: #{hcl_forward.5} parent=0 // pred_check_branch
    %28 = sbr.rel (0) target = $region29
  $region28: #{hcl_forward.5} parent=0 // pred_region
    _
  $region29: #{hcl_forward.5} parent=0 // pred_fallthru
    _
  // Predicated region
  $region30: #{hcl_forward.5} parent=0 // pred_check
    _
  $region31: #{hcl_forward.5} parent=0 // pred_check_branch
    %30 = sbr.rel (0) target = $region33
  $region32: #{hcl_forward.5} parent=0 // pred_region
    _
  $region33: #{hcl_forward.5} parent=0 // pred_fallthru
    _
  // Predicated region
  $region34: #{hcl_forward.5} parent=0 // pred_check
    _
  $region35: #{hcl_forward.5} parent=0 // pred_check_branch
    %32 = sbr.rel (0) target = $region37
  $region36: #{hcl_forward.5} parent=0 // pred_region
    _
  $region37: #{hcl_forward.5} parent=0 // pred_fallthru
    _
  // Predicated region
  $region38: #{hcl_forward.5} parent=0 // pred_check
    _
  $region39: #{hcl_forward.5} parent=0 // pred_check_branch
    %34 = sbr.rel (0) target = $region41
  $region40: #{hcl_forward.5} parent=0 // pred_region
    _
  $region41: #{hcl_forward.5} parent=0 // pred_fallthru
    _
  %v35 = vld [vmem:[%s0] sm:$0x3f]
  %v36 = vld [vmem:[%s1] sm:$0xff]
  %v37 = vld [vmem:[%s1 + $0x8] sm:$0xff]
  %v38 = vld [vmem:[%s1 + $0x10] sm:$0xff]
  %v39 = vld [vmem:[%s1 + $0x18] sm:$0xff]
  %v40 = vld [vmem:[%s1 + $0x20] sm:$0xff]
  %v41 = vld [vmem:[%s1 + $0x28] sm:$0xff]
  %v42 = vld [vmem:[%s2] sm:$0x1]
  %v44 = vperm.slane %v42, 0
  %vm46 = vcmask 392192
  %v48 = vsel %vm46, %v35, 0
  %50 = vmatpush.msra.mxu0 0.0
  %51 = vmatpush.msra.mxu0 0.0
  %52 = vmatpush.msra.mxu0 0.0
  %53 = vmatpush.msra.mxu0 0.0
  %54 = vmatpush.msra.mxu0 0.0
  %55 = vmatpush.msra.mxu0 0.0
  %56 = vmatpush.msra.mxu0 0.0
  %57 = vmatpush.msra.mxu0 0.0
  %58 = vmatpush.msra.mxu0 0.0
  %59 = vmatpush.msra.mxu0 0.0
  %60 = vmatpush.msra.mxu0 %v41
  %61 = vmatpush.msra.mxu0 %v40
  %62 = vmatpush.msra.mxu0 %v39
  %63 = vmatpush.msra.mxu0 %v38
  %64 = vmatpush.msra.mxu0 %v37
  %65 = vmatpush.msra.mxu0 %v36
  %66 = vmatmul.f32.gmra.mxu0 %v48
  %v67 = vpop.f32.mrf.mxu0
  %v68 = vadd.f32 %v44, %v67
  %69 = vdwg.mxu0
  %v70 = vmax.f32 %v68, 0.0
  %v71 = vld [vmem:[%s3] sm:$0xff]
  %v72 = vld [vmem:[%s3 + $0x8] sm:$0xf]
  %vm73 = vcmask 97280
  %v75 = vsel %vm73, %v70, 0
  %vm77 = vcmask 1043456
  %v79 = vsel %vm77, %v72, 0
  %81 = vmatpush.msra.mxu0 0.0
  %82 = vmatpush.msra.mxu0 0.0
  %83 = vmatpush.msra.mxu0 0.0
  %84 = vmatpush.msra.mxu0 0.0
  %85 = vmatpush.msra.mxu0 0.0
  %86 = vmatpush.msra.mxu0 0.0
  %87 = vmatpush.msra.mxu0 0.0
  %88 = vmatpush.msra.mxu0 0.0
  %89 = vmatpush.msra.mxu0 0.0
  %90 = vmatpush.msra.mxu0 0.0
  %91 = vmatpush.msra.mxu0 0.0
  %92 = vmatpush.msra.mxu0 0.0
  %93 = vmatpush.msra.mxu0 0.0
  %94 = vmatpush.msra.mxu0 0.0
  %95 = vmatpush.msra.mxu0 %v79
  %96 = vmatpush.msra.mxu0 %v71
  %97 = vmatmul.f32.gmra.mxu0 %v75
  %v98 = vpop.f32.mrf.mxu0
  %v99 = vadd.f32 0.0, %v98
  %100 = vdwg.mxu0
  %v101 = vld [vmem:[%s6] sm:$0xff]
  %v102 = vld [vmem:[%s6 + $0x8] sm:$0xf]
  %v103 = vld [vmem:[%s7] sm:$0x1]
  %v105 = vsel %vm73, 0.0, 0
  %v108 = vsel %vm77, %v102, 0
  %110 = vmatpush.msra.mxu0 0.0
  %111 = vmatpush.msra.mxu0 0.0
  %112 = vmatpush.msra.mxu0 0.0
  %113 = vmatpush.msra.mxu0 0.0
  %114 = vmatpush.msra.mxu0 0.0
  %115 = vmatpush.msra.mxu0 0.0
  %116 = vmatpush.msra.mxu0 0.0
  %117 = vmatpush.msra.mxu0 0.0
  %118 = vmatpush.msra.mxu0 0.0
  %119 = vmatpush.msra.mxu0 0.0
  %120 = vmatpush.msra.mxu0 0.0
  %121 = vmatpush.msra.mxu0 0.0
  %122 = vmatpush.msra.mxu0 0.0
  %123 = vmatpush.msra.mxu0 0.0
  %124 = vmatpush.msra.mxu0 %v108
  %125 = vmatpush.msra.mxu0 %v101
  %126 = vmatmul.f32.gmra.mxu0 %v105
  %v127 = vpop.f32.mrf.mxu0
  %v128 = vadd.f32 0.0, %v127
  %129 = vdwg.mxu0
  %v131 = vrot.slane %v128, 5
  %132 = vrot.lane.b32.xlu0 %v131, 48
  %v133 = vpop.permute.xlu0 %132
  %v135 = vadd.f32 %v99, %v133
  %v137 = vperm.slane %v103, 0
  %138 = vrot.lane.b32.xlu0 %v137, 48
  %v139 = vpop.permute.xlu0 %138
  %v141 = vadd.f32 %v135, %v139
  %v142 = vsub.f32 0.0, %v141
  %v143 = vmul.f32 %v142, 1.442695
  %v144 = vpow.pop %v143
  %v145 = vadd.f32 %v144, 1.0
  %v146 = vrcp.pop %v145
  %v147 = vmul.f32 %v145, %v146
  %v148 = vsub.f32 1.0, %v147
  %v149 = vmul.f32 %v146, %v148
  %v150 = vadd.f32 %v146, %v149
  %vm151 = vweird.f32 %v145
  %vm152 = vweird.f32 %v146
  %vm153 = vmor %vm151, %vm152
  %v154 = vsel %vm153, %v146, %v150
  %v155 = vand.u32 2147483647, %v145
  %vm156 = vcmp.eq.f32.partialorder %v155, 8.507059e+37
  %v157 = vand.u32 %v145, 2147483648
  %v158 = vor.u32 1.1754944e-38, %v157
  %v159 = vsel %vm156, %v158, %v154
  %v160 = vmul.f32 1.0, %v159
  %v161 = vtanh.pop %v141
  %v162 = vmul.f32 %v160, 0.0
  %164 = vrot.lane.b32.xlu0 %v161, 104
  %v165 = vpop.permute.xlu0 %164
  %v167 = vmul.f32 %v160, %v165
  %169 = vrot.lane.b32.xlu0 %v167, 12
  %v170 = vpop.permute.xlu0 %169
  %v172 = vadd.f32 %v162, %v170
  %v173 = vtanh.pop %v172
  %175 = vrot.lane.b32.xlu0 %v173, 24
  %v176 = vpop.permute.xlu0 %175
  %v178 = vmul.f32 %v160, %v176
  %vm179 = vcmask 784035
  %v180 = vsel %vm179, %v178, -inf
  %v181 = vrot.slane %v180, 4
  %v182 = vmax.f32 %v180, %v181
  %v183 = vrot.slane %v182, 2
  %v184 = vmax.f32 %v182, %v183
  %v185 = vrot.slane %v184, 1
  %v186 = vmax.f32 %v184, %v185
  %v188 = vrot.slane %v178, 3
  %189 = vrot.lane.b32.xlu0 %v188, 44
  %v190 = vpop.permute.xlu0 %189
  %v191 = vsel %vm73, %v190, 0
  %193 = vmatpush.msra.mxu0 0.0
  %194 = vmatpush.msra.mxu0 0.0
  %195 = vmatpush.msra.mxu0 0.0
  %196 = vmatpush.msra.mxu0 0.0
  %197 = vmatpush.msra.mxu0 0.0
  %198 = vmatpush.msra.mxu0 0.0
  %199 = vmatpush.msra.mxu0 0.0
  %200 = vmatpush.msra.mxu0 0.0
  %201 = vmatpush.msra.mxu0 0.0
  %202 = vmatpush.msra.mxu0 0.0
  %203 = vmatpush.msra.mxu0 0.0
  %204 = vmatpush.msra.mxu0 0.0
  %205 = vmatpush.msra.mxu0 0.0
  %206 = vmatpush.msra.mxu0 0.0
  %207 = vmatpush.msra.mxu0 %v108
  %208 = vmatpush.msra.mxu0 %v101
  %209 = vmatmul.f32.gmra.mxu0 %v191
  %v210 = vpop.f32.mrf.mxu0
  %v211 = vadd.f32 0.0, %v210
  %212 = vdwg.mxu0
  %214 = vrot.lane.b32.xlu0 %v211, 48
  %v215 = vpop.permute.xlu0 %214
  %v217 = vadd.f32 %v99, %v215
  %v218 = vadd.f32 %v217, %v139
  %v219 = vsub.f32 0.0, %v218
  %v220 = vmul.f32 %v219, 1.442695
  %v221 = vpow.pop %v220
  %v222 = vadd.f32 %v221, 1.0
  %v223 = vrcp.pop %v222
  %v224 = vmul.f32 %v222, %v223
  %v225 = vsub.f32 1.0, %v224
  %v226 = vmul.f32 %v223, %v225
  %v227 = vadd.f32 %v223, %v226
  %vm228 = vweird.f32 %v222
  %vm229 = vweird.f32 %v223
  %vm230 = vmor %vm228, %vm229
  %v231 = vsel %vm230, %v223, %v227
  %v232 = vand.u32 2147483647, %v222
  %vm233 = vcmp.eq.f32.partialorder %v232, 8.507059e+37
  %v234 = vand.u32 %v222, 2147483648
  %v235 = vor.u32 1.1754944e-38, %v234
  %v236 = vsel %vm233, %v235, %v231
  %v237 = vmul.f32 1.0, %v236
  %v238 = vtanh.pop %v218
  %v240 = vrot.slane %v172, 3
  %v242 = vmul.f32 %v237, %v240
  %244 = vrot.lane.b32.xlu0 %v238, 104
  %v245 = vpop.permute.xlu0 %244
  %v247 = vmul.f32 %v237, %v245
  %249 = vrot.lane.b32.xlu0 %v247, 12
  %v250 = vpop.permute.xlu0 %249
  %v252 = vadd.f32 %v242, %v250
  %v253 = vtanh.pop %v252
  %255 = vrot.lane.b32.xlu0 %v253, 24
  %v256 = vpop.permute.xlu0 %255
  %v258 = vmul.f32 %v237, %v256
  %vm259 = vcmask 780960
  %v260 = vsel %vm259, %v258, -inf
  %v261 = vrot.slane %v260, 4
  %v262 = vmax.f32 %v260, %v261
  %v263 = vrot.slane %v262, 2
  %v264 = vmax.f32 %v262, %v263
  %v265 = vrot.slane %v264, 1
  %v266 = vmax.f32 %v264, %v265
  %v267 = vld [vmem:[%s4] sm:$0xff]
  %v268 = vld [vmem:[%s4 + $0x8] sm:$0xf]
  %v269 = vld [vmem:[%s5] sm:$0x1]
  %v271 = vsel %vm77, %v268, 0
  %273 = vmatpush.msra.mxu0 0.0
  %274 = vmatpush.msra.mxu0 0.0
  %275 = vmatpush.msra.mxu0 0.0
  %276 = vmatpush.msra.mxu0 0.0
  %277 = vmatpush.msra.mxu0 0.0
  %278 = vmatpush.msra.mxu0 0.0
  %279 = vmatpush.msra.mxu0 0.0
  %280 = vmatpush.msra.mxu0 0.0
  %281 = vmatpush.msra.mxu0 0.0
  %282 = vmatpush.msra.mxu0 0.0
  %283 = vmatpush.msra.mxu0 0.0
  %284 = vmatpush.msra.mxu0 0.0
  %285 = vmatpush.msra.mxu0 0.0
  %286 = vmatpush.msra.mxu0 0.0
  %287 = vmatpush.msra.mxu0 %v271
  %288 = vmatpush.msra.mxu0 %v267
  %289 = vmatmul.f32.gmra.mxu0 %v105
  %v290 = vpop.f32.mrf.mxu0
  %v291 = vadd.f32 0.0, %v290
  %292 = vdwg.mxu0
  %v293 = vadd.f32 %v99, %v291
  %v295 = vperm.slane %v269, 0
  %v297 = vadd.f32 %v293, %v295
  %v298 = vsub.f32 0.0, %v297
  %v299 = vmul.f32 %v298, 1.442695
  %v300 = vpow.pop %v299
  %v301 = vadd.f32 %v300, 1.0
  %v302 = vrcp.pop %v301
  %v303 = vmul.f32 %v301, %v302
  %v304 = vsub.f32 1.0, %v303
  %v305 = vmul.f32 %v302, %v304
  %v306 = vadd.f32 %v302, %v305
  %vm307 = vweird.f32 %v301
  %vm308 = vweird.f32 %v302
  %vm309 = vmor %vm307, %vm308
  %v310 = vsel %vm309, %v302, %v306
  %v311 = vand.u32 2147483647, %v301
  %vm312 = vcmp.eq.f32.partialorder %v311, 8.507059e+37
  %v313 = vand.u32 %v301, 2147483648
  %v314 = vor.u32 1.1754944e-38, %v313
  %v315 = vsel %vm312, %v314, %v310
  %v316 = vmul.f32 1.0, %v315
  %v317 = vtanh.pop %v297
  %v318 = vmul.f32 %v316, 0.0
  %320 = vrot.lane.b32.xlu0 %v317, 104
  %v321 = vpop.permute.xlu0 %320
  %v323 = vmul.f32 %v316, %v321
  %325 = vrot.lane.b32.xlu0 %v323, 12
  %v326 = vpop.permute.xlu0 %325
  %v328 = vadd.f32 %v318, %v326
  %v329 = vtanh.pop %v328
  %331 = vrot.lane.b32.xlu0 %v329, 24
  %v332 = vpop.permute.xlu0 %331
  %v334 = vmul.f32 %v316, %v332
  %vm335 = vcmask 387360
  %v336 = vsel %vm335, %v334, -inf
  %v337 = vrot.slane %v336, 4
  %v338 = vmax.f32 %v336, %v337
  %v339 = vrot.slane %v338, 2
  %v340 = vmax.f32 %v338, %v339
  %v341 = vrot.slane %v340, 1
  %v342 = vmax.f32 %v340, %v341
  %344 = vrot.lane.b32.xlu0 %v342, 92
  %v345 = vpop.permute.xlu0 %344
  %348 = vrot.lane.b32.xlu0 %v266, 56
  %v349 = vpop.permute.xlu0 %348
  %v351 = vsel %vm73, %v345, %v349
  %v352 = vtanh.pop %v351
  %354 = vrot.lane.b32.xlu0 %v334, 92
  %v355 = vpop.permute.xlu0 %354
  %v356 = vsel %vm73, %v355, 0
  %358 = vmatpush.msra.mxu0 0.0
  %359 = vmatpush.msra.mxu0 0.0
  %360 = vmatpush.msra.mxu0 0.0
  %361 = vmatpush.msra.mxu0 0.0
  %362 = vmatpush.msra.mxu0 0.0
  %363 = vmatpush.msra.mxu0 0.0
  %364 = vmatpush.msra.mxu0 0.0
  %365 = vmatpush.msra.mxu0 0.0
  %366 = vmatpush.msra.mxu0 0.0
  %367 = vmatpush.msra.mxu0 0.0
  %368 = vmatpush.msra.mxu0 0.0
  %369 = vmatpush.msra.mxu0 0.0
  %370 = vmatpush.msra.mxu0 0.0
  %371 = vmatpush.msra.mxu0 0.0
  %372 = vmatpush.msra.mxu0 %v271
  %373 = vmatpush.msra.mxu0 %v267
  %374 = vmatmul.f32.gmra.mxu0 %v356
  %v375 = vpop.f32.mrf.mxu0
  %v376 = vadd.f32 0.0, %v375
  %377 = vdwg.mxu0
  %v379 = vrot.slane %v376, 5
  %v381 = vadd.f32 %v99, %v379
  %v382 = vadd.f32 %v381, %v295
  %v383 = vsub.f32 0.0, %v382
  %v384 = vmul.f32 %v383, 1.442695
  %v385 = vpow.pop %v384
  %v386 = vadd.f32 %v385, 1.0
  %v387 = vrcp.pop %v386
  %v388 = vmul.f32 %v386, %v387
  %v389 = vsub.f32 1.0, %v388
  %v390 = vmul.f32 %v387, %v389
  %v391 = vadd.f32 %v387, %v390
  %vm392 = vweird.f32 %v386
  %vm393 = vweird.f32 %v387
  %vm394 = vmor %vm392, %vm393
  %v395 = vsel %vm394, %v387, %v391
  %v396 = vand.u32 2147483647, %v386
  %vm397 = vcmp.eq.f32.partialorder %v396, 8.507059e+37
  %v398 = vand.u32 %v386, 2147483648
  %v399 = vor.u32 1.1754944e-38, %v398
  %v400 = vsel %vm397, %v399, %v395
  %v401 = vmul.f32 1.0, %v400
  %v402 = vtanh.pop %v382
  %v404 = vrot.slane %v328, 5
  %v406 = vmul.f32 %v401, %v404
  %408 = vrot.lane.b32.xlu0 %v402, 104
  %v409 = vpop.permute.xlu0 %408
  %v411 = vmul.f32 %v401, %v409
  %413 = vrot.lane.b32.xlu0 %v411, 12
  %v414 = vpop.permute.xlu0 %413
  %v416 = vadd.f32 %v406, %v414
  %v417 = vtanh.pop %v416
  %419 = vrot.lane.b32.xlu0 %v417, 24
  %v420 = vpop.permute.xlu0 %419
  %v422 = vmul.f32 %v401, %v420
  %vm423 = vcmask 390435
  %v424 = vsel %vm423, %v422, -inf
  %v425 = vrot.slane %v424, 4
  %v426 = vmax.f32 %v424, %v425
  %v427 = vrot.slane %v426, 2
  %v428 = vmax.f32 %v426, %v427
  %v429 = vrot.slane %v428, 1
  %v430 = vmax.f32 %v428, %v429
  %432 = vrot.lane.b32.xlu0 %v430, 92
  %v433 = vpop.permute.xlu0 %432
  %436 = vrot.lane.b32.xlu0 %v186, 56
  %v437 = vpop.permute.xlu0 %436
  %v439 = vsel %vm73, %v433, %v437
  %v440 = vtanh.pop %v439
  %v442 = vrot.slane %v440, 7
  %vm444 = vcmask 1040384
  %v445 = vsel %vm444, %v352, %v442
  %v446 = vld [vmem:[%s8] sm:$0xff]
  %v447 = vld [vmem:[%s8 + $0x8] sm:$0xff]
  %v448 = vld [vmem:[%s8 + $0x10] sm:$0xff]
  %v449 = vld [vmem:[%s9] sm:$0x1]
  %v451 = vperm.slane %v449, 0
  %vm453 = vcmask 195584
  %v455 = vsel %vm453, %v445, 0
  %457 = vmatpush.msra.mxu0 0.0
  %458 = vmatpush.msra.mxu0 0.0
  %459 = vmatpush.msra.mxu0 0.0
  %460 = vmatpush.msra.mxu0 0.0
  %461 = vmatpush.msra.mxu0 0.0
  %462 = vmatpush.msra.mxu0 0.0
  %463 = vmatpush.msra.mxu0 0.0
  %464 = vmatpush.msra.mxu0 0.0
  %465 = vmatpush.msra.mxu0 0.0
  %466 = vmatpush.msra.mxu0 0.0
  %467 = vmatpush.msra.mxu0 0.0
  %468 = vmatpush.msra.mxu0 0.0
  %469 = vmatpush.msra.mxu0 0.0
  %470 = vmatpush.msra.mxu0 %v448
  %471 = vmatpush.msra.mxu0 %v447
  %472 = vmatpush.msra.mxu0 %v446
  %473 = vmatmul.f32.gmra.mxu0 %v455
  %v474 = vpop.f32.mrf.mxu0
  %v475 = vadd.f32 %v451, %v474
  %476 = vdwg.mxu0
  %vm477 = vcmask 33792
  %478 = vst.msk [vmem:[%s10] sm:$0x3] %vm477, %v475
  // Predicated region
  $region42: #{hcl_forward.5} parent=0 // pred_check
    _
  $region43: #{hcl_forward.5} parent=0 // pred_check_branch
    %480 = sbr.rel (0) target = $region45
  $region44: #{hcl_forward.5} parent=0 // pred_region
    _
  $region45: #{hcl_forward.5} parent=0 // pred_fallthru
    _
  // Predicated region
  $region46: #{hcl_forward.5} parent=0 // pred_check
    _
  $region47: #{hcl_forward.5} parent=0 // pred_check_branch
    %482 = sbr.rel (0) target = $region49
  $region48: #{hcl_forward.5} parent=0 // pred_region
    _
  $region49: #{hcl_forward.5} parent=0 // pred_fallthru
    _

// kernel: hcl_forward.4
$region0: #{hcl_forward.4}
  #allocation0 [shape = 'u32[]', space=smem, size = 0x4, offset = 0x4, fixed_abs, tag = 'smem constant byte address 0x4 - core index']
  #allocation1 [shape = 'u32[72,128]{1,0:T(1,128)}', space=vmem, size = 0x9000, scoped, tag = 'internal scratch']
  %s0 = inlined_call_operand.vmem [shape: f32[60,80], index: 0, kind: input, shape index: {}]
  %s1 = inlined_call_operand.vmem [shape: f32[80,16], index: 1, kind: input, shape index: {}]
  %s2 = inlined_call_operand.vmem [shape: f32[1,16], index: 2, kind: input, shape index: {}]
  %s3 = inlined_call_operand.vmem [shape: f32[16,64], index: 3, kind: input, shape index: {}]
  %s4 = inlined_call_operand.vmem [shape: f32[8,32], index: 4, kind: input, shape index: {}]
  %s5 = inlined_call_operand.vmem [shape: f32[1,32], index: 5, kind: input, shape index: {}]
  %s6 = inlined_call_operand.vmem [shape: f32[8,32], index: 6, kind: input, shape index: {}]
  %s7 = inlined_call_operand.vmem [shape: f32[1,32], index: 7, kind: input, shape index: {}]
  %s8 = inlined_call_operand.vmem [shape: f32[6,16], index: 8, kind: output, shape index: {}]
  %s9 = sld [smem:[#allocation0]]
  $region42: #{hcl_forward.4} parent=0
    _
  %s11 = ssub.s32 1, %s9
  %s12 = scalar_select 0, %s11, %s9
  // Predicated region
  $region2: #{hcl_forward.4} parent=0 // pred_check
    _
  $region3: #{hcl_forward.4} parent=0 // pred_check_branch
    %14 = sbr.rel (0) target = $region5
  $region4: #{hcl_forward.4} parent=0 // pred_region
    _
  $region5: #{hcl_forward.4} parent=0 // pred_fallthru
    _
  // Predicated region
  $region6: #{hcl_forward.4} parent=0 // pred_check
    _
  $region7: #{hcl_forward.4} parent=0 // pred_check_branch
    %16 = sbr.rel (0) target = $region9
  $region8: #{hcl_forward.4} parent=0 // pred_region
    _
  $region9: #{hcl_forward.4} parent=0 // pred_fallthru
    _
  // Predicated region
  $region10: #{hcl_forward.4} parent=0 // pred_check
    _
  $region11: #{hcl_forward.4} parent=0 // pred_check_branch
    %18 = sbr.rel (0) target = $region13
  $region12: #{hcl_forward.4} parent=0 // pred_region
    _
  $region13: #{hcl_forward.4} parent=0 // pred_fallthru
    _
  // Predicated region
  $region14: #{hcl_forward.4} parent=0 // pred_check
    _
  $region15: #{hcl_forward.4} parent=0 // pred_check_branch
    %20 = sbr.rel (0) target = $region17
  $region16: #{hcl_forward.4} parent=0 // pred_region
    _
  $region17: #{hcl_forward.4} parent=0 // pred_fallthru
    _
  // Predicated region
  $region18: #{hcl_forward.4} parent=0 // pred_check
    _
  $region19: #{hcl_forward.4} parent=0 // pred_check_branch
    %22 = sbr.rel (0) target = $region21
  $region20: #{hcl_forward.4} parent=0 // pred_region
    _
  $region21: #{hcl_forward.4} parent=0 // pred_fallthru
    _
  // Predicated region
  $region22: #{hcl_forward.4} parent=0 // pred_check
    _
  $region23: #{hcl_forward.4} parent=0 // pred_check_branch
    %24 = sbr.rel (0) target = $region25
  $region24: #{hcl_forward.4} parent=0 // pred_region
    _
  $region25: #{hcl_forward.4} parent=0 // pred_fallthru
    _
  // Predicated region
  $region26: #{hcl_forward.4} parent=0 // pred_check
    _
  $region27: #{hcl_forward.4} parent=0 // pred_check_branch
    %26 = sbr.rel (0) target = $region29
  $region28: #{hcl_forward.4} parent=0 // pred_region
    _
  $region29: #{hcl_forward.4} parent=0 // pred_fallthru
    _
  // Predicated region
  $region30: #{hcl_forward.4} parent=0 // pred_check
    _
  $region31: #{hcl_forward.4} parent=0 // pred_check_branch
    %28 = sbr.rel (0) target = $region33
  $region32: #{hcl_forward.4} parent=0 // pred_region
    _
  $region33: #{hcl_forward.4} parent=0 // pred_fallthru
    _
  %v29 = vld [vmem:[%s0] sm:$0xff]
  %v30 = vld [vmem:[%s0 + $0x8] sm:$0xff]
  %v31 = vld [vmem:[%s0 + $0x10] sm:$0xff]
  %v32 = vld [vmem:[%s0 + $0x18] sm:$0xff]
  %v33 = vld [vmem:[%s0 + $0x20] sm:$0xff]
  %v34 = vld [vmem:[%s0 + $0x28] sm:$0xff]
  %v35 = vld [vmem:[%s0 + $0x30] sm:$0xff]
  %v36 = vld [vmem:[%s0 + $0x38] sm:$0xf]
  %v37 = vld [vmem:[%s1] sm:$0xff]
  %v38 = vld [vmem:[%s1 + $0x8] sm:$0xff]
  %v39 = vld [vmem:[%s1 + $0x10] sm:$0xff]
  %v40 = vld [vmem:[%s1 + $0x18] sm:$0xff]
  %v41 = vld [vmem:[%s1 + $0x20] sm:$0xff]
  %v42 = vld [vmem:[%s1 + $0x28] sm:$0xff]
  %v43 = vld [vmem:[%s1 + $0x30] sm:$0xff]
  %v44 = vld [vmem:[%s1 + $0x38] sm:$0xff]
  %v45 = vld [vmem:[%s1 + $0x40] sm:$0xff]
  %v46 = vld [vmem:[%s1 + $0x48] sm:$0xff]
  %v47 = vld [vmem:[%s2] sm:$0x1]
  %v49 = vperm.slane %v47, 0
  %vm51 = vcmask 654336
  %v53 = vsel %vm51, %v29, 0
  %v56 = vsel %vm51, %v30, 0
  %v59 = vsel %vm51, %v31, 0
  %v62 = vsel %vm51, %v32, 0
  %v65 = vsel %vm51, %v33, 0
  %v68 = vsel %vm51, %v34, 0
  %v71 = vsel %vm51, %v35, 0
  %v74 = vsel %vm51, %v36, 0
  %76 = vmatpush.msra.mxu0 0.0
  %77 = vmatpush.msra.mxu0 0.0
  %78 = vmatpush.msra.mxu0 0.0
  %79 = vmatpush.msra.mxu0 0.0
  %80 = vmatpush.msra.mxu0 0.0
  %81 = vmatpush.msra.mxu0 0.0
  %82 = vmatpush.msra.mxu0 %v46
  %83 = vmatpush.msra.mxu0 %v45
  %84 = vmatpush.msra.mxu0 %v44
  %85 = vmatpush.msra.mxu0 %v43
  %86 = vmatpush.msra.mxu0 %v42
  %87 = vmatpush.msra.mxu0 %v41
  %88 = vmatpush.msra.mxu0 %v40
  %89 = vmatpush.msra.mxu0 %v39
  %90 = vmatpush.msra.mxu0 %v38
  %91 = vmatpush.msra.mxu0 %v37
  %92 = vmatmul.f32.gmra.mxu0 %v53
  %v93 = vpop.f32.mrf.mxu0
  %v94 = vadd.f32 %v49, %v93
  %95 = vmatmul.f32.gmra.mxu0 %v56
  %v96 = vpop.f32.mrf.mxu0
  %v97 = vadd.f32 %v49, %v96
  %98 = vmatmul.f32.gmra.mxu0 %v59
  %v99 = vpop.f32.mrf.mxu0
  %v100 = vadd.f32 %v49, %v99
  %101 = vmatmul.f32.gmra.mxu0 %v62
  %v102 = vpop.f32.mrf.mxu0
  %v103 = vadd.f32 %v49, %v102
  %104 = vmatmul.f32.gmra.mxu0 %v65
  %v105 = vpop.f32.mrf.mxu0
  %v106 = vadd.f32 %v49, %v105
  %107 = vmatmul.f32.gmra.mxu0 %v68
  %v108 = vpop.f32.mrf.mxu0
  %v109 = vadd.f32 %v49, %v108
  %110 = vmatmul.f32.gmra.mxu0 %v71
  %v111 = vpop.f32.mrf.mxu0
  %v112 = vadd.f32 %v49, %v111
  %113 = vmatmul.f32.gmra.mxu0 %v74
  %v114 = vpop.f32.mrf.mxu0
  %v115 = vadd.f32 %v49, %v114
  %116 = vdwg.mxu0
  %v117 = vmax.f32 %v94, 0.0
  %v118 = vmax.f32 %v97, 0.0
  %v119 = vmax.f32 %v100, 0.0
  %v120 = vmax.f32 %v103, 0.0
  %v121 = vmax.f32 %v106, 0.0
  %v122 = vmax.f32 %v109, 0.0
  %v123 = vmax.f32 %v112, 0.0
  %v124 = vmax.f32 %v115, 0.0
  %v125 = vld [vmem:[%s3] sm:$0xff]
  %v126 = vld [vmem:[%s3 + $0x8] sm:$0xff]
  %vm127 = vcmask 130048
  %v129 = vsel %vm127, %v117, 0
  %v132 = vsel %vm127, %v118, 0
  %v135 = vsel %vm127, %v119, 0
  %v138 = vsel %vm127, %v120, 0
  %v141 = vsel %vm127, %v121, 0
  %v144 = vsel %vm127, %v122, 0
  %v147 = vsel %vm127, %v123, 0
  %v150 = vsel %vm127, %v124, 0
  %152 = vmatpush.msra.mxu0 0.0
  %153 = vmatpush.msra.mxu0 0.0
  %154 = vmatpush.msra.mxu0 0.0
  %155 = vmatpush.msra.mxu0 0.0
  %156 = vmatpush.msra.mxu0 0.0
  %157 = vmatpush.msra.mxu0 0.0
  %158 = vmatpush.msra.mxu0 0.0
  %159 = vmatpush.msra.mxu0 0.0
  %160 = vmatpush.msra.mxu0 0.0
  %161 = vmatpush.msra.mxu0 0.0
  %162 = vmatpush.msra.mxu0 0.0
  %163 = vmatpush.msra.mxu0 0.0
  %164 = vmatpush.msra.mxu0 0.0
  %165 = vmatpush.msra.mxu0 0.0
  %166 = vmatpush.msra.mxu0 %v126
  %167 = vmatpush.msra.mxu0 %v125
  %168 = vmatmul.f32.gmra.mxu0 %v129
  %v169 = vpop.f32.mrf.mxu0
  %v170 = vadd.f32 0.0, %v169
  %171 = vmatmul.f32.gmra.mxu0 %v132
  %v172 = vpop.f32.mrf.mxu0
  %v173 = vadd.f32 0.0, %v172
  %174 = vmatmul.f32.gmra.mxu0 %v135
  %v175 = vpop.f32.mrf.mxu0
  %v176 = vadd.f32 0.0, %v175
  %177 = vmatmul.f32.gmra.mxu0 %v138
  %v178 = vpop.f32.mrf.mxu0
  %v179 = vadd.f32 0.0, %v178
  %180 = vmatmul.f32.gmra.mxu0 %v141
  %v181 = vpop.f32.mrf.mxu0
  %v182 = vadd.f32 0.0, %v181
  %183 = vmatmul.f32.gmra.mxu0 %v144
  %v184 = vpop.f32.mrf.mxu0
  %v185 = vadd.f32 0.0, %v184
  %186 = vmatmul.f32.gmra.mxu0 %v147
  %v187 = vpop.f32.mrf.mxu0
  %v188 = vadd.f32 0.0, %v187
  %189 = vmatmul.f32.gmra.mxu0 %v150
  %v190 = vpop.f32.mrf.mxu0
  %v191 = vadd.f32 0.0, %v190
  %192 = vdwg.mxu0
  %v193 = vld [vmem:[%s6] sm:$0xff]
  %v194 = vld [vmem:[%s7] sm:$0x1]
  %vm195 = vcmask 64512
  %v197 = vsel %vm195, 0.0, 0
  %199 = vmatpush.msra.mxu0 0.0
  %200 = vmatpush.msra.mxu0 0.0
  %201 = vmatpush.msra.mxu0 0.0
  %202 = vmatpush.msra.mxu0 0.0
  %203 = vmatpush.msra.mxu0 0.0
  %204 = vmatpush.msra.mxu0 0.0
  %205 = vmatpush.msra.mxu0 0.0
  %206 = vmatpush.msra.mxu0 0.0
  %207 = vmatpush.msra.mxu0 0.0
  %208 = vmatpush.msra.mxu0 0.0
  %209 = vmatpush.msra.mxu0 0.0
  %210 = vmatpush.msra.mxu0 0.0
  %211 = vmatpush.msra.mxu0 0.0
  %212 = vmatpush.msra.mxu0 0.0
  %213 = vmatpush.msra.mxu0 0.0
  %214 = vmatpush.msra.mxu0 %v193
  %215 = vmatmul.f32.gmra.mxu0 %v197
  %v216 = vpop.f32.mrf.mxu0
  %v217 = vadd.f32 0.0, %v216
  %218 = vmatmul.f32.gmra.mxu0 %v197
  %v219 = vpop.f32.mrf.mxu0
  %v220 = vadd.f32 0.0, %v219
  %221 = vmatmul.f32.gmra.mxu0 %v197
  %v222 = vpop.f32.mrf.mxu0
  %v223 = vadd.f32 0.0, %v222
  %224 = vmatmul.f32.gmra.mxu0 %v197
  %v225 = vpop.f32.mrf.mxu0
  %v226 = vadd.f32 0.0, %v225
  %227 = vdwg.mxu0
  %vm232 = vcmask 1045504
  %v233 = vrot.slane %v217, 2
  %v234 = vrot.slane %v220, 2
  %v235 = vsel %vm232, %v233, %v234
  %v236 = vrot.slane %v223, 2
  %v237 = vsel %vm232, %v234, %v236
  %v238 = vrot.slane %v226, 2
  %v239 = vsel %vm232, %v236, %v238
  %240 = vrot.lane.b32.xlu0 %v233, 32
  %v241 = vpop.permute.xlu0 %240
  %242 = vrot.lane.b32.xlu0 %v235, 32
  %v243 = vpop.permute.xlu0 %242
  %244 = vrot.lane.b32.xlu0 %v237, 32
  %v245 = vpop.permute.xlu0 %244
  %246 = vrot.lane.b32.xlu0 %v239, 32
  %v247 = vpop.permute.xlu0 %246
  %248 = vrot.lane.b32.xlu0 %v238, 32
  %v249 = vpop.permute.xlu0 %248
  %v255 = vadd.f32 %v179, %v241
  %v256 = vadd.f32 %v182, %v243
  %v257 = vadd.f32 %v185, %v245
  %v258 = vadd.f32 %v188, %v247
  %v259 = vadd.f32 %v191, %v249
  %v261 = vperm.slane %v194, 0
  %262 = vrot.lane.b32.xlu0 %v261, 32
  %v263 = vpop.permute.xlu0 %262
  %v265 = vadd.f32 %v255, %v263
  %v266 = vadd.f32 %v256, %v263
  %v267 = vadd.f32 %v257, %v263
  %v268 = vadd.f32 %v258, %v263
  %v269 = vadd.f32 %v259, %v263
  %v270 = vsub.f32 0.0, %v265
  %v271 = vsub.f32 0.0, %v266
  %v272 = vsub.f32 0.0, %v267
  %v273 = vsub.f32 0.0, %v268
  %v274 = vsub.f32 0.0, %v269
  %v275 = vmul.f32 %v270, 1.442695
  %v276 = vpow.pop %v275
  %v277 = vmul.f32 %v271, 1.442695
  %v278 = vpow.pop %v277
  %v279 = vmul.f32 %v272, 1.442695
  %v280 = vpow.pop %v279
  %v281 = vmul.f32 %v273, 1.442695
  %v282 = vpow.pop %v281
  %v283 = vmul.f32 %v274, 1.442695
  %v284 = vpow.pop %v283
  %v285 = vadd.f32 %v276, 1.0
  %v286 = vadd.f32 %v278, 1.0
  %v287 = vadd.f32 %v280, 1.0
  %v288 = vadd.f32 %v282, 1.0
  %v289 = vadd.f32 %v284, 1.0
  %v290 = vrcp.pop %v285
  %v291 = vmul.f32 %v285, %v290
  %v292 = vsub.f32 1.0, %v291
  %v293 = vmul.f32 %v290, %v292
  %v294 = vadd.f32 %v290, %v293
  %vm295 = vweird.f32 %v285
  %vm296 = vweird.f32 %v290
  %vm297 = vmor %vm295, %vm296
  %v298 = vsel %vm297, %v290, %v294
  %v299 = vand.u32 2147483647, %v285
  %vm300 = vcmp.eq.f32.partialorder %v299, 8.507059e+37
  %v301 = vand.u32 %v285, 2147483648
  %v302 = vor.u32 1.1754944e-38, %v301
  %v303 = vsel %vm300, %v302, %v298
  %v304 = vmul.f32 1.0, %v303
  %v305 = vrcp.pop %v286
  %v306 = vmul.f32 %v286, %v305
  %v307 = vsub.f32 1.0, %v306
  %v308 = vmul.f32 %v305, %v307
  %v309 = vadd.f32 %v305, %v308
  %vm310 = vweird.f32 %v286
  %vm311 = vweird.f32 %v305
  %vm312 = vmor %vm310, %vm311
  %v313 = vsel %vm312, %v305, %v309
  %v314 = vand.u32 2147483647, %v286
  %vm315 = vcmp.eq.f32.partialorder %v314, 8.507059e+37
  %v316 = vand.u32 %v286, 2147483648
  %v317 = vor.u32 1.1754944e-38, %v316
  %v318 = vsel %vm315, %v317, %v313
  %v319 = vmul.f32 1.0, %v318
  %v320 = vrcp.pop %v287
  %v321 = vmul.f32 %v287, %v320
  %v322 = vsub.f32 1.0, %v321
  %v323 = vmul.f32 %v320, %v322
  %v324 = vadd.f32 %v320, %v323
  %vm325 = vweird.f32 %v287
  %vm326 = vweird.f32 %v320
  %vm327 = vmor %vm325, %vm326
  %v328 = vsel %vm327, %v320, %v324
  %v329 = vand.u32 2147483647, %v287
  %vm330 = vcmp.eq.f32.partialorder %v329, 8.507059e+37
  %v331 = vand.u32 %v287, 2147483648
  %v332 = vor.u32 1.1754944e-38, %v331
  %v333 = vsel %vm330, %v332, %v328
  %v334 = vmul.f32 1.0, %v333
  %v335 = vrcp.pop %v288
  %v336 = vmul.f32 %v288, %v335
  %v337 = vsub.f32 1.0, %v336
  %v338 = vmul.f32 %v335, %v337
  %v339 = vadd.f32 %v335, %v338
  %vm340 = vweird.f32 %v288
  %vm341 = vweird.f32 %v335
  %vm342 = vmor %vm340, %vm341
  %v343 = vsel %vm342, %v335, %v339
  %v344 = vand.u32 2147483647, %v288
  %vm345 = vcmp.eq.f32.partialorder %v344, 8.507059e+37
  %v346 = vand.u32 %v288, 2147483648
  %v347 = vor.u32 1.1754944e-38, %v346
  %v348 = vsel %vm345, %v347, %v343
  %v349 = vmul.f32 1.0, %v348
  %v350 = vrcp.pop %v289
  %v351 = vmul.f32 %v289, %v350
  %v352 = vsub.f32 1.0, %v351
  %v353 = vmul.f32 %v350, %v352
  %v354 = vadd.f32 %v350, %v353
  %vm355 = vweird.f32 %v289
  %vm356 = vweird.f32 %v350
  %vm357 = vmor %vm355, %vm356
  %v358 = vsel %vm357, %v350, %v354
  %v359 = vand.u32 2147483647, %v289
  %vm360 = vcmp.eq.f32.partialorder %v359, 8.507059e+37
  %v361 = vand.u32 %v289, 2147483648
  %v362 = vor.u32 1.1754944e-38, %v361
  %v363 = vsel %vm360, %v362, %v358
  %v364 = vmul.f32 1.0, %v363
  %v365 = vtanh.pop %v265
  %v366 = vtanh.pop %v266
  %v367 = vtanh.pop %v267
  %v368 = vtanh.pop %v268
  %v369 = vtanh.pop %v269
  %v370 = vmul.f32 %v304, 0.0
  %v371 = vmul.f32 %v319, 0.0
  %v372 = vmul.f32 %v334, 0.0
  %v373 = vmul.f32 %v349, 0.0
  %v374 = vmul.f32 %v364, 0.0
  %380 = vrot.lane.b32.xlu0 %v365, 112
  %v381 = vpop.permute.xlu0 %380
  %382 = vrot.lane.b32.xlu0 %v366, 112
  %v383 = vpop.permute.xlu0 %382
  %384 = vrot.lane.b32.xlu0 %v367, 112
  %v385 = vpop.permute.xlu0 %384
  %386 = vrot.lane.b32.xlu0 %v368, 112
  %v387 = vpop.permute.xlu0 %386
  %388 = vrot.lane.b32.xlu0 %v369, 112
  %v389 = vpop.permute.xlu0 %388
  %v395 = vmul.f32 %v304, %v381
  %v396 = vmul.f32 %v319, %v383
  %v397 = vmul.f32 %v334, %v385
  %v398 = vmul.f32 %v349, %v387
  %v399 = vmul.f32 %v364, %v389
  %405 = vrot.lane.b32.xlu0 %v395, 8
  %v406 = vpop.permute.xlu0 %405
  %407 = vrot.lane.b32.xlu0 %v396, 8
  %v408 = vpop.permute.xlu0 %407
  %409 = vrot.lane.b32.xlu0 %v397, 8
  %v410 = vpop.permute.xlu0 %409
  %411 = vrot.lane.b32.xlu0 %v398, 8
  %v412 = vpop.permute.xlu0 %411
  %413 = vrot.lane.b32.xlu0 %v399, 8
  %v414 = vpop.permute.xlu0 %413
  %v420 = vadd.f32 %v370, %v406
  %v421 = vadd.f32 %v371, %v408
  %v422 = vadd.f32 %v372, %v410
  %v423 = vadd.f32 %v373, %v412
  %v424 = vadd.f32 %v374, %v414
  %v425 = vtanh.pop %v420
  %v426 = vtanh.pop %v421
  %v427 = vtanh.pop %v422
  %v428 = vtanh.pop %v423
  %v429 = vtanh.pop %v424
  %435 = vrot.lane.b32.xlu0 %v425, 16
  %v436 = vpop.permute.xlu0 %435
  %437 = vrot.lane.b32.xlu0 %v426, 16
  %v438 = vpop.permute.xlu0 %437
  %439 = vrot.lane.b32.xlu0 %v427, 16
  %v440 = vpop.permute.xlu0 %439
  %441 = vrot.lane.b32.xlu0 %v428, 16
  %v442 = vpop.permute.xlu0 %441
  %443 = vrot.lane.b32.xlu0 %v429, 16
  %v444 = vpop.permute.xlu0 %443
  %v450 = vmul.f32 %v304, %v436
  %v451 = vmul.f32 %v319, %v438
  %v452 = vmul.f32 %v334, %v440
  %v453 = vmul.f32 %v349, %v442
  %v454 = vmul.f32 %v364, %v444
  %vm455 = vcmask 523718
  %v456 = vsel %vm455, %v450, -inf
  %vm457 = vcmask 523712
  %v458 = vsel %vm457, %v451, -inf
  %v459 = vmax.f32 %v456, %v458
  %v460 = vrot.slane %v459, 4
  %v461 = vmax.f32 %v459, %v460
  %v462 = vrot.slane %v461, 2
  %v463 = vmax.f32 %v461, %v462
  %v464 = vrot.slane %v463, 1
  %v465 = vmax.f32 %v463, %v464
  %v466 = vsel %vm457, %v452, -inf
  %vm467 = vcmask 517568
  %v468 = vsel %vm467, %v453, -inf
  %v469 = vmax.f32 %v466, %v468
  %v470 = vrot.slane %v469, 4
  %v471 = vmax.f32 %v469, %v470
  %v472 = vrot.slane %v471, 2
  %v473 = vmax.f32 %v471, %v472
  %v474 = vrot.slane %v473, 1
  %v475 = vmax.f32 %v473, %v474
  %vm476 = vcmask 523714
  %v477 = vsel %vm476, %v453, -inf
  %vm478 = vcmask 519616
  %v479 = vsel %vm478, %v454, -inf
  %v480 = vmax.f32 %v477, %v479
  %v481 = vrot.slane %v480, 4
  %v482 = vmax.f32 %v480, %v481
  %v483 = vrot.slane %v482, 2
  %v484 = vmax.f32 %v482, %v483
  %v485 = vrot.slane %v484, 1
  %v486 = vmax.f32 %v484, %v485
  %vm487 = vcmask 1040384
  %v488 = vsel %vm487, %v465, %v475
  %vm489 = vcmask 1041408
  %v490 = vsel %vm489, %v488, %v486
  %v496 = vrot.slane %v450, 6
  %v497 = vrot.slane %v451, 6
  %v498 = vsel %vm489, %v496, %v497
  %v499 = vrot.slane %v452, 6
  %v500 = vsel %vm489, %v497, %v499
  %v501 = vrot.slane %v453, 6
  %v502 = vsel %vm489, %v499, %v501
  %v503 = vrot.slane %v454, 6
  %v504 = vsel %vm489, %v501, %v503
  %505 = vrot.lane.b32.xlu0 %v498, 72
  %v506 = vpop.permute.xlu0 %505
  %507 = vrot.lane.b32.xlu0 %v500, 72
  %v508 = vpop.permute.xlu0 %507
  %509 = vrot.lane.b32.xlu0 %v502, 72
  %v510 = vpop.permute.xlu0 %509
  %511 = vrot.lane.b32.xlu0 %v504, 72
  %v512 = vpop.permute.xlu0 %511
  %v513 = vsel %vm195, %v506, 0
  %v515 = vsel %vm195, %v508, 0
  %v517 = vsel %vm195, %v510, 0
  %v519 = vsel %vm195, %v512, 0
  %521 = vmatpush.msra.mxu0 0.0
  %522 = vmatpush.msra.mxu0 0.0
  %523 = vmatpush.msra.mxu0 0.0
  %524 = vmatpush.msra.mxu0 0.0
  %525 = vmatpush.msra.mxu0 0.0
  %526 = vmatpush.msra.mxu0 0.0
  %527 = vmatpush.msra.mxu0 0.0
  %528 = vmatpush.msra.mxu0 0.0
  %529 = vmatpush.msra.mxu0 0.0
  %530 = vmatpush.msra.mxu0 0.0
  %531 = vmatpush.msra.mxu0 0.0
  %532 = vmatpush.msra.mxu0 0.0
  %533 = vmatpush.msra.mxu0 0.0
  %534 = vmatpush.msra.mxu0 0.0
  %535 = vmatpush.msra.mxu0 0.0
  %536 = vmatpush.msra.mxu0 %v193
  %537 = vmatmul.f32.gmra.mxu0 %v513
  %v538 = vpop.f32.mrf.mxu0
  %v539 = vadd.f32 0.0, %v538
  %540 = vmatmul.f32.gmra.mxu0 %v515
  %v541 = vpop.f32.mrf.mxu0
  %v542 = vadd.f32 0.0, %v541
  %543 = vmatmul.f32.gmra.mxu0 %v517
  %v544 = vpop.f32.mrf.mxu0
  %v545 = vadd.f32 0.0, %v544
  %546 = vmatmul.f32.gmra.mxu0 %v519
  %v547 = vpop.f32.mrf.mxu0
  %v548 = vadd.f32 0.0, %v547
  %549 = vdwg.mxu0
  %554 = vrot.lane.b32.xlu0 %v539, 32
  %v555 = vpop.permute.xlu0 %554
  %556 = vrot.lane.b32.xlu0 %v542, 32
  %v557 = vpop.permute.xlu0 %556
  %558 = vrot.lane.b32.xlu0 %v545, 32
  %v559 = vpop.permute.xlu0 %558
  %560 = vrot.lane.b32.xlu0 %v548, 32
  %v561 = vpop.permute.xlu0 %560
  %v566 = vadd.f32 %v170, %v555
  %v567 = vadd.f32 %v173, %v557
  %v568 = vadd.f32 %v176, %v559
  %v569 = vadd.f32 %v179, %v561
  %v570 = vadd.f32 %v566, %v263
  %v571 = vadd.f32 %v567, %v263
  %v572 = vadd.f32 %v568, %v263
  %v573 = vadd.f32 %v569, %v263
  %v574 = vsub.f32 0.0, %v570
  %v575 = vsub.f32 0.0, %v571
  %v576 = vsub.f32 0.0, %v572
  %v577 = vsub.f32 0.0, %v573
  %v578 = vmul.f32 %v574, 1.442695
  %v579 = vpow.pop %v578
  %v580 = vmul.f32 %v575, 1.442695
  %v581 = vpow.pop %v580
  %v582 = vmul.f32 %v576, 1.442695
  %v583 = vpow.pop %v582
  %v584 = vmul.f32 %v577, 1.442695
  %v585 = vpow.pop %v584
  %v586 = vadd.f32 %v579, 1.0
  %v587 = vadd.f32 %v581, 1.0
  %v588 = vadd.f32 %v583, 1.0
  %v589 = vadd.f32 %v585, 1.0
  %v590 = vrcp.pop %v586
  %v591 = vmul.f32 %v586, %v590
  %v592 = vsub.f32 1.0, %v591
  %v593 = vmul.f32 %v590, %v592
  %v594 = vadd.f32 %v590, %v593
  %vm595 = vweird.f32 %v586
  %vm596 = vweird.f32 %v590
  %vm597 = vmor %vm595, %vm596
  %v598 = vsel %vm597, %v590, %v594
  %v599 = vand.u32 2147483647, %v586
  %vm600 = vcmp.eq.f32.partialorder %v599, 8.507059e+37
  %v601 = vand.u32 %v586, 2147483648
  %v602 = vor.u32 1.1754944e-38, %v601
  %v603 = vsel %vm600, %v602, %v598
  %v604 = vmul.f32 1.0, %v603
  %v605 = vrcp.pop %v587
  %v606 = vmul.f32 %v587, %v605
  %v607 = vsub.f32 1.0, %v606
  %v608 = vmul.f32 %v605, %v607
  %v609 = vadd.f32 %v605, %v608
  %vm610 = vweird.f32 %v587
  %vm611 = vweird.f32 %v605
  %vm612 = vmor %vm610, %vm611
  %v613 = vsel %vm612, %v605, %v609
  %v614 = vand.u32 2147483647, %v587
  %vm615 = vcmp.eq.f32.partialorder %v614, 8.507059e+37
  %v616 = vand.u32 %v587, 2147483648
  %v617 = vor.u32 1.1754944e-38, %v616
  %v618 = vsel %vm615, %v617, %v613
  %v619 = vmul.f32 1.0, %v618
  %v620 = vrcp.pop %v588
  %v621 = vmul.f32 %v588, %v620
  %v622 = vsub.f32 1.0, %v621
  %v623 = vmul.f32 %v620, %v622
  %v624 = vadd.f32 %v620, %v623
  %vm625 = vweird.f32 %v588
  %vm626 = vweird.f32 %v620
  %vm627 = vmor %vm625, %vm626
  %v628 = vsel %vm627, %v620, %v624
  %v629 = vand.u32 2147483647, %v588
  %vm630 = vcmp.eq.f32.partialorder %v629, 8.507059e+37
  %v631 = vand.u32 %v588, 2147483648
  %v632 = vor.u32 1.1754944e-38, %v631
  %v633 = vsel %vm630, %v632, %v628
  %v634 = vmul.f32 1.0, %v633
  %v635 = vrcp.pop %v589
  %v636 = vmul.f32 %v589, %v635
  %v637 = vsub.f32 1.0, %v636
  %v638 = vmul.f32 %v635, %v637
  %v639 = vadd.f32 %v635, %v638
  %vm640 = vweird.f32 %v589
  %vm641 = vweird.f32 %v635
  %vm642 = vmor %vm640, %vm641
  %v643 = vsel %vm642, %v635, %v639
  %v644 = vand.u32 2147483647, %v589
  %vm645 = vcmp.eq.f32.partialorder %v644, 8.507059e+37
  %v646 = vand.u32 %v589, 2147483648
  %v647 = vor.u32 1.1754944e-38, %v646
  %v648 = vsel %vm645, %v647, %v643
  %v649 = vmul.f32 1.0, %v648
  %v650 = vtanh.pop %v570
  %v651 = vtanh.pop %v571
  %v652 = vtanh.pop %v572
  %v653 = vtanh.pop %v573
  %v659 = vrot.slane %v420, 6
  %v660 = vrot.slane %v421, 6
  %v661 = vsel %vm489, %v659, %v660
  %v662 = vrot.slane %v422, 6
  %v663 = vsel %vm489, %v660, %v662
  %v664 = vrot.slane %v423, 6
  %v665 = vsel %vm489, %v662, %v664
  %v666 = vrot.slane %v424, 6
  %v667 = vsel %vm489, %v664, %v666
  %v672 = vmul.f32 %v604, %v661
  %v673 = vmul.f32 %v619, %v663
  %v674 = vmul.f32 %v634, %v665
  %v675 = vmul.f32 %v649, %v667
  %680 = vrot.lane.b32.xlu0 %v650, 112
  %v681 = vpop.permute.xlu0 %680
  %682 = vrot.lane.b32.xlu0 %v651, 112
  %v683 = vpop.permute.xlu0 %682
  %684 = vrot.lane.b32.xlu0 %v652, 112
  %v685 = vpop.permute.xlu0 %684
  %686 = vrot.lane.b32.xlu0 %v653, 112
  %v687 = vpop.permute.xlu0 %686
  %v692 = vmul.f32 %v604, %v681
  %v693 = vmul.f32 %v619, %v683
  %v694 = vmul.f32 %v634, %v685
  %v695 = vmul.f32 %v649, %v687
  %700 = vrot.lane.b32.xlu0 %v692, 8
  %v701 = vpop.permute.xlu0 %700
  %702 = vrot.lane.b32.xlu0 %v693, 8
  %v703 = vpop.permute.xlu0 %702
  %704 = vrot.lane.b32.xlu0 %v694, 8
  %v705 = vpop.permute.xlu0 %704
  %706 = vrot.lane.b32.xlu0 %v695, 8
  %v707 = vpop.permute.xlu0 %706
  %v712 = vadd.f32 %v672, %v701
  %v713 = vadd.f32 %v673, %v703
  %v714 = vadd.f32 %v674, %v705
  %v715 = vadd.f32 %v675, %v707
  %v716 = vtanh.pop %v712
  %v717 = vtanh.pop %v713
  %v718 = vtanh.pop %v714
  %v719 = vtanh.pop %v715
  %724 = vrot.lane.b32.xlu0 %v716, 16
  %v725 = vpop.permute.xlu0 %724
  %726 = vrot.lane.b32.xlu0 %v717, 16
  %v727 = vpop.permute.xlu0 %726
  %728 = vrot.lane.b32.xlu0 %v718, 16
  %v729 = vpop.permute.xlu0 %728
  %730 = vrot.lane.b32.xlu0 %v719, 16
  %v731 = vpop.permute.xlu0 %730
  %v736 = vmul.f32 %v604, %v725
  %v737 = vmul.f32 %v619, %v727
  %v738 = vmul.f32 %v634, %v729
  %v739 = vmul.f32 %v649, %v731
  %v740 = vsel %vm457, %v736, -inf
  %v741 = vsel %vm467, %v737, -inf
  %v742 = vmax.f32 %v740, %v741
  %v743 = vrot.slane %v742, 4
  %v744 = vmax.f32 %v742, %v743
  %v745 = vrot.slane %v744, 2
  %v746 = vmax.f32 %v744, %v745
  %v747 = vrot.slane %v746, 1
  %v748 = vmax.f32 %v746, %v747
  %v749 = vsel %vm476, %v737, -inf
  %v750 = vsel %vm478, %v738, -inf
  %v751 = vmax.f32 %v749, %v750
  %v752 = vrot.slane %v751, 4
  %v753 = vmax.f32 %v751, %v752
  %v754 = vrot.slane %v753, 2
  %v755 = vmax.f32 %v753, %v754
  %v756 = vrot.slane %v755, 1
  %v757 = vmax.f32 %v755, %v756
  %vm758 = vcmask 523716
  %v759 = vsel %vm758, %v738, -inf
  %vm760 = vcmask 521664
  %v761 = vsel %vm760, %v739, -inf
  %v762 = vmax.f32 %v759, %v761
  %v763 = vrot.slane %v762, 4
  %v764 = vmax.f32 %v762, %v763
  %v765 = vrot.slane %v764, 2
  %v766 = vmax.f32 %v764, %v765
  %v767 = vrot.slane %v766, 1
  %v768 = vmax.f32 %v766, %v767
  %v769 = vsel %vm487, %v748, %v757
  %v770 = vsel %vm489, %v769, %v768
  %v771 = vld [vmem:[%s4] sm:$0xff]
  %v772 = vld [vmem:[%s5] sm:$0x1]
  %773 = vmatpush.msra.mxu0 0.0
  %774 = vmatpush.msra.mxu0 0.0
  %775 = vmatpush.msra.mxu0 0.0
  %776 = vmatpush.msra.mxu0 0.0
  %777 = vmatpush.msra.mxu0 0.0
  %778 = vmatpush.msra.mxu0 0.0
  %779 = vmatpush.msra.mxu0 0.0
  %780 = vmatpush.msra.mxu0 0.0
  %781 = vmatpush.msra.mxu0 0.0
  %782 = vmatpush.msra.mxu0 0.0
  %783 = vmatpush.msra.mxu0 0.0
  %784 = vmatpush.msra.mxu0 0.0
  %785 = vmatpush.msra.mxu0 0.0
  %786 = vmatpush.msra.mxu0 0.0
  %787 = vmatpush.msra.mxu0 0.0
  %788 = vmatpush.msra.mxu0 %v771
  %789 = vmatmul.f32.gmra.mxu0 %v197
  %v790 = vpop.f32.mrf.mxu0
  %v791 = vadd.f32 0.0, %v790
  %792 = vmatmul.f32.gmra.mxu0 %v197
  %v793 = vpop.f32.mrf.mxu0
  %v794 = vadd.f32 0.0, %v793
  %795 = vmatmul.f32.gmra.mxu0 %v197
  %v796 = vpop.f32.mrf.mxu0
  %v797 = vadd.f32 0.0, %v796
  %798 = vmatmul.f32.gmra.mxu0 %v197
  %v799 = vpop.f32.mrf.mxu0
  %v800 = vadd.f32 0.0, %v799
  %801 = vdwg.mxu0
  %v802 = vadd.f32 %v170, %v791
  %v803 = vadd.f32 %v173, %v794
  %v804 = vadd.f32 %v176, %v797
  %v805 = vadd.f32 %v179, %v800
  %v807 = vperm.slane %v772, 0
  %v809 = vadd.f32 %v802, %v807
  %v810 = vadd.f32 %v803, %v807
  %v811 = vadd.f32 %v804, %v807
  %v812 = vadd.f32 %v805, %v807
  %v813 = vsub.f32 0.0, %v809
  %v814 = vsub.f32 0.0, %v810
  %v815 = vsub.f32 0.0, %v811
  %v816 = vsub.f32 0.0, %v812
  %v817 = vmul.f32 %v813, 1.442695
  %v818 = vpow.pop %v817
  %v819 = vmul.f32 %v814, 1.442695
  %v820 = vpow.pop %v819
  %v821 = vmul.f32 %v815, 1.442695
  %v822 = vpow.pop %v821
  %v823 = vmul.f32 %v816, 1.442695
  %v824 = vpow.pop %v823
  %v825 = vadd.f32 %v818, 1.0
  %v826 = vadd.f32 %v820, 1.0
  %v827 = vadd.f32 %v822, 1.0
  %v828 = vadd.f32 %v824, 1.0
  %v829 = vrcp.pop %v825
  %v830 = vmul.f32 %v825, %v829
  %v831 = vsub.f32 1.0, %v830
  %v832 = vmul.f32 %v829, %v831
  %v833 = vadd.f32 %v829, %v832
  %vm834 = vweird.f32 %v825
  %vm835 = vweird.f32 %v829
  %vm836 = vmor %vm834, %vm835
  %v837 = vsel %vm836, %v829, %v833
  %v838 = vand.u32 2147483647, %v825
  %vm839 = vcmp.eq.f32.partialorder %v838, 8.507059e+37
  %v840 = vand.u32 %v825, 2147483648
  %v841 = vor.u32 1.1754944e-38, %v840
  %v842 = vsel %vm839, %v841, %v837
  %v843 = vmul.f32 1.0, %v842
  %v844 = vrcp.pop %v826
  %v845 = vmul.f32 %v826, %v844
  %v846 = vsub.f32 1.0, %v845
  %v847 = vmul.f32 %v844, %v846
  %v848 = vadd.f32 %v844, %v847
  %vm849 = vweird.f32 %v826
  %vm850 = vweird.f32 %v844
  %vm851 = vmor %vm849, %vm850
  %v852 = vsel %vm851, %v844, %v848
  %v853 = vand.u32 2147483647, %v826
  %vm854 = vcmp.eq.f32.partialorder %v853, 8.507059e+37
  %v855 = vand.u32 %v826, 2147483648
  %v856 = vor.u32 1.1754944e-38, %v855
  %v857 = vsel %vm854, %v856, %v852
  %v858 = vmul.f32 1.0, %v857
  %v859 = vrcp.pop %v827
  %v860 = vmul.f32 %v827, %v859
  %v861 = vsub.f32 1.0, %v860
  %v862 = vmul.f32 %v859, %v861
  %v863 = vadd.f32 %v859, %v862
  %vm864 = vweird.f32 %v827
  %vm865 = vweird.f32 %v859
  %vm866 = vmor %vm864, %vm865
  %v867 = vsel %vm866, %v859, %v863
  %v868 = vand.u32 2147483647, %v827
  %vm869 = vcmp.eq.f32.partialorder %v868, 8.507059e+37
  %v870 = vand.u32 %v827, 2147483648
  %v871 = vor.u32 1.1754944e-38, %v870
  %v872 = vsel %vm869, %v871, %v867
  %v873 = vmul.f32 1.0, %v872
  %v874 = vrcp.pop %v828
  %v875 = vmul.f32 %v828, %v874
  %v876 = vsub.f32 1.0, %v875
  %v877 = vmul.f32 %v874, %v876
  %v878 = vadd.f32 %v874, %v877
  %vm879 = vweird.f32 %v828
  %vm880 = vweird.f32 %v874
  %vm881 = vmor %vm879, %vm880
  %v882 = vsel %vm881, %v874, %v878
  %v883 = vand.u32 2147483647, %v828
  %vm884 = vcmp.eq.f32.partialorder %v883, 8.507059e+37
  %v885 = vand.u32 %v828, 2147483648
  %v886 = vor.u32 1.1754944e-38, %v885
  %v887 = vsel %vm884, %v886, %v882
  %v888 = vmul.f32 1.0, %v887
  %v889 = vtanh.pop %v809
  %v890 = vtanh.pop %v810
  %v891 = vtanh.pop %v811
  %v892 = vtanh.pop %v812
  %v893 = vmul.f32 %v843, 0.0
  %v894 = vmul.f32 %v858, 0.0
  %v895 = vmul.f32 %v873, 0.0
  %v896 = vmul.f32 %v888, 0.0
  %901 = vrot.lane.b32.xlu0 %v889, 112
  %v902 = vpop.permute.xlu0 %901
  %903 = vrot.lane.b32.xlu0 %v890, 112
  %v904 = vpop.permute.xlu0 %903
  %905 = vrot.lane.b32.xlu0 %v891, 112
  %v906 = vpop.permute.xlu0 %905
  %907 = vrot.lane.b32.xlu0 %v892, 112
  %v908 = vpop.permute.xlu0 %907
  %v913 = vmul.f32 %v843, %v902
  %v914 = vmul.f32 %v858, %v904
  %v915 = vmul.f32 %v873, %v906
  %v916 = vmul.f32 %v888, %v908
  %921 = vrot.lane.b32.xlu0 %v913, 8
  %v922 = vpop.permute.xlu0 %921
  %923 = vrot.lane.b32.xlu0 %v914, 8
  %v924 = vpop.permute.xlu0 %923
  %925 = vrot.lane.b32.xlu0 %v915, 8
  %v926 = vpop.permute.xlu0 %925
  %927 = vrot.lane.b32.xlu0 %v916, 8
  %v928 = vpop.permute.xlu0 %927
  %v933 = vadd.f32 %v893, %v922
  %v934 = vadd.f32 %v894, %v924
  %v935 = vadd.f32 %v895, %v926
  %v936 = vadd.f32 %v896, %v928
  %v937 = vtanh.pop %v933
  %v938 = vtanh.pop %v934
  %v939 = vtanh.pop %v935
  %v940 = vtanh.pop %v936
  %945 = vrot.lane.b32.xlu0 %v937, 16
  %v946 = vpop.permute.xlu0 %945
  %947 = vrot.lane.b32.xlu0 %v938, 16
  %v948 = vpop.permute.xlu0 %947
  %949 = vrot.lane.b32.xlu0 %v939, 16
  %v950 = vpop.permute.xlu0 %949
  %951 = vrot.lane.b32.xlu0 %v940, 16
  %v952 = vpop.permute.xlu0 %951
  %v957 = vmul.f32 %v843, %v946
  %v958 = vmul.f32 %v858, %v948
  %v959 = vmul.f32 %v873, %v950
  %v960 = vmul.f32 %v888, %v952
  %vm961 = vcmask 261312
  %v962 = vsel %vm961, %v957, -inf
  %vm963 = vcmask 255168
  %v964 = vsel %vm963, %v958, -inf
  %v965 = vmax.f32 %v962, %v964
  %v966 = vrot.slane %v965, 4
  %v967 = vmax.f32 %v965, %v966
  %v968 = vrot.slane %v967, 2
  %v969 = vmax.f32 %v967, %v968
  %v970 = vrot.slane %v969, 1
  %v971 = vmax.f32 %v969, %v970
  %vm972 = vcmask 261314
  %v973 = vsel %vm972, %v958, -inf
  %vm974 = vcmask 257216
  %v975 = vsel %vm974, %v959, -inf
  %v976 = vmax.f32 %v973, %v975
  %v977 = vrot.slane %v976, 4
  %v978 = vmax.f32 %v976, %v977
  %v979 = vrot.slane %v978, 2
  %v980 = vmax.f32 %v978, %v979
  %v981 = vrot.slane %v980, 1
  %v982 = vmax.f32 %v980, %v981
  %vm983 = vcmask 261316
  %v984 = vsel %vm983, %v959, -inf
  %vm985 = vcmask 259264
  %v986 = vsel %vm985, %v960, -inf
  %v987 = vmax.f32 %v984, %v986
  %v988 = vrot.slane %v987, 4
  %v989 = vmax.f32 %v987, %v988
  %v990 = vrot.slane %v989, 2
  %v991 = vmax.f32 %v989, %v990
  %v992 = vrot.slane %v991, 1
  %v993 = vmax.f32 %v991, %v992
  %v994 = vsel %vm487, %v971, %v982
  %v995 = vsel %vm489, %v994, %v993
  %997 = vrot.lane.b32.xlu0 %v995, 104
  %v998 = vpop.permute.xlu0 %997
  %1001 = vrot.lane.b32.xlu0 %v770, 80
  %v1002 = vpop.permute.xlu0 %1001
  %v1004 = vsel %vm195, %v998, %v1002
  %v1005 = vtanh.pop %v1004
  %1010 = vrot.lane.b32.xlu0 %v957, 104
  %v1011 = vpop.permute.xlu0 %1010
  %1012 = vrot.lane.b32.xlu0 %v958, 104
  %v1013 = vpop.permute.xlu0 %1012
  %1014 = vrot.lane.b32.xlu0 %v959, 104
  %v1015 = vpop.permute.xlu0 %1014
  %1016 = vrot.lane.b32.xlu0 %v960, 104
  %v1017 = vpop.permute.xlu0 %1016
  %v1018 = vsel %vm195, %v1011, 0
  %v1020 = vsel %vm195, %v1013, 0
  %v1022 = vsel %vm195, %v1015, 0
  %v1024 = vsel %vm195, %v1017, 0
  %1026 = vmatpush.msra.mxu0 0.0
  %1027 = vmatpush.msra.mxu0 0.0
  %1028 = vmatpush.msra.mxu0 0.0
  %1029 = vmatpush.msra.mxu0 0.0
  %1030 = vmatpush.msra.mxu0 0.0
  %1031 = vmatpush.msra.mxu0 0.0
  %1032 = vmatpush.msra.mxu0 0.0
  %1033 = vmatpush.msra.mxu0 0.0
  %1034 = vmatpush.msra.mxu0 0.0
  %1035 = vmatpush.msra.mxu0 0.0
  %1036 = vmatpush.msra.mxu0 0.0
  %1037 = vmatpush.msra.mxu0 0.0
  %1038 = vmatpush.msra.mxu0 0.0
  %1039 = vmatpush.msra.mxu0 0.0
  %1040 = vmatpush.msra.mxu0 0.0
  %1041 = vmatpush.msra.mxu0 %v771
  %1042 = vmatmul.f32.gmra.mxu0 %v1018
  %v1043 = vpop.f32.mrf.mxu0
  %v1044 = vadd.f32 0.0, %v1043
  %1045 = vmatmul.f32.gmra.mxu0 %v1020
  %v1046 = vpop.f32.mrf.mxu0
  %v1047 = vadd.f32 0.0, %v1046
  %1048 = vmatmul.f32.gmra.mxu0 %v1022
  %v1049 = vpop.f32.mrf.mxu0
  %v1050 = vadd.f32 0.0, %v1049
  %1051 = vmatmul.f32.gmra.mxu0 %v1024
  %v1052 = vpop.f32.mrf.mxu0
  %v1053 = vadd.f32 0.0, %v1052
  %1054 = vdwg.mxu0
  %v1059 = vrot.slane %v1044, 2
  %v1060 = vrot.slane %v1047, 2
  %v1061 = vsel %vm232, %v1059, %v1060
  %v1062 = vrot.slane %v1050, 2
  %v1063 = vsel %vm232, %v1060, %v1062
  %v1064 = vrot.slane %v1053, 2
  %v1065 = vsel %vm232, %v1062, %v1064
  %v1071 = vadd.f32 %v179, %v1059
  %v1072 = vadd.f32 %v182, %v1061
  %v1073 = vadd.f32 %v185, %v1063
  %v1074 = vadd.f32 %v188, %v1065
  %v1075 = vadd.f32 %v191, %v1064
  %v1076 = vadd.f32 %v1071, %v807
  %v1077 = vadd.f32 %v1072, %v807
  %v1078 = vadd.f32 %v1073, %v807
  %v1079 = vadd.f32 %v1074, %v807
  %v1080 = vadd.f32 %v1075, %v807
  %v1081 = vsub.f32 0.0, %v1076
  %v1082 = vsub.f32 0.0, %v1077
  %v1083 = vsub.f32 0.0, %v1078
  %v1084 = vsub.f32 0.0, %v1079
  %v1085 = vsub.f32 0.0, %v1080
  %v1086 = vmul.f32 %v1081, 1.442695
  %v1087 = vpow.pop %v1086
  %v1088 = vmul.f32 %v1082, 1.442695
  %v1089 = vpow.pop %v1088
  %v1090 = vmul.f32 %v1083, 1.442695
  %v1091 = vpow.pop %v1090
  %v1092 = vmul.f32 %v1084, 1.442695
  %v1093 = vpow.pop %v1092
  %v1094 = vmul.f32 %v1085, 1.442695
  %v1095 = vpow.pop %v1094
  %v1096 = vadd.f32 %v1087, 1.0
  %v1097 = vadd.f32 %v1089, 1.0
  %v1098 = vadd.f32 %v1091, 1.0
  %v1099 = vadd.f32 %v1093, 1.0
  %v1100 = vadd.f32 %v1095, 1.0
  %v1101 = vrcp.pop %v1096
  %v1102 = vmul.f32 %v1096, %v1101
  %v1103 = vsub.f32 1.0, %v1102
  %v1104 = vmul.f32 %v1101, %v1103
  %v1105 = vadd.f32 %v1101, %v1104
  %vm1106 = vweird.f32 %v1096
  %vm1107 = vweird.f32 %v1101
  %vm1108 = vmor %vm1106, %vm1107
  %v1109 = vsel %vm1108, %v1101, %v1105
  %v1110 = vand.u32 2147483647, %v1096
  %vm1111 = vcmp.eq.f32.partialorder %v1110, 8.507059e+37
  %v1112 = vand.u32 %v1096, 2147483648
  %v1113 = vor.u32 1.1754944e-38, %v1112
  %v1114 = vsel %vm1111, %v1113, %v1109
  %v1115 = vmul.f32 1.0, %v1114
  %v1116 = vrcp.pop %v1097
  %v1117 = vmul.f32 %v1097, %v1116
  %v1118 = vsub.f32 1.0, %v1117
  %v1119 = vmul.f32 %v1116, %v1118
  %v1120 = vadd.f32 %v1116, %v1119
  %vm1121 = vweird.f32 %v1097
  %vm1122 = vweird.f32 %v1116
  %vm1123 = vmor %vm1121, %vm1122
  %v1124 = vsel %vm1123, %v1116, %v1120
  %v1125 = vand.u32 2147483647, %v1097
  %vm1126 = vcmp.eq.f32.partialorder %v1125, 8.507059e+37
  %v1127 = vand.u32 %v1097, 2147483648
  %v1128 = vor.u32 1.1754944e-38, %v1127
  %v1129 = vsel %vm1126, %v1128, %v1124
  %v1130 = vmul.f32 1.0, %v1129
  %v1131 = vrcp.pop %v1098
  %v1132 = vmul.f32 %v1098, %v1131
  %v1133 = vsub.f32 1.0, %v1132
  %v1134 = vmul.f32 %v1131, %v1133
  %v1135 = vadd.f32 %v1131, %v1134
  %vm1136 = vweird.f32 %v1098
  %vm1137 = vweird.f32 %v1131
  %vm1138 = vmor %vm1136, %vm1137
  %v1139 = vsel %vm1138, %v1131, %v1135
  %v1140 = vand.u32 2147483647, %v1098
  %vm1141 = vcmp.eq.f32.partialorder %v1140, 8.507059e+37
  %v1142 = vand.u32 %v1098, 2147483648
  %v1143 = vor.u32 1.1754944e-38, %v1142
  %v1144 = vsel %vm1141, %v1143, %v1139
  %v1145 = vmul.f32 1.0, %v1144
  %v1146 = vrcp.pop %v1099
  %v1147 = vmul.f32 %v1099, %v1146
  %v1148 = vsub.f32 1.0, %v1147
  %v1149 = vmul.f32 %v1146, %v1148
  %v1150 = vadd.f32 %v1146, %v1149
  %vm1151 = vweird.f32 %v1099
  %vm1152 = vweird.f32 %v1146
  %vm1153 = vmor %vm1151, %vm1152
  %v1154 = vsel %vm1153, %v1146, %v1150
  %v1155 = vand.u32 2147483647, %v1099
  %vm1156 = vcmp.eq.f32.partialorder %v1155, 8.507059e+37
  %v1157 = vand.u32 %v1099, 2147483648
  %v1158 = vor.u32 1.1754944e-38, %v1157
  %v1159 = vsel %vm1156, %v1158, %v1154
  %v1160 = vmul.f32 1.0, %v1159
  %v1161 = vrcp.pop %v1100
  %v1162 = vmul.f32 %v1100, %v1161
  %v1163 = vsub.f32 1.0, %v1162
  %v1164 = vmul.f32 %v1161, %v1163
  %v1165 = vadd.f32 %v1161, %v1164
  %vm1166 = vweird.f32 %v1100
  %vm1167 = vweird.f32 %v1161
  %vm1168 = vmor %vm1166, %vm1167
  %v1169 = vsel %vm1168, %v1161, %v1165
  %v1170 = vand.u32 2147483647, %v1100
  %vm1171 = vcmp.eq.f32.partialorder %v1170, 8.507059e+37
  %v1172 = vand.u32 %v1100, 2147483648
  %v1173 = vor.u32 1.1754944e-38, %v1172
  %v1174 = vsel %vm1171, %v1173, %v1169
  %v1175 = vmul.f32 1.0, %v1174
  %v1176 = vtanh.pop %v1076
  %v1177 = vtanh.pop %v1077
  %v1178 = vtanh.pop %v1078
  %v1179 = vtanh.pop %v1079
  %v1180 = vtanh.pop %v1080
  %v1185 = vrot.slane %v933, 2
  %v1186 = vrot.slane %v934, 2
  %v1187 = vsel %vm232, %v1185, %v1186
  %v1188 = vrot.slane %v935, 2
  %v1189 = vsel %vm232, %v1186, %v1188
  %v1190 = vrot.slane %v936, 2
  %v1191 = vsel %vm232, %v1188, %v1190
  %v1197 = vmul.f32 %v1115, %v1185
  %v1198 = vmul.f32 %v1130, %v1187
  %v1199 = vmul.f32 %v1145, %v1189
  %v1200 = vmul.f32 %v1160, %v1191
  %v1201 = vmul.f32 %v1175, %v1190
  %1207 = vrot.lane.b32.xlu0 %v1176, 112
  %v1208 = vpop.permute.xlu0 %1207
  %1209 = vrot.lane.b32.xlu0 %v1177, 112
  %v1210 = vpop.permute.xlu0 %1209
  %1211 = vrot.lane.b32.xlu0 %v1178, 112
  %v1212 = vpop.permute.xlu0 %1211
  %1213 = vrot.lane.b32.xlu0 %v1179, 112
  %v1214 = vpop.permute.xlu0 %1213
  %1215 = vrot.lane.b32.xlu0 %v1180, 112
  %v1216 = vpop.permute.xlu0 %1215
  %v1222 = vmul.f32 %v1115, %v1208
  %v1223 = vmul.f32 %v1130, %v1210
  %v1224 = vmul.f32 %v1145, %v1212
  %v1225 = vmul.f32 %v1160, %v1214
  %v1226 = vmul.f32 %v1175, %v1216
  %1232 = vrot.lane.b32.xlu0 %v1222, 8
  %v1233 = vpop.permute.xlu0 %1232
  %1234 = vrot.lane.b32.xlu0 %v1223, 8
  %v1235 = vpop.permute.xlu0 %1234
  %1236 = vrot.lane.b32.xlu0 %v1224, 8
  %v1237 = vpop.permute.xlu0 %1236
  %1238 = vrot.lane.b32.xlu0 %v1225, 8
  %v1239 = vpop.permute.xlu0 %1238
  %1240 = vrot.lane.b32.xlu0 %v1226, 8
  %v1241 = vpop.permute.xlu0 %1240
  %v1247 = vadd.f32 %v1197, %v1233
  %v1248 = vadd.f32 %v1198, %v1235
  %v1249 = vadd.f32 %v1199, %v1237
  %v1250 = vadd.f32 %v1200, %v1239
  %v1251 = vadd.f32 %v1201, %v1241
  %v1252 = vtanh.pop %v1247
  %v1253 = vtanh.pop %v1248
  %v1254 = vtanh.pop %v1249
  %v1255 = vtanh.pop %v1250
  %v1256 = vtanh.pop %v1251
  %1262 = vrot.lane.b32.xlu0 %v1252, 16
  %v1263 = vpop.permute.xlu0 %1262
  %1264 = vrot.lane.b32.xlu0 %v1253, 16
  %v1265 = vpop.permute.xlu0 %1264
  %1266 = vrot.lane.b32.xlu0 %v1254, 16
  %v1267 = vpop.permute.xlu0 %1266
  %1268 = vrot.lane.b32.xlu0 %v1255, 16
  %v1269 = vpop.permute.xlu0 %1268
  %1270 = vrot.lane.b32.xlu0 %v1256, 16
  %v1271 = vpop.permute.xlu0 %1270
  %v1277 = vmul.f32 %v1115, %v1263
  %v1278 = vmul.f32 %v1130, %v1265
  %v1279 = vmul.f32 %v1145, %v1267
  %v1280 = vmul.f32 %v1160, %v1269
  %v1281 = vmul.f32 %v1175, %v1271
  %vm1282 = vcmask 261318
  %v1283 = vsel %vm1282, %v1277, -inf
  %v1284 = vsel %vm961, %v1278, -inf
  %v1285 = vmax.f32 %v1283, %v1284
  %v1286 = vrot.slane %v1285, 4
  %v1287 = vmax.f32 %v1285, %v1286
  %v1288 = vrot.slane %v1287, 2
  %v1289 = vmax.f32 %v1287, %v1288
  %v1290 = vrot.slane %v1289, 1
  %v1291 = vmax.f32 %v1289, %v1290
  %v1292 = vsel %vm961, %v1279, -inf
  %v1293 = vsel %vm963, %v1280, -inf
  %v1294 = vmax.f32 %v1292, %v1293
  %v1295 = vrot.slane %v1294, 4
  %v1296 = vmax.f32 %v1294, %v1295
  %v1297 = vrot.slane %v1296, 2
  %v1298 = vmax.f32 %v1296, %v1297
  %v1299 = vrot.slane %v1298, 1
  %v1300 = vmax.f32 %v1298, %v1299
  %v1301 = vsel %vm972, %v1280, -inf
  %v1302 = vsel %vm974, %v1281, -inf
  %v1303 = vmax.f32 %v1301, %v1302
  %v1304 = vrot.slane %v1303, 4
  %v1305 = vmax.f32 %v1303, %v1304
  %v1306 = vrot.slane %v1305, 2
  %v1307 = vmax.f32 %v1305, %v1306
  %v1308 = vrot.slane %v1307, 1
  %v1309 = vmax.f32 %v1307, %v1308
  %v1310 = vsel %vm487, %v1291, %v1300
  %v1311 = vsel %vm489, %v1310, %v1309
  %1313 = vrot.lane.b32.xlu0 %v1311, 104
  %v1314 = vpop.permute.xlu0 %1313
  %1317 = vrot.lane.b32.xlu0 %v490, 80
  %v1318 = vpop.permute.xlu0 %1317
  %v1320 = vsel %vm195, %v1314, %v1318
  %v1321 = vtanh.pop %v1320
  %v1323 = vrot.slane %v1321, 5
  %vm1325 = vcmask 1042432
  %v1326 = vsel %vm1325, %v1005, %v1323
  %vm1327 = vcmask 128000
  %1328 = vst.msk [vmem:[%s8] sm:$0x3f] %vm1327, %v1326
  // Predicated region
  $region34: #{hcl_forward.4} parent=0 // pred_check
    _
  $region35: #{hcl_forward.4} parent=0 // pred_check_branch
    %1330 = sbr.rel (0) target = $region37
  $region36: #{hcl_forward.4} parent=0 // pred_region
    _
  $region37: #{hcl_forward.4} parent=0 // pred_fallthru
    _
  // Predicated region
  $region38: #{hcl_forward.4} parent=0 // pred_check
    _
  $region39: #{hcl_forward.4} parent=0 // pred_check_branch
    %1332 = sbr.rel (0) target = $region41
  $region40: #{hcl_forward.4} parent=0 // pred_region
    _
  $region41: #{hcl_forward.4} parent=0 // pred_fallthru
    _

// kernel: hcl_forward.6
$region0: #{hcl_forward.6}
  #allocation0 [shape = 'u32[]', space=smem, size = 0x4, offset = 0x4, fixed_abs, tag = 'smem constant byte address 0x4 - core index']
  #allocation1 [shape = 'u32[72,128]{1,0:T(1,128)}', space=vmem, size = 0x9000, scoped, tag = 'internal scratch']
  %s0 = inlined_call_operand.vmem [shape: f32[24,48], index: 0, kind: input, shape index: {}]
  %s1 = inlined_call_operand.vmem [shape: f32[48,8], index: 1, kind: input, shape index: {}]
  %s2 = inlined_call_operand.vmem [shape: f32[1,8], index: 2, kind: input, shape index: {}]
  %s3 = inlined_call_operand.vmem [shape: f32[8,64], index: 3, kind: input, shape index: {}]
  %s4 = inlined_call_operand.vmem [shape: f32[8,32], index: 4, kind: input, shape index: {}]
  %s5 = inlined_call_operand.vmem [shape: f32[1,32], index: 5, kind: input, shape index: {}]
  %s6 = inlined_call_operand.vmem [shape: f32[8,32], index: 6, kind: input, shape index: {}]
  %s7 = inlined_call_operand.vmem [shape: f32[1,32], index: 7, kind: input, shape index: {}]
  %s8 = inlined_call_operand.vmem [shape: f32[16,5], index: 8, kind: input, shape index: {}]
  %s9 = inlined_call_operand.vmem [shape: f32[1,5], index: 9, kind: input, shape index: {}]
  %s10 = inlined_call_operand.vmem [shape: f32[2,5], index: 10, kind: output, shape index: {}]
  %s11 = sld [smem:[#allocation0]]
  $region50: #{hcl_forward.6} parent=0
    _
  %s13 = ssub.s32 1, %s11
  %s14 = scalar_select 0, %s13, %s11
  // Predicated region
  $region2: #{hcl_forward.6} parent=0 // pred_check
    _
  $region3: #{hcl_forward.6} parent=0 // pred_check_branch
    %16 = sbr.rel (0) target = $region5
  $region4: #{hcl_forward.6} parent=0 // pred_region
    _
  $region5: #{hcl_forward.6} parent=0 // pred_fallthru
    _
  // Predicated region
  $region6: #{hcl_forward.6} parent=0 // pred_check
    _
  $region7: #{hcl_forward.6} parent=0 // pred_check_branch
    %18 = sbr.rel (0) target = $region9
  $region8: #{hcl_forward.6} parent=0 // pred_region
    _
  $region9: #{hcl_forward.6} parent=0 // pred_fallthru
    _
  // Predicated region
  $region10: #{hcl_forward.6} parent=0 // pred_check
    _
  $region11: #{hcl_forward.6} parent=0 // pred_check_branch
    %20 = sbr.rel (0) target = $region13
  $region12: #{hcl_forward.6} parent=0 // pred_region
    _
  $region13: #{hcl_forward.6} parent=0 // pred_fallthru
    _
  // Predicated region
  $region14: #{hcl_forward.6} parent=0 // pred_check
    _
  $region15: #{hcl_forward.6} parent=0 // pred_check_branch
    %22 = sbr.rel (0) target = $region17
  $region16: #{hcl_forward.6} parent=0 // pred_region
    _
  $region17: #{hcl_forward.6} parent=0 // pred_fallthru
    _
  // Predicated region
  $region18: #{hcl_forward.6} parent=0 // pred_check
    _
  $region19: #{hcl_forward.6} parent=0 // pred_check_branch
    %24 = sbr.rel (0) target = $region21
  $region20: #{hcl_forward.6} parent=0 // pred_region
    _
  $region21: #{hcl_forward.6} parent=0 // pred_fallthru
    _
  // Predicated region
  $region22: #{hcl_forward.6} parent=0 // pred_check
    _
  $region23: #{hcl_forward.6} parent=0 // pred_check_branch
    %26 = sbr.rel (0) target = $region25
  $region24: #{hcl_forward.6} parent=0 // pred_region
    _
  $region25: #{hcl_forward.6} parent=0 // pred_fallthru
    _
  // Predicated region
  $region26: #{hcl_forward.6} parent=0 // pred_check
    _
  $region27: #{hcl_forward.6} parent=0 // pred_check_branch
    %28 = sbr.rel (0) target = $region29
  $region28: #{hcl_forward.6} parent=0 // pred_region
    _
  $region29: #{hcl_forward.6} parent=0 // pred_fallthru
    _
  // Predicated region
  $region30: #{hcl_forward.6} parent=0 // pred_check
    _
  $region31: #{hcl_forward.6} parent=0 // pred_check_branch
    %30 = sbr.rel (0) target = $region33
  $region32: #{hcl_forward.6} parent=0 // pred_region
    _
  $region33: #{hcl_forward.6} parent=0 // pred_fallthru
    _
  // Predicated region
  $region34: #{hcl_forward.6} parent=0 // pred_check
    _
  $region35: #{hcl_forward.6} parent=0 // pred_check_branch
    %32 = sbr.rel (0) target = $region37
  $region36: #{hcl_forward.6} parent=0 // pred_region
    _
  $region37: #{hcl_forward.6} parent=0 // pred_fallthru
    _
  // Predicated region
  $region38: #{hcl_forward.6} parent=0 // pred_check
    _
  $region39: #{hcl_forward.6} parent=0 // pred_check_branch
    %34 = sbr.rel (0) target = $region41
  $region40: #{hcl_forward.6} parent=0 // pred_region
    _
  $region41: #{hcl_forward.6} parent=0 // pred_fallthru
    _
  %v35 = vld [vmem:[%s0] sm:$0xff]
  %v36 = vld [vmem:[%s0 + $0x8] sm:$0xff]
  %v37 = vld [vmem:[%s0 + $0x10] sm:$0xff]
  %v38 = vld [vmem:[%s1] sm:$0xff]
  %v39 = vld [vmem:[%s1 + $0x8] sm:$0xff]
  %v40 = vld [vmem:[%s1 + $0x10] sm:$0xff]
  %v41 = vld [vmem:[%s1 + $0x18] sm:$0xff]
  %v42 = vld [vmem:[%s1 + $0x20] sm:$0xff]
  %v43 = vld [vmem:[%s1 + $0x28] sm:$0xff]
  %v44 = vld [vmem:[%s2] sm:$0x1]
  %v46 = vperm.slane %v44, 0
  %vm48 = vcmask 392192
  %v50 = vsel %vm48, %v35, 0
  %v53 = vsel %vm48, %v36, 0
  %v56 = vsel %vm48, %v37, 0
  %58 = vmatpush.msra.mxu0 0.0
  %59 = vmatpush.msra.mxu0 0.0
  %60 = vmatpush.msra.mxu0 0.0
  %61 = vmatpush.msra.mxu0 0.0
  %62 = vmatpush.msra.mxu0 0.0
  %63 = vmatpush.msra.mxu0 0.0
  %64 = vmatpush.msra.mxu0 0.0
  %65 = vmatpush.msra.mxu0 0.0
  %66 = vmatpush.msra.mxu0 0.0
  %67 = vmatpush.msra.mxu0 0.0
  %68 = vmatpush.msra.mxu0 %v43
  %69 = vmatpush.msra.mxu0 %v42
  %70 = vmatpush.msra.mxu0 %v41
  %71 = vmatpush.msra.mxu0 %v40
  %72 = vmatpush.msra.mxu0 %v39
  %73 = vmatpush.msra.mxu0 %v38
  %74 = vmatmul.f32.gmra.mxu0 %v50
  %v75 = vpop.f32.mrf.mxu0
  %v76 = vadd.f32 %v46, %v75
  %77 = vmatmul.f32.gmra.mxu0 %v53
  %v78 = vpop.f32.mrf.mxu0
  %v79 = vadd.f32 %v46, %v78
  %80 = vmatmul.f32.gmra.mxu0 %v56
  %v81 = vpop.f32.mrf.mxu0
  %v82 = vadd.f32 %v46, %v81
  %83 = vdwg.mxu0
  %v84 = vmax.f32 %v76, 0.0
  %v85 = vmax.f32 %v79, 0.0
  %v86 = vmax.f32 %v82, 0.0
  %v87 = vld [vmem:[%s3] sm:$0xff]
  %vm88 = vcmask 64512
  %v90 = vsel %vm88, %v84, 0
  %v93 = vsel %vm88, %v85, 0
  %v96 = vsel %vm88, %v86, 0
  %98 = vmatpush.msra.mxu0 0.0
  %99 = vmatpush.msra.mxu0 0.0
  %100 = vmatpush.msra.mxu0 0.0
  %101 = vmatpush.msra.mxu0 0.0
  %102 = vmatpush.msra.mxu0 0.0
  %103 = vmatpush.msra.mxu0 0.0
  %104 = vmatpush.msra.mxu0 0.0
  %105 = vmatpush.msra.mxu0 0.0
  %106 = vmatpush.msra.mxu0 0.0
  %107 = vmatpush.msra.mxu0 0.0
  %108 = vmatpush.msra.mxu0 0.0
  %109 = vmatpush.msra.mxu0 0.0
  %110 = vmatpush.msra.mxu0 0.0
  %111 = vmatpush.msra.mxu0 0.0
  %112 = vmatpush.msra.mxu0 0.0
  %113 = vmatpush.msra.mxu0 %v87
  %114 = vmatmul.f32.gmra.mxu0 %v90
  %v115 = vpop.f32.mrf.mxu0
  %v116 = vadd.f32 0.0, %v115
  %117 = vmatmul.f32.gmra.mxu0 %v93
  %v118 = vpop.f32.mrf.mxu0
  %v119 = vadd.f32 0.0, %v118
  %120 = vmatmul.f32.gmra.mxu0 %v96
  %v121 = vpop.f32.mrf.mxu0
  %v122 = vadd.f32 0.0, %v121
  %123 = vdwg.mxu0
  %v124 = vld [vmem:[%s6] sm:$0xff]
  %v125 = vld [vmem:[%s7] sm:$0x1]
  %v127 = vsel %vm88, 0.0, 0
  %129 = vmatpush.msra.mxu0 0.0
  %130 = vmatpush.msra.mxu0 0.0
  %131 = vmatpush.msra.mxu0 0.0
  %132 = vmatpush.msra.mxu0 0.0
  %133 = vmatpush.msra.mxu0 0.0
  %134 = vmatpush.msra.mxu0 0.0
  %135 = vmatpush.msra.mxu0 0.0
  %136 = vmatpush.msra.mxu0 0.0
  %137 = vmatpush.msra.mxu0 0.0
  %138 = vmatpush.msra.mxu0 0.0
  %139 = vmatpush.msra.mxu0 0.0
  %140 = vmatpush.msra.mxu0 0.0
  %141 = vmatpush.msra.mxu0 0.0
  %142 = vmatpush.msra.mxu0 0.0
  %143 = vmatpush.msra.mxu0 0.0
  %144 = vmatpush.msra.mxu0 %v124
  %145 = vmatmul.f32.gmra.mxu0 %v127
  %v146 = vpop.f32.mrf.mxu0
  %v147 = vadd.f32 0.0, %v146
  %148 = vmatmul.f32.gmra.mxu0 %v127
  %v149 = vpop.f32.mrf.mxu0
  %v150 = vadd.f32 0.0, %v149
  %151 = vdwg.mxu0
  %vm154 = vcmask 1043456
  %v155 = vrot.slane %v147, 4
  %v156 = vrot.slane %v150, 4
  %v157 = vsel %vm154, %v155, %v156
  %158 = vrot.lane.b32.xlu0 %v155, 32
  %v159 = vpop.permute.xlu0 %158
  %160 = vrot.lane.b32.xlu0 %v157, 32
  %v161 = vpop.permute.xlu0 %160
  %v164 = vadd.f32 %v119, %v159
  %v165 = vadd.f32 %v122, %v161
  %v167 = vperm.slane %v125, 0
  %168 = vrot.lane.b32.xlu0 %v167, 32
  %v169 = vpop.permute.xlu0 %168
  %v171 = vadd.f32 %v164, %v169
  %v172 = vadd.f32 %v165, %v169
  %v173 = vsub.f32 0.0, %v171
  %v174 = vsub.f32 0.0, %v172
  %v175 = vmul.f32 %v173, 1.442695
  %v176 = vpow.pop %v175
  %v177 = vmul.f32 %v174, 1.442695
  %v178 = vpow.pop %v177
  %v179 = vadd.f32 %v176, 1.0
  %v180 = vadd.f32 %v178, 1.0
  %v181 = vrcp.pop %v179
  %v182 = vmul.f32 %v179, %v181
  %v183 = vsub.f32 1.0, %v182
  %v184 = vmul.f32 %v181, %v183
  %v185 = vadd.f32 %v181, %v184
  %vm186 = vweird.f32 %v179
  %vm187 = vweird.f32 %v181
  %vm188 = vmor %vm186, %vm187
  %v189 = vsel %vm188, %v181, %v185
  %v190 = vand.u32 2147483647, %v179
  %vm191 = vcmp.eq.f32.partialorder %v190, 8.507059e+37
  %v192 = vand.u32 %v179, 2147483648
  %v193 = vor.u32 1.1754944e-38, %v192
  %v194 = vsel %vm191, %v193, %v189
  %v195 = vmul.f32 1.0, %v194
  %v196 = vrcp.pop %v180
  %v197 = vmul.f32 %v180, %v196
  %v198 = vsub.f32 1.0, %v197
  %v199 = vmul.f32 %v196, %v198
  %v200 = vadd.f32 %v196, %v199
  %vm201 = vweird.f32 %v180
  %vm202 = vweird.f32 %v196
  %vm203 = vmor %vm201, %vm202
  %v204 = vsel %vm203, %v196, %v200
  %v205 = vand.u32 2147483647, %v180
  %vm206 = vcmp.eq.f32.partialorder %v205, 8.507059e+37
  %v207 = vand.u32 %v180, 2147483648
  %v208 = vor.u32 1.1754944e-38, %v207
  %v209 = vsel %vm206, %v208, %v204
  %v210 = vmul.f32 1.0, %v209
  %v211 = vtanh.pop %v171
  %v212 = vtanh.pop %v172
  %v213 = vmul.f32 %v195, 0.0
  %v214 = vmul.f32 %v210, 0.0
  %217 = vrot.lane.b32.xlu0 %v211, 112
  %v218 = vpop.permute.xlu0 %217
  %219 = vrot.lane.b32.xlu0 %v212, 112
  %v220 = vpop.permute.xlu0 %219
  %v223 = vmul.f32 %v195, %v218
  %v224 = vmul.f32 %v210, %v220
  %227 = vrot.lane.b32.xlu0 %v223, 8
  %v228 = vpop.permute.xlu0 %227
  %229 = vrot.lane.b32.xlu0 %v224, 8
  %v230 = vpop.permute.xlu0 %229
  %v233 = vadd.f32 %v213, %v228
  %v234 = vadd.f32 %v214, %v230
  %v235 = vtanh.pop %v233
  %v236 = vtanh.pop %v234
  %239 = vrot.lane.b32.xlu0 %v235, 16
  %v240 = vpop.permute.xlu0 %239
  %241 = vrot.lane.b32.xlu0 %v236, 16
  %v242 = vpop.permute.xlu0 %241
  %v245 = vmul.f32 %v195, %v240
  %v246 = vmul.f32 %v210, %v242
  %vm247 = vcmask 523716
  %v248 = vsel %vm247, %v245, -inf
  %vm249 = vcmask 523712
  %v250 = vsel %vm249, %v246, -inf
  %v251 = vmax.f32 %v248, %v250
  %v252 = vrot.slane %v251, 4
  %v253 = vmax.f32 %v251, %v252
  %v254 = vrot.slane %v253, 2
  %v255 = vmax.f32 %v253, %v254
  %v256 = vrot.slane %v255, 1
  %v257 = vmax.f32 %v255, %v256
  %v260 = vrot.slane %v245, 4
  %v261 = vrot.slane %v246, 4
  %v262 = vsel %vm154, %v260, %v261
  %263 = vrot.lane.b32.xlu0 %v262, 72
  %v264 = vpop.permute.xlu0 %263
  %265 = vrot.lane.b32.xlu0 %v261, 72
  %v266 = vpop.permute.xlu0 %265
  %v267 = vsel %vm88, %v264, 0
  %v269 = vsel %vm88, %v266, 0
  %271 = vmatpush.msra.mxu0 0.0
  %272 = vmatpush.msra.mxu0 0.0
  %273 = vmatpush.msra.mxu0 0.0
  %274 = vmatpush.msra.mxu0 0.0
  %275 = vmatpush.msra.mxu0 0.0
  %276 = vmatpush.msra.mxu0 0.0
  %277 = vmatpush.msra.mxu0 0.0
  %278 = vmatpush.msra.mxu0 0.0
  %279 = vmatpush.msra.mxu0 0.0
  %280 = vmatpush.msra.mxu0 0.0
  %281 = vmatpush.msra.mxu0 0.0
  %282 = vmatpush.msra.mxu0 0.0
  %283 = vmatpush.msra.mxu0 0.0
  %284 = vmatpush.msra.mxu0 0.0
  %285 = vmatpush.msra.mxu0 0.0
  %286 = vmatpush.msra.mxu0 %v124
  %287 = vmatmul.f32.gmra.mxu0 %v267
  %v288 = vpop.f32.mrf.mxu0
  %v289 = vadd.f32 0.0, %v288
  %290 = vmatmul.f32.gmra.mxu0 %v269
  %v291 = vpop.f32.mrf.mxu0
  %v292 = vadd.f32 0.0, %v291
  %293 = vdwg.mxu0
  %296 = vrot.lane.b32.xlu0 %v289, 32
  %v297 = vpop.permute.xlu0 %296
  %298 = vrot.lane.b32.xlu0 %v292, 32
  %v299 = vpop.permute.xlu0 %298
  %v302 = vadd.f32 %v116, %v297
  %v303 = vadd.f32 %v119, %v299
  %v304 = vadd.f32 %v302, %v169
  %v305 = vadd.f32 %v303, %v169
  %v306 = vsub.f32 0.0, %v304
  %v307 = vsub.f32 0.0, %v305
  %v308 = vmul.f32 %v306, 1.442695
  %v309 = vpow.pop %v308
  %v310 = vmul.f32 %v307, 1.442695
  %v311 = vpow.pop %v310
  %v312 = vadd.f32 %v309, 1.0
  %v313 = vadd.f32 %v311, 1.0
  %v314 = vrcp.pop %v312
  %v315 = vmul.f32 %v312, %v314
  %v316 = vsub.f32 1.0, %v315
  %v317 = vmul.f32 %v314, %v316
  %v318 = vadd.f32 %v314, %v317
  %vm319 = vweird.f32 %v312
  %vm320 = vweird.f32 %v314
  %vm321 = vmor %vm319, %vm320
  %v322 = vsel %vm321, %v314, %v318
  %v323 = vand.u32 2147483647, %v312
  %vm324 = vcmp.eq.f32.partialorder %v323, 8.507059e+37
  %v325 = vand.u32 %v312, 2147483648
  %v326 = vor.u32 1.1754944e-38, %v325
  %v327 = vsel %vm324, %v326, %v322
  %v328 = vmul.f32 1.0, %v327
  %v329 = vrcp.pop %v313
  %v330 = vmul.f32 %v313, %v329
  %v331 = vsub.f32 1.0, %v330
  %v332 = vmul.f32 %v329, %v331
  %v333 = vadd.f32 %v329, %v332
  %vm334 = vweird.f32 %v313
  %vm335 = vweird.f32 %v329
  %vm336 = vmor %vm334, %vm335
  %v337 = vsel %vm336, %v329, %v333
  %v338 = vand.u32 2147483647, %v313
  %vm339 = vcmp.eq.f32.partialorder %v338, 8.507059e+37
  %v340 = vand.u32 %v313, 2147483648
  %v341 = vor.u32 1.1754944e-38, %v340
  %v342 = vsel %vm339, %v341, %v337
  %v343 = vmul.f32 1.0, %v342
  %v344 = vtanh.pop %v304
  %v345 = vtanh.pop %v305
  %v348 = vrot.slane %v233, 4
  %v349 = vrot.slane %v234, 4
  %v350 = vsel %vm154, %v348, %v349
  %v353 = vmul.f32 %v328, %v350
  %v354 = vmul.f32 %v343, %v349
  %357 = vrot.lane.b32.xlu0 %v344, 112
  %v358 = vpop.permute.xlu0 %357
  %359 = vrot.lane.b32.xlu0 %v345, 112
  %v360 = vpop.permute.xlu0 %359
  %v363 = vmul.f32 %v328, %v358
  %v364 = vmul.f32 %v343, %v360
  %367 = vrot.lane.b32.xlu0 %v363, 8
  %v368 = vpop.permute.xlu0 %367
  %369 = vrot.lane.b32.xlu0 %v364, 8
  %v370 = vpop.permute.xlu0 %369
  %v373 = vadd.f32 %v353, %v368
  %v374 = vadd.f32 %v354, %v370
  %v375 = vtanh.pop %v373
  %v376 = vtanh.pop %v374
  %379 = vrot.lane.b32.xlu0 %v375, 16
  %v380 = vpop.permute.xlu0 %379
  %381 = vrot.lane.b32.xlu0 %v376, 16
  %v382 = vpop.permute.xlu0 %381
  %v385 = vmul.f32 %v328, %v380
  %v386 = vmul.f32 %v343, %v382
  %v387 = vsel %vm249, %v385, -inf
  %vm388 = vcmask 519616
  %v389 = vsel %vm388, %v386, -inf
  %v390 = vmax.f32 %v387, %v389
  %v391 = vrot.slane %v390, 4
  %v392 = vmax.f32 %v390, %v391
  %v393 = vrot.slane %v392, 2
  %v394 = vmax.f32 %v392, %v393
  %v395 = vrot.slane %v394, 1
  %v396 = vmax.f32 %v394, %v395
  %v397 = vld [vmem:[%s4] sm:$0xff]
  %v398 = vld [vmem:[%s5] sm:$0x1]
  %399 = vmatpush.msra.mxu0 0.0
  %400 = vmatpush.msra.mxu0 0.0
  %401 = vmatpush.msra.mxu0 0.0
  %402 = vmatpush.msra.mxu0 0.0
  %403 = vmatpush.msra.mxu0 0.0
  %404 = vmatpush.msra.mxu0 0.0
  %405 = vmatpush.msra.mxu0 0.0
  %406 = vmatpush.msra.mxu0 0.0
  %407 = vmatpush.msra.mxu0 0.0
  %408 = vmatpush.msra.mxu0 0.0
  %409 = vmatpush.msra.mxu0 0.0
  %410 = vmatpush.msra.mxu0 0.0
  %411 = vmatpush.msra.mxu0 0.0
  %412 = vmatpush.msra.mxu0 0.0
  %413 = vmatpush.msra.mxu0 0.0
  %414 = vmatpush.msra.mxu0 %v397
  %415 = vmatmul.f32.gmra.mxu0 %v127
  %v416 = vpop.f32.mrf.mxu0
  %v417 = vadd.f32 0.0, %v416
  %418 = vmatmul.f32.gmra.mxu0 %v127
  %v419 = vpop.f32.mrf.mxu0
  %v420 = vadd.f32 0.0, %v419
  %421 = vdwg.mxu0
  %v422 = vadd.f32 %v116, %v417
  %v423 = vadd.f32 %v119, %v420
  %v425 = vperm.slane %v398, 0
  %v427 = vadd.f32 %v422, %v425
  %v428 = vadd.f32 %v423, %v425
  %v429 = vsub.f32 0.0, %v427
  %v430 = vsub.f32 0.0, %v428
  %v431 = vmul.f32 %v429, 1.442695
  %v432 = vpow.pop %v431
  %v433 = vmul.f32 %v430, 1.442695
  %v434 = vpow.pop %v433
  %v435 = vadd.f32 %v432, 1.0
  %v436 = vadd.f32 %v434, 1.0
  %v437 = vrcp.pop %v435
  %v438 = vmul.f32 %v435, %v437
  %v439 = vsub.f32 1.0, %v438
  %v440 = vmul.f32 %v437, %v439
  %v441 = vadd.f32 %v437, %v440
  %vm442 = vweird.f32 %v435
  %vm443 = vweird.f32 %v437
  %vm444 = vmor %vm442, %vm443
  %v445 = vsel %vm444, %v437, %v441
  %v446 = vand.u32 2147483647, %v435
  %vm447 = vcmp.eq.f32.partialorder %v446, 8.507059e+37
  %v448 = vand.u32 %v435, 2147483648
  %v449 = vor.u32 1.1754944e-38, %v448
  %v450 = vsel %vm447, %v449, %v445
  %v451 = vmul.f32 1.0, %v450
  %v452 = vrcp.pop %v436
  %v453 = vmul.f32 %v436, %v452
  %v454 = vsub.f32 1.0, %v453
  %v455 = vmul.f32 %v452, %v454
  %v456 = vadd.f32 %v452, %v455
  %vm457 = vweird.f32 %v436
  %vm458 = vweird.f32 %v452
  %vm459 = vmor %vm457, %vm458
  %v460 = vsel %vm459, %v452, %v456
  %v461 = vand.u32 2147483647, %v436
  %vm462 = vcmp.eq.f32.partialorder %v461, 8.507059e+37
  %v463 = vand.u32 %v436, 2147483648
  %v464 = vor.u32 1.1754944e-38, %v463
  %v465 = vsel %vm462, %v464, %v460
  %v466 = vmul.f32 1.0, %v465
  %v467 = vtanh.pop %v427
  %v468 = vtanh.pop %v428
  %v469 = vmul.f32 %v451, 0.0
  %v470 = vmul.f32 %v466, 0.0
  %473 = vrot.lane.b32.xlu0 %v467, 112
  %v474 = vpop.permute.xlu0 %473
  %475 = vrot.lane.b32.xlu0 %v468, 112
  %v476 = vpop.permute.xlu0 %475
  %v479 = vmul.f32 %v451, %v474
  %v480 = vmul.f32 %v466, %v476
  %483 = vrot.lane.b32.xlu0 %v479, 8
  %v484 = vpop.permute.xlu0 %483
  %485 = vrot.lane.b32.xlu0 %v480, 8
  %v486 = vpop.permute.xlu0 %485
  %v489 = vadd.f32 %v469, %v484
  %v490 = vadd.f32 %v470, %v486
  %v491 = vtanh.pop %v489
  %v492 = vtanh.pop %v490
  %495 = vrot.lane.b32.xlu0 %v491, 16
  %v496 = vpop.permute.xlu0 %495
  %497 = vrot.lane.b32.xlu0 %v492, 16
  %v498 = vpop.permute.xlu0 %497
  %v501 = vmul.f32 %v451, %v496
  %v502 = vmul.f32 %v466, %v498
  %vm503 = vcmask 261312
  %v504 = vsel %vm503, %v501, -inf
  %vm505 = vcmask 257216
  %v506 = vsel %vm505, %v502, -inf
  %v507 = vmax.f32 %v504, %v506
  %v508 = vrot.slane %v507, 4
  %v509 = vmax.f32 %v507, %v508
  %v510 = vrot.slane %v509, 2
  %v511 = vmax.f32 %v509, %v510
  %v512 = vrot.slane %v511, 1
  %v513 = vmax.f32 %v511, %v512
  %515 = vrot.lane.b32.xlu0 %v513, 104
  %v516 = vpop.permute.xlu0 %515
  %519 = vrot.lane.b32.xlu0 %v396, 80
  %v520 = vpop.permute.xlu0 %519
  %v522 = vsel %vm88, %v516, %v520
  %v523 = vtanh.pop %v522
  %526 = vrot.lane.b32.xlu0 %v501, 104
  %v527 = vpop.permute.xlu0 %526
  %528 = vrot.lane.b32.xlu0 %v502, 104
  %v529 = vpop.permute.xlu0 %528
  %v530 = vsel %vm88, %v527, 0
  %v532 = vsel %vm88, %v529, 0
  %534 = vmatpush.msra.mxu0 0.0
  %535 = vmatpush.msra.mxu0 0.0
  %536 = vmatpush.msra.mxu0 0.0
  %537 = vmatpush.msra.mxu0 0.0
  %538 = vmatpush.msra.mxu0 0.0
  %539 = vmatpush.msra.mxu0 0.0
  %540 = vmatpush.msra.mxu0 0.0
  %541 = vmatpush.msra.mxu0 0.0
  %542 = vmatpush.msra.mxu0 0.0
  %543 = vmatpush.msra.mxu0 0.0
  %544 = vmatpush.msra.mxu0 0.0
  %545 = vmatpush.msra.mxu0 0.0
  %546 = vmatpush.msra.mxu0 0.0
  %547 = vmatpush.msra.mxu0 0.0
  %548 = vmatpush.msra.mxu0 0.0
  %549 = vmatpush.msra.mxu0 %v397
  %550 = vmatmul.f32.gmra.mxu0 %v530
  %v551 = vpop.f32.mrf.mxu0
  %v552 = vadd.f32 0.0, %v551
  %553 = vmatmul.f32.gmra.mxu0 %v532
  %v554 = vpop.f32.mrf.mxu0
  %v555 = vadd.f32 0.0, %v554
  %556 = vdwg.mxu0
  %v559 = vrot.slane %v552, 4
  %v560 = vrot.slane %v555, 4
  %v561 = vsel %vm154, %v559, %v560
  %v564 = vadd.f32 %v119, %v559
  %v565 = vadd.f32 %v122, %v561
  %v566 = vadd.f32 %v564, %v425
  %v567 = vadd.f32 %v565, %v425
  %v568 = vsub.f32 0.0, %v566
  %v569 = vsub.f32 0.0, %v567
  %v570 = vmul.f32 %v568, 1.442695
  %v571 = vpow.pop %v570
  %v572 = vmul.f32 %v569, 1.442695
  %v573 = vpow.pop %v572
  %v574 = vadd.f32 %v571, 1.0
  %v575 = vadd.f32 %v573, 1.0
  %v576 = vrcp.pop %v574
  %v577 = vmul.f32 %v574, %v576
  %v578 = vsub.f32 1.0, %v577
  %v579 = vmul.f32 %v576, %v578
  %v580 = vadd.f32 %v576, %v579
  %vm581 = vweird.f32 %v574
  %vm582 = vweird.f32 %v576
  %vm583 = vmor %vm581, %vm582
  %v584 = vsel %vm583, %v576, %v580
  %v585 = vand.u32 2147483647, %v574
  %vm586 = vcmp.eq.f32.partialorder %v585, 8.507059e+37
  %v587 = vand.u32 %v574, 2147483648
  %v588 = vor.u32 1.1754944e-38, %v587
  %v589 = vsel %vm586, %v588, %v584
  %v590 = vmul.f32 1.0, %v589
  %v591 = vrcp.pop %v575
  %v592 = vmul.f32 %v575, %v591
  %v593 = vsub.f32 1.0, %v592
  %v594 = vmul.f32 %v591, %v593
  %v595 = vadd.f32 %v591, %v594
  %vm596 = vweird.f32 %v575
  %vm597 = vweird.f32 %v591
  %vm598 = vmor %vm596, %vm597
  %v599 = vsel %vm598, %v591, %v595
  %v600 = vand.u32 2147483647, %v575
  %vm601 = vcmp.eq.f32.partialorder %v600, 8.507059e+37
  %v602 = vand.u32 %v575, 2147483648
  %v603 = vor.u32 1.1754944e-38, %v602
  %v604 = vsel %vm601, %v603, %v599
  %v605 = vmul.f32 1.0, %v604
  %v606 = vtanh.pop %v566
  %v607 = vtanh.pop %v567
  %v610 = vrot.slane %v489, 4
  %v611 = vrot.slane %v490, 4
  %v612 = vsel %vm154, %v610, %v611
  %v615 = vmul.f32 %v590, %v610
  %v616 = vmul.f32 %v605, %v612
  %619 = vrot.lane.b32.xlu0 %v606, 112
  %v620 = vpop.permute.xlu0 %619
  %621 = vrot.lane.b32.xlu0 %v607, 112
  %v622 = vpop.permute.xlu0 %621
  %v625 = vmul.f32 %v590, %v620
  %v626 = vmul.f32 %v605, %v622
  %629 = vrot.lane.b32.xlu0 %v625, 8
  %v630 = vpop.permute.xlu0 %629
  %631 = vrot.lane.b32.xlu0 %v626, 8
  %v632 = vpop.permute.xlu0 %631
  %v635 = vadd.f32 %v615, %v630
  %v636 = vadd.f32 %v616, %v632
  %v637 = vtanh.pop %v635
  %v638 = vtanh.pop %v636
  %641 = vrot.lane.b32.xlu0 %v637, 16
  %v642 = vpop.permute.xlu0 %641
  %643 = vrot.lane.b32.xlu0 %v638, 16
  %v644 = vpop.permute.xlu0 %643
  %v647 = vmul.f32 %v590, %v642
  %v648 = vmul.f32 %v605, %v644
  %vm649 = vcmask 261316
  %v650 = vsel %vm649, %v647, -inf
  %v651 = vsel %vm503, %v648, -inf
  %v652 = vmax.f32 %v650, %v651
  %v653 = vrot.slane %v652, 4
  %v654 = vmax.f32 %v652, %v653
  %v655 = vrot.slane %v654, 2
  %v656 = vmax.f32 %v654, %v655
  %v657 = vrot.slane %v656, 1
  %v658 = vmax.f32 %v656, %v657
  %660 = vrot.lane.b32.xlu0 %v658, 104
  %v661 = vpop.permute.xlu0 %660
  %664 = vrot.lane.b32.xlu0 %v257, 80
  %v665 = vpop.permute.xlu0 %664
  %v667 = vsel %vm88, %v661, %v665
  %v668 = vtanh.pop %v667
  %v670 = vrot.slane %v668, 7
  %vm672 = vcmask 1040384
  %v673 = vsel %vm672, %v523, %v670
  %v674 = vld [vmem:[%s8] sm:$0xff]
  %v675 = vld [vmem:[%s8 + $0x8] sm:$0xff]
  %v676 = vld [vmem:[%s9] sm:$0x1]
  %v678 = vperm.slane %v676, 0
  %vm680 = vcmask 130048
  %v682 = vsel %vm680, %v673, 0
  %684 = vmatpush.msra.mxu0 0.0
  %685 = vmatpush.msra.mxu0 0.0
  %686 = vmatpush.msra.mxu0 0.0
  %687 = vmatpush.msra.mxu0 0.0
  %688 = vmatpush.msra.mxu0 0.0
  %689 = vmatpush.msra.mxu0 0.0
  %690 = vmatpush.msra.mxu0 0.0
  %691 = vmatpush.msra.mxu0 0.0
  %692 = vmatpush.msra.mxu0 0.0
  %693 = vmatpush.msra.mxu0 0.0
  %694 = vmatpush.msra.mxu0 0.0
  %695 = vmatpush.msra.mxu0 0.0
  %696 = vmatpush.msra.mxu0 0.0
  %697 = vmatpush.msra.mxu0 0.0
  %698 = vmatpush.msra.mxu0 %v675
  %699 = vmatpush.msra.mxu0 %v674
  %700 = vmatmul.f32.gmra.mxu0 %v682
  %v701 = vpop.f32.mrf.mxu0
  %v702 = vadd.f32 %v678, %v701
  %703 = vdwg.mxu0
  %vm704 = vcmask 33792
  %705 = vst.msk [vmem:[%s10] sm:$0x3] %vm704, %v702
  // Predicated region
  $region42: #{hcl_forward.6} parent=0 // pred_check
    _
  $region43: #{hcl_forward.6} parent=0 // pred_check_branch
    %707 = sbr.rel (0) target = $region45
  $region44: #{hcl_forward.6} parent=0 // pred_region
    _
  $region45: #{hcl_forward.6} parent=0 // pred_fallthru
    _
  // Predicated region
  $region46: #{hcl_forward.6} parent=0 // pred_check
    _
  $region47: #{hcl_forward.6} parent=0 // pred_check_branch
    %709 = sbr.rel (0) target = $region49
  $region48: #{hcl_forward.6} parent=0 // pred_region
    _
  $region49: #{hcl_forward.6} parent=0 // pred_fallthru
    _

// kernel: hcl_forward.7
$region0: #{hcl_forward.7}
  #allocation0 [shape = 'u32[]', space=smem, size = 0x4, offset = 0x4, fixed_abs, tag = 'smem constant byte address 0x4 - core index']
  #allocation1 [shape = 'u32[72,128]{1,0:T(1,128)}', space=vmem, size = 0x9000, scoped, tag = 'internal scratch']
  %s0 = inlined_call_operand.vmem [shape: f32[24,80], index: 0, kind: input, shape index: {}]
  %s1 = inlined_call_operand.vmem [shape: f32[80,16], index: 1, kind: input, shape index: {}]
  %s2 = inlined_call_operand.vmem [shape: f32[1,16], index: 2, kind: input, shape index: {}]
  %s3 = inlined_call_operand.vmem [shape: f32[16,128], index: 3, kind: input, shape index: {}]
  %s4 = inlined_call_operand.vmem [shape: f32[16,64], index: 4, kind: input, shape index: {}]
  %s5 = inlined_call_operand.vmem [shape: f32[1,64], index: 5, kind: input, shape index: {}]
  %s6 = inlined_call_operand.vmem [shape: f32[16,64], index: 6, kind: input, shape index: {}]
  %s7 = inlined_call_operand.vmem [shape: f32[1,64], index: 7, kind: input, shape index: {}]
  %s8 = inlined_call_operand.vmem [shape: f32[32,5], index: 8, kind: input, shape index: {}]
  %s9 = inlined_call_operand.vmem [shape: f32[1,5], index: 9, kind: input, shape index: {}]
  %s10 = inlined_call_operand.vmem [shape: f32[2,5], index: 10, kind: input, shape index: {}]
  %s11 = inlined_call_operand.vmem [shape: f32[2,5], index: 11, kind: input, shape index: {}]
  %s12 = inlined_call_operand.hbm [shape: f32[2,5], index: 12, kind: output, shape index: {}]
  %s13 = sld [smem:[#allocation0]]
  $region58: #{hcl_forward.7} parent=0
    _
  %s15 = ssub.s32 1, %s13
  %s16 = scalar_select 0, %s15, %s13
  $region1: #{hcl_forward.7} parent=0
    #allocation2 [shape = 'u8[1024]{0}', space=vmem, size = 0x400, scoped, tag = 'output window, operand 0, single buffered']
    #allocation3 [shape = 's32[1]{0}', space=sflag, size = 0x4, scoped, tag = 'scoped memory for hcl_forward.7']
    %17 = vsyncpa [#allocation3], 0
    // Predicated region
    $region2: #{hcl_forward.7} parent=1 // pred_check
      _
    $region3: #{hcl_forward.7} parent=1 // pred_check_branch
      %19 = sbr.rel (0) target = $region5
    $region4: #{hcl_forward.7} parent=1 // pred_region
      _
    $region5: #{hcl_forward.7} parent=1 // pred_fallthru
      _
    // Predicated region
    $region6: #{hcl_forward.7} parent=1 // pred_check
      _
    $region7: #{hcl_forward.7} parent=1 // pred_check_branch
      %21 = sbr.rel (0) target = $region9
    $region8: #{hcl_forward.7} parent=1 // pred_region
      _
    $region9: #{hcl_forward.7} parent=1 // pred_fallthru
      _
    // Predicated region
    $region10: #{hcl_forward.7} parent=1 // pred_check
      _
    $region11: #{hcl_forward.7} parent=1 // pred_check_branch
      %23 = sbr.rel (0) target = $region13
    $region12: #{hcl_forward.7} parent=1 // pred_region
      _
    $region13: #{hcl_forward.7} parent=1 // pred_fallthru
      _
    // Predicated region
    $region14: #{hcl_forward.7} parent=1 // pred_check
      _
    $region15: #{hcl_forward.7} parent=1 // pred_check_branch
      %25 = sbr.rel (0) target = $region17
    $region16: #{hcl_forward.7} parent=1 // pred_region
      _
    $region17: #{hcl_forward.7} parent=1 // pred_fallthru
      _
    // Predicated region
    $region18: #{hcl_forward.7} parent=1 // pred_check
      _
    $region19: #{hcl_forward.7} parent=1 // pred_check_branch
      %27 = sbr.rel (0) target = $region21
    $region20: #{hcl_forward.7} parent=1 // pred_region
      _
    $region21: #{hcl_forward.7} parent=1 // pred_fallthru
      _
    // Predicated region
    $region22: #{hcl_forward.7} parent=1 // pred_check
      _
    $region23: #{hcl_forward.7} parent=1 // pred_check_branch
      %29 = sbr.rel (0) target = $region25
    $region24: #{hcl_forward.7} parent=1 // pred_region
      _
    $region25: #{hcl_forward.7} parent=1 // pred_fallthru
      _
    // Predicated region
    $region26: #{hcl_forward.7} parent=1 // pred_check
      _
    $region27: #{hcl_forward.7} parent=1 // pred_check_branch
      %31 = sbr.rel (0) target = $region29
    $region28: #{hcl_forward.7} parent=1 // pred_region
      _
    $region29: #{hcl_forward.7} parent=1 // pred_fallthru
      _
    // Predicated region
    $region30: #{hcl_forward.7} parent=1 // pred_check
      _
    $region31: #{hcl_forward.7} parent=1 // pred_check_branch
      %33 = sbr.rel (0) target = $region33
    $region32: #{hcl_forward.7} parent=1 // pred_region
      _
    $region33: #{hcl_forward.7} parent=1 // pred_fallthru
      _
    // Predicated region
    $region34: #{hcl_forward.7} parent=1 // pred_check
      _
    $region35: #{hcl_forward.7} parent=1 // pred_check_branch
      %35 = sbr.rel (0) target = $region37
    $region36: #{hcl_forward.7} parent=1 // pred_region
      _
    $region37: #{hcl_forward.7} parent=1 // pred_fallthru
      _
    // Predicated region
    $region38: #{hcl_forward.7} parent=1 // pred_check
      _
    $region39: #{hcl_forward.7} parent=1 // pred_check_branch
      %37 = sbr.rel (0) target = $region41
    $region40: #{hcl_forward.7} parent=1 // pred_region
      _
    $region41: #{hcl_forward.7} parent=1 // pred_fallthru
      _
    // Predicated region
    $region42: #{hcl_forward.7} parent=1 // pred_check
      _
    $region43: #{hcl_forward.7} parent=1 // pred_check_branch
      %39 = sbr.rel (0) target = $region45
    $region44: #{hcl_forward.7} parent=1 // pred_region
      _
    $region45: #{hcl_forward.7} parent=1 // pred_fallthru
      _
    // Predicated region
    $region46: #{hcl_forward.7} parent=1 // pred_check
      _
    $region47: #{hcl_forward.7} parent=1 // pred_check_branch
      %41 = sbr.rel (0) target = $region49
    $region48: #{hcl_forward.7} parent=1 // pred_region
      _
    $region49: #{hcl_forward.7} parent=1 // pred_fallthru
      _
    %v42 = vld [vmem:[%s0] sm:$0xff]
    %v43 = vld [vmem:[%s0 + $0x8] sm:$0xff]
    %v44 = vld [vmem:[%s0 + $0x10] sm:$0xff]
    %v45 = vld [vmem:[%s1] sm:$0xff]
    %v46 = vld [vmem:[%s1 + $0x8] sm:$0xff]
    %v47 = vld [vmem:[%s1 + $0x10] sm:$0xff]
    %v48 = vld [vmem:[%s1 + $0x18] sm:$0xff]
    %v49 = vld [vmem:[%s1 + $0x20] sm:$0xff]
    %v50 = vld [vmem:[%s1 + $0x28] sm:$0xff]
    %v51 = vld [vmem:[%s1 + $0x30] sm:$0xff]
    %v52 = vld [vmem:[%s1 + $0x38] sm:$0xff]
    %v53 = vld [vmem:[%s1 + $0x40] sm:$0xff]
    %v54 = vld [vmem:[%s1 + $0x48] sm:$0xff]
    %v55 = vld [vmem:[%s2] sm:$0x1]
    %v57 = vperm.slane %v55, 0
    %vm59 = vcmask 654336
    %v61 = vsel %vm59, %v42, 0
    %v64 = vsel %vm59, %v43, 0
    %v67 = vsel %vm59, %v44, 0
    %69 = vmatpush.msra.mxu0 0.0
    %70 = vmatpush.msra.mxu0 0.0
    %71 = vmatpush.msra.mxu0 0.0
    %72 = vmatpush.msra.mxu0 0.0
    %73 = vmatpush.msra.mxu0 0.0
    %74 = vmatpush.msra.mxu0 0.0
    %75 = vmatpush.msra.mxu0 %v54
    %76 = vmatpush.msra.mxu0 %v53
    %77 = vmatpush.msra.mxu0 %v52
    %78 = vmatpush.msra.mxu0 %v51
    %79 = vmatpush.msra.mxu0 %v50
    %80 = vmatpush.msra.mxu0 %v49
    %81 = vmatpush.msra.mxu0 %v48
    %82 = vmatpush.msra.mxu0 %v47
    %83 = vmatpush.msra.mxu0 %v46
    %84 = vmatpush.msra.mxu0 %v45
    %85 = vmatmul.f32.gmra.mxu0 %v61
    %v86 = vpop.f32.mrf.mxu0
    %v87 = vadd.f32 %v57, %v86
    %88 = vmatmul.f32.gmra.mxu0 %v64
    %v89 = vpop.f32.mrf.mxu0
    %v90 = vadd.f32 %v57, %v89
    %91 = vmatmul.f32.gmra.mxu0 %v67
    %v92 = vpop.f32.mrf.mxu0
    %v93 = vadd.f32 %v57, %v92
    %94 = vdwg.mxu0
    %v95 = vmax.f32 %v87, 0.0
    %v96 = vmax.f32 %v90, 0.0
    %v97 = vmax.f32 %v93, 0.0
    %v98 = vld [vmem:[%s3] sm:$0xff]
    %v99 = vld [vmem:[%s3 + $0x8] sm:$0xff]
    %vm100 = vcmask 130048
    %v102 = vsel %vm100, %v95, 0
    %v105 = vsel %vm100, %v96, 0
    %v108 = vsel %vm100, %v97, 0
    %110 = vmatpush.msra.mxu0 0.0
    %111 = vmatpush.msra.mxu0 0.0
    %112 = vmatpush.msra.mxu0 0.0
    %113 = vmatpush.msra.mxu0 0.0
    %114 = vmatpush.msra.mxu0 0.0
    %115 = vmatpush.msra.mxu0 0.0
    %116 = vmatpush.msra.mxu0 0.0
    %117 = vmatpush.msra.mxu0 0.0
    %118 = vmatpush.msra.mxu0 0.0
    %119 = vmatpush.msra.mxu0 0.0
    %120 = vmatpush.msra.mxu0 0.0
    %121 = vmatpush.msra.mxu0 0.0
    %122 = vmatpush.msra.mxu0 0.0
    %123 = vmatpush.msra.mxu0 0.0
    %124 = vmatpush.msra.mxu0 %v99
    %125 = vmatpush.msra.mxu0 %v98
    %126 = vmatmul.f32.gmra.mxu0 %v102
    %v127 = vpop.f32.mrf.mxu0
    %v128 = vadd.f32 0.0, %v127
    %129 = vmatmul.f32.gmra.mxu0 %v105
    %v130 = vpop.f32.mrf.mxu0
    %v131 = vadd.f32 0.0, %v130
    %132 = vmatmul.f32.gmra.mxu0 %v108
    %v133 = vpop.f32.mrf.mxu0
    %v134 = vadd.f32 0.0, %v133
    %135 = vdwg.mxu0
    %v136 = vld [vmem:[%s6] sm:$0xff]
    %v137 = vld [vmem:[%s6 + $0x8] sm:$0xff]
    %v138 = vld [vmem:[%s7] sm:$0x1]
    %v140 = vsel %vm100, 0.0, 0
    %142 = vmatpush.msra.mxu0 0.0
    %143 = vmatpush.msra.mxu0 0.0
    %144 = vmatpush.msra.mxu0 0.0
    %145 = vmatpush.msra.mxu0 0.0
    %146 = vmatpush.msra.mxu0 0.0
    %147 = vmatpush.msra.mxu0 0.0
    %148 = vmatpush.msra.mxu0 0.0
    %149 = vmatpush.msra.mxu0 0.0
    %150 = vmatpush.msra.mxu0 0.0
    %151 = vmatpush.msra.mxu0 0.0
    %152 = vmatpush.msra.mxu0 0.0
    %153 = vmatpush.msra.mxu0 0.0
    %154 = vmatpush.msra.mxu0 0.0
    %155 = vmatpush.msra.mxu0 0.0
    %156 = vmatpush.msra.mxu0 %v137
    %157 = vmatpush.msra.mxu0 %v136
    %158 = vmatmul.f32.gmra.mxu0 %v140
    %v159 = vpop.f32.mrf.mxu0
    %v160 = vadd.f32 0.0, %v159
    %161 = vmatmul.f32.gmra.mxu0 %v140
    %v162 = vpop.f32.mrf.mxu0
    %v163 = vadd.f32 0.0, %v162
    %164 = vdwg.mxu0
    %vm167 = vcmask 1043456
    %v168 = vrot.slane %v160, 4
    %v169 = vrot.slane %v163, 4
    %v170 = vsel %vm167, %v168, %v169
    %171 = vrot.lane.b32.xlu0 %v168, 64
    %v172 = vpop.permute.xlu0 %171
    %173 = vrot.lane.b32.xlu0 %v170, 64
    %v174 = vpop.permute.xlu0 %173
    %v177 = vadd.f32 %v131, %v172
    %v178 = vadd.f32 %v134, %v174
    %v180 = vperm.slane %v138, 0
    %181 = vrot.lane.b32.xlu0 %v180, 64
    %v182 = vpop.permute.xlu0 %181
    %v184 = vadd.f32 %v177, %v182
    %v185 = vadd.f32 %v178, %v182
    %v186 = vsub.f32 0.0, %v184
    %v187 = vsub.f32 0.0, %v185
    %v188 = vmul.f32 %v186, 1.442695
    %v189 = vpow.pop %v188
    %v190 = vmul.f32 %v187, 1.442695
    %v191 = vpow.pop %v190
    %v192 = vadd.f32 %v189, 1.0
    %v193 = vadd.f32 %v191, 1.0
    %v194 = vrcp.pop %v192
    %v195 = vmul.f32 %v192, %v194
    %v196 = vsub.f32 1.0, %v195
    %v197 = vmul.f32 %v194, %v196
    %v198 = vadd.f32 %v194, %v197
    %vm199 = vweird.f32 %v192
    %vm200 = vweird.f32 %v194
    %vm201 = vmor %vm199, %vm200
    %v202 = vsel %vm201, %v194, %v198
    %v203 = vand.u32 2147483647, %v192
    %vm204 = vcmp.eq.f32.partialorder %v203, 8.507059e+37
    %v205 = vand.u32 %v192, 2147483648
    %v206 = vor.u32 1.1754944e-38, %v205
    %v207 = vsel %vm204, %v206, %v202
    %v208 = vmul.f32 1.0, %v207
    %v209 = vrcp.pop %v193
    %v210 = vmul.f32 %v193, %v209
    %v211 = vsub.f32 1.0, %v210
    %v212 = vmul.f32 %v209, %v211
    %v213 = vadd.f32 %v209, %v212
    %vm214 = vweird.f32 %v193
    %vm215 = vweird.f32 %v209
    %vm216 = vmor %vm214, %vm215
    %v217 = vsel %vm216, %v209, %v213
    %v218 = vand.u32 2147483647, %v193
    %vm219 = vcmp.eq.f32.partialorder %v218, 8.507059e+37
    %v220 = vand.u32 %v193, 2147483648
    %v221 = vor.u32 1.1754944e-38, %v220
    %v222 = vsel %vm219, %v221, %v217
    %v223 = vmul.f32 1.0, %v222
    %v224 = vtanh.pop %v184
    %v225 = vtanh.pop %v185
    %v226 = vmul.f32 %v208, 0.0
    %v227 = vmul.f32 %v223, 0.0
    %230 = vrot.lane.b32.xlu0 %v224, 96
    %v231 = vpop.permute.xlu0 %230
    %232 = vrot.lane.b32.xlu0 %v225, 96
    %v233 = vpop.permute.xlu0 %232
    %v236 = vmul.f32 %v208, %v231
    %v237 = vmul.f32 %v223, %v233
    %240 = vrot.lane.b32.xlu0 %v236, 16
    %v241 = vpop.permute.xlu0 %240
    %242 = vrot.lane.b32.xlu0 %v237, 16
    %v243 = vpop.permute.xlu0 %242
    %v246 = vadd.f32 %v226, %v241
    %v247 = vadd.f32 %v227, %v243
    %v248 = vtanh.pop %v246
    %v249 = vtanh.pop %v247
    %252 = vrot.lane.b32.xlu0 %v248, 32
    %v253 = vpop.permute.xlu0 %252
    %254 = vrot.lane.b32.xlu0 %v249, 32
    %v255 = vpop.permute.xlu0 %254
    %v258 = vmul.f32 %v208, %v253
    %v259 = vmul.f32 %v223, %v255
    %vm260 = vcmask 1048452
    %v261 = vsel %vm260, %v258, -inf
    %vm262 = vcmask 1048448
    %v263 = vsel %vm262, %v259, -inf
    %v264 = vmax.f32 %v261, %v263
    %v265 = vrot.slane %v264, 4
    %v266 = vmax.f32 %v264, %v265
    %v267 = vrot.slane %v266, 2
    %v268 = vmax.f32 %v266, %v267
    %v269 = vrot.slane %v268, 1
    %v270 = vmax.f32 %v268, %v269
    %v273 = vrot.slane %v258, 4
    %v274 = vrot.slane %v259, 4
    %v275 = vsel %vm167, %v273, %v274
    %276 = vrot.lane.b32.xlu0 %v275, 16
    %v277 = vpop.permute.xlu0 %276
    %278 = vrot.lane.b32.xlu0 %v274, 16
    %v279 = vpop.permute.xlu0 %278
    %v280 = vsel %vm100, %v277, 0
    %v282 = vsel %vm100, %v279, 0
    %284 = vmatpush.msra.mxu0 0.0
    %285 = vmatpush.msra.mxu0 0.0
    %286 = vmatpush.msra.mxu0 0.0
    %287 = vmatpush.msra.mxu0 0.0
    %288 = vmatpush.msra.mxu0 0.0
    %289 = vmatpush.msra.mxu0 0.0
    %290 = vmatpush.msra.mxu0 0.0
    %291 = vmatpush.msra.mxu0 0.0
    %292 = vmatpush.msra.mxu0 0.0
    %293 = vmatpush.msra.mxu0 0.0
    %294 = vmatpush.msra.mxu0 0.0
    %295 = vmatpush.msra.mxu0 0.0
    %296 = vmatpush.msra.mxu0 0.0
    %297 = vmatpush.msra.mxu0 0.0
    %298 = vmatpush.msra.mxu0 %v137
    %299 = vmatpush.msra.mxu0 %v136
    %300 = vmatmul.f32.gmra.mxu0 %v280
    %v301 = vpop.f32.mrf.mxu0
    %v302 = vadd.f32 0.0, %v301
    %303 = vmatmul.f32.gmra.mxu0 %v282
    %v304 = vpop.f32.mrf.mxu0
    %v305 = vadd.f32 0.0, %v304
    %306 = vdwg.mxu0
    %309 = vrot.lane.b32.xlu0 %v302, 64
    %v310 = vpop.permute.xlu0 %309
    %311 = vrot.lane.b32.xlu0 %v305, 64
    %v312 = vpop.permute.xlu0 %311
    %v315 = vadd.f32 %v128, %v310
    %v316 = vadd.f32 %v131, %v312
    %v317 = vadd.f32 %v315, %v182
    %v318 = vadd.f32 %v316, %v182
    %v319 = vsub.f32 0.0, %v317
    %v320 = vsub.f32 0.0, %v318
    %v321 = vmul.f32 %v319, 1.442695
    %v322 = vpow.pop %v321
    %v323 = vmul.f32 %v320, 1.442695
    %v324 = vpow.pop %v323
    %v325 = vadd.f32 %v322, 1.0
    %v326 = vadd.f32 %v324, 1.0
    %v327 = vrcp.pop %v325
    %v328 = vmul.f32 %v325, %v327
    %v329 = vsub.f32 1.0, %v328
    %v330 = vmul.f32 %v327, %v329
    %v331 = vadd.f32 %v327, %v330
    %vm332 = vweird.f32 %v325
    %vm333 = vweird.f32 %v327
    %vm334 = vmor %vm332, %vm333
    %v335 = vsel %vm334, %v327, %v331
    %v336 = vand.u32 2147483647, %v325
    %vm337 = vcmp.eq.f32.partialorder %v336, 8.507059e+37
    %v338 = vand.u32 %v325, 2147483648
    %v339 = vor.u32 1.1754944e-38, %v338
    %v340 = vsel %vm337, %v339, %v335
    %v341 = vmul.f32 1.0, %v340
    %v342 = vrcp.pop %v326
    %v343 = vmul.f32 %v326, %v342
    %v344 = vsub.f32 1.0, %v343
    %v345 = vmul.f32 %v342, %v344
    %v346 = vadd.f32 %v342, %v345
    %vm347 = vweird.f32 %v326
    %vm348 = vweird.f32 %v342
    %vm349 = vmor %vm347, %vm348
    %v350 = vsel %vm349, %v342, %v346
    %v351 = vand.u32 2147483647, %v326
    %vm352 = vcmp.eq.f32.partialorder %v351, 8.507059e+37
    %v353 = vand.u32 %v326, 2147483648
    %v354 = vor.u32 1.1754944e-38, %v353
    %v355 = vsel %vm352, %v354, %v350
    %v356 = vmul.f32 1.0, %v355
    %v357 = vtanh.pop %v317
    %v358 = vtanh.pop %v318
    %v361 = vrot.slane %v246, 4
    %v362 = vrot.slane %v247, 4
    %v363 = vsel %vm167, %v361, %v362
    %v366 = vmul.f32 %v341, %v363
    %v367 = vmul.f32 %v356, %v362
    %370 = vrot.lane.b32.xlu0 %v357, 96
    %v371 = vpop.permute.xlu0 %370
    %372 = vrot.lane.b32.xlu0 %v358, 96
    %v373 = vpop.permute.xlu0 %372
    %v376 = vmul.f32 %v341, %v371
    %v377 = vmul.f32 %v356, %v373
    %380 = vrot.lane.b32.xlu0 %v376, 16
    %v381 = vpop.permute.xlu0 %380
    %382 = vrot.lane.b32.xlu0 %v377, 16
    %v383 = vpop.permute.xlu0 %382
    %v386 = vadd.f32 %v366, %v381
    %v387 = vadd.f32 %v367, %v383
    %v388 = vtanh.pop %v386
    %v389 = vtanh.pop %v387
    %392 = vrot.lane.b32.xlu0 %v388, 32
    %v393 = vpop.permute.xlu0 %392
    %394 = vrot.lane.b32.xlu0 %v389, 32
    %v395 = vpop.permute.xlu0 %394
    %v398 = vmul.f32 %v341, %v393
    %v399 = vmul.f32 %v356, %v395
    %v400 = vsel %vm262, %v398, -inf
    %vm401 = vcmask 1044352
    %v402 = vsel %vm401, %v399, -inf
    %v403 = vmax.f32 %v400, %v402
    %v404 = vrot.slane %v403, 4
    %v405 = vmax.f32 %v403, %v404
    %v406 = vrot.slane %v405, 2
    %v407 = vmax.f32 %v405, %v406
    %v408 = vrot.slane %v407, 1
    %v409 = vmax.f32 %v407, %v408
    %v410 = vld [vmem:[%s4] sm:$0xff]
    %v411 = vld [vmem:[%s4 + $0x8] sm:$0xff]
    %v412 = vld [vmem:[%s5] sm:$0x1]
    %413 = vmatpush.msra.mxu0 0.0
    %414 = vmatpush.msra.mxu0 0.0
    %415 = vmatpush.msra.mxu0 0.0
    %416 = vmatpush.msra.mxu0 0.0
    %417 = vmatpush.msra.mxu0 0.0
    %418 = vmatpush.msra.mxu0 0.0
    %419 = vmatpush.msra.mxu0 0.0
    %420 = vmatpush.msra.mxu0 0.0
    %421 = vmatpush.msra.mxu0 0.0
    %422 = vmatpush.msra.mxu0 0.0
    %423 = vmatpush.msra.mxu0 0.0
    %424 = vmatpush.msra.mxu0 0.0
    %425 = vmatpush.msra.mxu0 0.0
    %426 = vmatpush.msra.mxu0 0.0
    %427 = vmatpush.msra.mxu0 %v411
    %428 = vmatpush.msra.mxu0 %v410
    %429 = vmatmul.f32.gmra.mxu0 %v140
    %v430 = vpop.f32.mrf.mxu0
    %v431 = vadd.f32 0.0, %v430
    %432 = vmatmul.f32.gmra.mxu0 %v140
    %v433 = vpop.f32.mrf.mxu0
    %v434 = vadd.f32 0.0, %v433
    %435 = vdwg.mxu0
    %v436 = vadd.f32 %v128, %v431
    %v437 = vadd.f32 %v131, %v434
    %v439 = vperm.slane %v412, 0
    %v441 = vadd.f32 %v436, %v439
    %v442 = vadd.f32 %v437, %v439
    %v443 = vsub.f32 0.0, %v441
    %v444 = vsub.f32 0.0, %v442
    %v445 = vmul.f32 %v443, 1.442695
    %v446 = vpow.pop %v445
    %v447 = vmul.f32 %v444, 1.442695
    %v448 = vpow.pop %v447
    %v449 = vadd.f32 %v446, 1.0
    %v450 = vadd.f32 %v448, 1.0
    %v451 = vrcp.pop %v449
    %v452 = vmul.f32 %v449, %v451
    %v453 = vsub.f32 1.0, %v452
    %v454 = vmul.f32 %v451, %v453
    %v455 = vadd.f32 %v451, %v454
    %vm456 = vweird.f32 %v449
    %vm457 = vweird.f32 %v451
    %vm458 = vmor %vm456, %vm457
    %v459 = vsel %vm458, %v451, %v455
    %v460 = vand.u32 2147483647, %v449
    %vm461 = vcmp.eq.f32.partialorder %v460, 8.507059e+37
    %v462 = vand.u32 %v449, 2147483648
    %v463 = vor.u32 1.1754944e-38, %v462
    %v464 = vsel %vm461, %v463, %v459
    %v465 = vmul.f32 1.0, %v464
    %v466 = vrcp.pop %v450
    %v467 = vmul.f32 %v450, %v466
    %v468 = vsub.f32 1.0, %v467
    %v469 = vmul.f32 %v466, %v468
    %v470 = vadd.f32 %v466, %v469
    %vm471 = vweird.f32 %v450
    %vm472 = vweird.f32 %v466
    %vm473 = vmor %vm471, %vm472
    %v474 = vsel %vm473, %v466, %v470
    %v475 = vand.u32 2147483647, %v450
    %vm476 = vcmp.eq.f32.partialorder %v475, 8.507059e+37
    %v477 = vand.u32 %v450, 2147483648
    %v478 = vor.u32 1.1754944e-38, %v477
    %v479 = vsel %vm476, %v478, %v474
    %v480 = vmul.f32 1.0, %v479
    %v481 = vtanh.pop %v441
    %v482 = vtanh.pop %v442
    %v483 = vmul.f32 %v465, 0.0
    %v484 = vmul.f32 %v480, 0.0
    %487 = vrot.lane.b32.xlu0 %v481, 96
    %v488 = vpop.permute.xlu0 %487
    %489 = vrot.lane.b32.xlu0 %v482, 96
    %v490 = vpop.permute.xlu0 %489
    %v493 = vmul.f32 %v465, %v488
    %v494 = vmul.f32 %v480, %v490
    %497 = vrot.lane.b32.xlu0 %v493, 16
    %v498 = vpop.permute.xlu0 %497
    %499 = vrot.lane.b32.xlu0 %v494, 16
    %v500 = vpop.permute.xlu0 %499
    %v503 = vadd.f32 %v483, %v498
    %v504 = vadd.f32 %v484, %v500
    %v505 = vtanh.pop %v503
    %v506 = vtanh.pop %v504
    %509 = vrot.lane.b32.xlu0 %v505, 32
    %v510 = vpop.permute.xlu0 %509
    %511 = vrot.lane.b32.xlu0 %v506, 32
    %v512 = vpop.permute.xlu0 %511
    %v515 = vmul.f32 %v465, %v510
    %v516 = vmul.f32 %v480, %v512
    %vm517 = vcmask 523648
    %v518 = vsel %vm517, %v515, -inf
    %vm519 = vcmask 519552
    %v520 = vsel %vm519, %v516, -inf
    %v521 = vmax.f32 %v518, %v520
    %v522 = vrot.slane %v521, 4
    %v523 = vmax.f32 %v521, %v522
    %v524 = vrot.slane %v523, 2
    %v525 = vmax.f32 %v523, %v524
    %v526 = vrot.slane %v525, 1
    %v527 = vmax.f32 %v525, %v526
    %529 = vrot.lane.b32.xlu0 %v527, 80
    %v530 = vpop.permute.xlu0 %529
    %533 = vrot.lane.b32.xlu0 %v409, 32
    %v534 = vpop.permute.xlu0 %533
    %v536 = vsel %vm100, %v530, %v534
    %v537 = vtanh.pop %v536
    %540 = vrot.lane.b32.xlu0 %v515, 80
    %v541 = vpop.permute.xlu0 %540
    %542 = vrot.lane.b32.xlu0 %v516, 80
    %v543 = vpop.permute.xlu0 %542
    %v544 = vsel %vm100, %v541, 0
    %v546 = vsel %vm100, %v543, 0
    %548 = vmatpush.msra.mxu0 0.0
    %549 = vmatpush.msra.mxu0 0.0
    %550 = vmatpush.msra.mxu0 0.0
    %551 = vmatpush.msra.mxu0 0.0
    %552 = vmatpush.msra.mxu0 0.0
    %553 = vmatpush.msra.mxu0 0.0
    %554 = vmatpush.msra.mxu0 0.0
    %555 = vmatpush.msra.mxu0 0.0
    %556 = vmatpush.msra.mxu0 0.0
    %557 = vmatpush.msra.mxu0 0.0
    %558 = vmatpush.msra.mxu0 0.0
    %559 = vmatpush.msra.mxu0 0.0
    %560 = vmatpush.msra.mxu0 0.0
    %561 = vmatpush.msra.mxu0 0.0
    %562 = vmatpush.msra.mxu0 %v411
    %563 = vmatpush.msra.mxu0 %v410
    %564 = vmatmul.f32.gmra.mxu0 %v544
    %v565 = vpop.f32.mrf.mxu0
    %v566 = vadd.f32 0.0, %v565
    %567 = vmatmul.f32.gmra.mxu0 %v546
    %v568 = vpop.f32.mrf.mxu0
    %v569 = vadd.f32 0.0, %v568
    %570 = vdwg.mxu0
    %v573 = vrot.slane %v566, 4
    %v574 = vrot.slane %v569, 4
    %v575 = vsel %vm167, %v573, %v574
    %v578 = vadd.f32 %v131, %v573
    %v579 = vadd.f32 %v134, %v575
    %v580 = vadd.f32 %v578, %v439
    %v581 = vadd.f32 %v579, %v439
    %v582 = vsub.f32 0.0, %v580
    %v583 = vsub.f32 0.0, %v581
    %v584 = vmul.f32 %v582, 1.442695
    %v585 = vpow.pop %v584
    %v586 = vmul.f32 %v583, 1.442695
    %v587 = vpow.pop %v586
    %v588 = vadd.f32 %v585, 1.0
    %v589 = vadd.f32 %v587, 1.0
    %v590 = vrcp.pop %v588
    %v591 = vmul.f32 %v588, %v590
    %v592 = vsub.f32 1.0, %v591
    %v593 = vmul.f32 %v590, %v592
    %v594 = vadd.f32 %v590, %v593
    %vm595 = vweird.f32 %v588
    %vm596 = vweird.f32 %v590
    %vm597 = vmor %vm595, %vm596
    %v598 = vsel %vm597, %v590, %v594
    %v599 = vand.u32 2147483647, %v588
    %vm600 = vcmp.eq.f32.partialorder %v599, 8.507059e+37
    %v601 = vand.u32 %v588, 2147483648
    %v602 = vor.u32 1.1754944e-38, %v601
    %v603 = vsel %vm600, %v602, %v598
    %v604 = vmul.f32 1.0, %v603
    %v605 = vrcp.pop %v589
    %v606 = vmul.f32 %v589, %v605
    %v607 = vsub.f32 1.0, %v606
    %v608 = vmul.f32 %v605, %v607
    %v609 = vadd.f32 %v605, %v608
    %vm610 = vweird.f32 %v589
    %vm611 = vweird.f32 %v605
    %vm612 = vmor %vm610, %vm611
    %v613 = vsel %vm612, %v605, %v609
    %v614 = vand.u32 2147483647, %v589
    %vm615 = vcmp.eq.f32.partialorder %v614, 8.507059e+37
    %v616 = vand.u32 %v589, 2147483648
    %v617 = vor.u32 1.1754944e-38, %v616
    %v618 = vsel %vm615, %v617, %v613
    %v619 = vmul.f32 1.0, %v618
    %v620 = vtanh.pop %v580
    %v621 = vtanh.pop %v581
    %v624 = vrot.slane %v503, 4
    %v625 = vrot.slane %v504, 4
    %v626 = vsel %vm167, %v624, %v625
    %v629 = vmul.f32 %v604, %v624
    %v630 = vmul.f32 %v619, %v626
    %633 = vrot.lane.b32.xlu0 %v620, 96
    %v634 = vpop.permute.xlu0 %633
    %635 = vrot.lane.b32.xlu0 %v621, 96
    %v636 = vpop.permute.xlu0 %635
    %v639 = vmul.f32 %v604, %v634
    %v640 = vmul.f32 %v619, %v636
    %643 = vrot.lane.b32.xlu0 %v639, 16
    %v644 = vpop.permute.xlu0 %643
    %645 = vrot.lane.b32.xlu0 %v640, 16
    %v646 = vpop.permute.xlu0 %645
    %v649 = vadd.f32 %v629, %v644
    %v650 = vadd.f32 %v630, %v646
    %v651 = vtanh.pop %v649
    %v652 = vtanh.pop %v650
    %655 = vrot.lane.b32.xlu0 %v651, 32
    %v656 = vpop.permute.xlu0 %655
    %657 = vrot.lane.b32.xlu0 %v652, 32
    %v658 = vpop.permute.xlu0 %657
    %v661 = vmul.f32 %v604, %v656
    %v662 = vmul.f32 %v619, %v658
    %vm663 = vcmask 523652
    %v664 = vsel %vm663, %v661, -inf
    %v665 = vsel %vm517, %v662, -inf
    %v666 = vmax.f32 %v664, %v665
    %v667 = vrot.slane %v666, 4
    %v668 = vmax.f32 %v666, %v667
    %v669 = vrot.slane %v668, 2
    %v670 = vmax.f32 %v668, %v669
    %v671 = vrot.slane %v670, 1
    %v672 = vmax.f32 %v670, %v671
    %674 = vrot.lane.b32.xlu0 %v672, 80
    %v675 = vpop.permute.xlu0 %674
    %678 = vrot.lane.b32.xlu0 %v270, 32
    %v679 = vpop.permute.xlu0 %678
    %v681 = vsel %vm100, %v675, %v679
    %v682 = vtanh.pop %v681
    %v684 = vrot.slane %v682, 7
    %vm686 = vcmask 1040384
    %v687 = vsel %vm686, %v537, %v684
    %v688 = vld [vmem:[%s8] sm:$0xff]
    %v689 = vld [vmem:[%s8 + $0x8] sm:$0xff]
    %v690 = vld [vmem:[%s8 + $0x10] sm:$0xff]
    %v691 = vld [vmem:[%s8 + $0x18] sm:$0xff]
    %v692 = vld [vmem:[%s9] sm:$0x1]
    %v694 = vperm.slane %v692, 0
    %vm696 = vcmask 261120
    %v698 = vsel %vm696, %v687, 0
    %700 = vmatpush.msra.mxu0 0.0
    %701 = vmatpush.msra.mxu0 0.0
    %702 = vmatpush.msra.mxu0 0.0
    %703 = vmatpush.msra.mxu0 0.0
    %704 = vmatpush.msra.mxu0 0.0
    %705 = vmatpush.msra.mxu0 0.0
    %706 = vmatpush.msra.mxu0 0.0
    %707 = vmatpush.msra.mxu0 0.0
    %708 = vmatpush.msra.mxu0 0.0
    %709 = vmatpush.msra.mxu0 0.0
    %710 = vmatpush.msra.mxu0 0.0
    %711 = vmatpush.msra.mxu0 0.0
    %712 = vmatpush.msra.mxu0 %v691
    %713 = vmatpush.msra.mxu0 %v690
    %714 = vmatpush.msra.mxu0 %v689
    %715 = vmatpush.msra.mxu0 %v688
    %716 = vmatmul.f32.gmra.mxu0 %v698
    %v717 = vpop.f32.mrf.mxu0
    %v718 = vadd.f32 %v694, %v717
    %719 = vdwg.mxu0
    %v720 = vld [vmem:[%s10] sm:$0x3]
    %v721 = vadd.f32 %v718, %v720
    %v722 = vld [vmem:[%s11] sm:$0x3]
    %v723 = vadd.f32 %v721, %v722
    %vm724 = vcmask 33792
    %v725 = vsel %vm724, %v723, -inf
    %726 = vmax.xlane.f32.xlu0 %v725
    %v727 = vpop.xlane.xlu0 %726
    %v728 = vsub.f32 %v723, %v727
    %v729 = vmul.f32 %v728, 1.442695
    %v730 = vpow.pop %v729
    %v731 = vsel %vm724, %v730, 0.0
    %732 = vadd.xlane.f32.xlu0 %v731
    %v733 = vpop.xlane.xlu0 %732
    %v734 = vlog2.pop %v733
    %v735 = vmul.f32 %v734, 0.6931472
    %v736 = vsub.f32 %v728, %v735
    %737 = vst.msk [vmem:[#allocation2] sm:$0x3] %vm724, %v736
    // Predicated region
    $region50: #{hcl_forward.7} parent=1 // pred_check
      _
    $region51: #{hcl_forward.7} parent=1 // pred_check_branch
      %739 = sbr.rel (0) target = $region53
    $region52: #{hcl_forward.7} parent=1 // pred_region
      %741 = vsyncadd [#allocation3], 0
      %s743 = sshll.u32 [#allocation2], 4
      %s744 = int_to_ptr.vmem [resolvable:$true] %s743
      %s745 = sshll.u32 %s12, 4
      %s746 = int_to_ptr.hbm [resolvable:$true] %s745
      %748 = dma.vmem_to_hbm [thread:$0]  %s744, 32, %s746, [#allocation3]
    $region53: #{hcl_forward.7} parent=1 // pred_fallthru
      _
    // Predicated region
    $region54: #{hcl_forward.7} parent=1 // pred_check
      _
    $region55: #{hcl_forward.7} parent=1 // pred_check_branch
      %750 = sbr.rel (0) target = $region57
    $region56: #{hcl_forward.7} parent=1 // pred_region
      %752 = dma.done [#allocation3], 32
    $region57: #{hcl_forward.7} parent=1 // pred_fallthru
      _
    %753 = vsyncpa [#allocation3], 1

</llo_original>
